<compile_context>
chip_gen: v7x
topology: tpu7x:2x2x1
jax: 0.10.0
libtpu: 0.0.40
codegen_flags: <defaults>
</compile_context>

<pallas_src>
import functools
import math

import jax
import jax.numpy as jnp
from jax import lax
from jax.experimental import pallas as pl
from jax.experimental.pallas import tpu as pltpu

H_MAX = 0.05  # matches ode_solve's h_max


def _make_traj_kernel(n_steps_max):
    """Kernel: for interval i (grid axis 1), integrate z' = f(z,t) with Euler.

    z is carried across intervals in a VMEM scratch; each interval's result is
    written to out[i]. Steps beyond the interval's n_steps use h_eff = 0.
    """

    def kernel(t0s_ref, hs_ref, ns_ref,            # SMEM per-interval tables
               z0_ref, w1zT_ref, w1t_ref, b1_ref,  # VMEM inputs
               w2T_ref, b2_ref, w3T_ref, b3_ref,
               out_ref, z_scr):
        i = pl.program_id(1)  # interval index (sequential carry axis)

        @pl.when(i == 0)
        def _():
            z_scr[...] = z0_ref[...].astype(jnp.float32)

        t0 = t0s_ref[i]
        h = hs_ref[i]
        n_i = ns_ref[i]

        bt = z_scr.shape[0]
        w1zT = w1zT_ref[...]                      # (D, H)  bf16
        w2T = w2T_ref[...]                        # (H, H)  bf16
        w3T = w3T_ref[...]                        # (H, D)  bf16
        # Hoist broadcasts out of the unrolled Euler loop (JAX does not CSE
        # broadcast_in_dim).
        w1t_b = jnp.broadcast_to(w1t_ref[...], (bt, w1t_ref.shape[-1]))
        b1_b = jnp.broadcast_to(b1_ref[...], (bt, b1_ref.shape[-1]))
        b2_b = jnp.broadcast_to(b2_ref[...], (bt, b2_ref.shape[-1]))
        b3_b = jnp.broadcast_to(b3_ref[...], (bt, b3_ref.shape[-1]))

        def elu(x):
            return jnp.where(x > 0, x, jnp.exp(x) - 1.0)

        def f(z, t):
            # bf16 MXU operands, f32 accumulation.
            h1 = elu(jnp.dot(z.astype(jnp.bfloat16), w1zT,
                             preferred_element_type=jnp.float32)
                     + t * w1t_b + b1_b)
            h2 = elu(jnp.dot(h1.astype(jnp.bfloat16), w2T,
                             preferred_element_type=jnp.float32) + b2_b)
            return jnp.dot(h2.astype(jnp.bfloat16), w3T,
                           preferred_element_type=jnp.float32) + b3_b

        def body(j, z):
            h_eff = jnp.where(j < n_i, h, jnp.float32(0.0))  # mask padded steps
            t_j = t0 + j * h
            return z + h_eff * f(z, t_j)

        z = lax.fori_loop(0, n_steps_max, body, z_scr[...], unroll=True)
        z_scr[...] = z
        out_ref[0] = z.astype(out_ref.dtype)

    return kernel


def _ceil_to(x, m):
    return ((x + m - 1) // m) * m


@functools.lru_cache(maxsize=None)
def _build_solver(num_intervals, n_steps_max, n_batch_tiles, bt, in_dim,
                  hid_dim):
    """Builds (and caches) the fused trajectory pallas_call."""
    smem = pl.BlockSpec(memory_space=pltpu.MemorySpace.SMEM)
    in_specs = [
        smem,  # t0s
        smem,  # hs
        smem,  # n_steps per interval
        pl.BlockSpec((bt, in_dim), lambda b, i: (b, 0)),          # z0
        pl.BlockSpec((in_dim, hid_dim), lambda b, i: (0, 0)),     # w1zT (bf16)
        pl.BlockSpec((1, hid_dim), lambda b, i: (0, 0)),          # w1t
        pl.BlockSpec((1, hid_dim), lambda b, i: (0, 0)),          # b1
        pl.BlockSpec((hid_dim, hid_dim), lambda b, i: (0, 0)),    # w2T (bf16)
        pl.BlockSpec((1, hid_dim), lambda b, i: (0, 0)),          # b2
        pl.BlockSpec((hid_dim, in_dim), lambda b, i: (0, 0)),     # w3T (bf16)
        pl.BlockSpec((1, in_dim), lambda b, i: (0, 0)),           # b3
    ]
    out_specs = pl.BlockSpec((1, bt, in_dim), lambda b, i: (i, b, 0))

    return pl.pallas_call(
        _make_traj_kernel(n_steps_max),
        out_shape=jax.ShapeDtypeStruct(
            (num_intervals, n_batch_tiles * bt, in_dim), jnp.float32),
        grid=(n_batch_tiles, num_intervals),
        in_specs=in_specs,
        out_specs=out_specs,
        scratch_shapes=[pltpu.VMEM((bt, in_dim), jnp.float32)],
        compiler_params=pltpu.CompilerParams(
            dimension_semantics=("parallel", "arbitrary")),
    )


class NeuralODEPallas:
    """Forward-pass equivalent of NeuralODE(NNODEF(...)) in JAX/Pallas."""

    def __init__(self, params):
        # Matmul weights pre-cast to bf16 (MXU operands); biases / time column
        # stay f32 (added to the f32 accumulators).
        self.w1zT = params["w1zT"].astype(jnp.bfloat16)   # (D, H)
        self.w1t = params["w1t"].astype(jnp.float32)      # (1, H)
        self.b1 = params["b1"].astype(jnp.float32)        # (1, H)
        self.w2T = params["w2T"].astype(jnp.bfloat16)     # (H, H)
        self.b2 = params["b2"].astype(jnp.float32)        # (1, H)
        self.w3T = params["w3T"].astype(jnp.bfloat16)     # (H, D)
        self.b3 = params["b3"].astype(jnp.float32)        # (1, D)

    def __call__(self, z0, t=(0.0, 1.0), return_whole_sequence=False):
        t = [float(ti) for ti in t]
        B, D = z0.shape
        H = self.b1.shape[-1]
        if len(t) < 2:
            return z0[None] if return_whole_sequence else z0

        num_intervals = len(t) - 1
        n_list, h_list = [], []
        for i in range(num_intervals):
            n = int(math.ceil(abs(t[i + 1] - t[i]) / H_MAX))
            h = (t[i + 1] - t[i]) / n if n > 0 else 0.0
            n_list.append(n)
            h_list.append(h)
        n_steps_max = max(1, max(n_list))

        # Pad batch to a sublane multiple (8); tile by 128 rows if large so the
        # batch axis can be megacore-parallel.
        if B <= 128:
            bt, nbt = _ceil_to(B, 8), 1
        else:
            bt, nbt = 128, (B + 127) // 128
        Bp = bt * nbt
        z0p = z0.astype(jnp.float32)
        if Bp != B:
            z0p = jnp.pad(z0p, ((0, Bp - B), (0, 0)))

        solver = _build_solver(num_intervals, n_steps_max, nbt, bt, D, H)

        t0s = jnp.asarray(t[:-1], dtype=jnp.float32)
        hs = jnp.asarray(h_list, dtype=jnp.float32)
        ns = jnp.asarray(n_list, dtype=jnp.int32)

        seq = solver(t0s, hs, ns, z0p,
                     self.w1zT, self.w1t, self.b1,
                     self.w2T, self.b2, self.w3T, self.b3)
        seq = seq[:, :B, :].astype(z0.dtype)       # (num_intervals, B, D)

        if return_whole_sequence:
            return jnp.concatenate([z0[None], seq], axis=0)
        return seq[-1]


def init_nnodef_params(key, in_dim, hid_dim):
    """Deterministic init mimicking PyTorch nn.Linear defaults (f32)."""
    ks = jax.random.split(key, 6)
    k1 = 1.0 / math.sqrt(in_dim + 1)          # lin1 sees [z, t]
    w1 = jax.random.uniform(ks[0], (hid_dim, in_dim + 1), jnp.float32, -k1, k1)
    b1 = jax.random.uniform(ks[1], (1, hid_dim), jnp.float32, -k1, k1)
    k2 = 1.0 / math.sqrt(hid_dim)
    w2 = jax.random.uniform(ks[2], (hid_dim, hid_dim), jnp.float32, -k2, k2)
    b2 = jax.random.uniform(ks[3], (1, hid_dim), jnp.float32, -k2, k2)
    w3 = jax.random.uniform(ks[4], (in_dim, hid_dim), jnp.float32, -k2, k2)
    b3 = jax.random.uniform(ks[5], (1, in_dim), jnp.float32, -k2, k2)
    return {
        "w1zT": jnp.transpose(w1[:, :in_dim]),      # (in_dim, hid)
        "w1t": jnp.transpose(w1[:, in_dim:]),       # (1, hid)  time column
        "b1": b1,
        "w2T": jnp.transpose(w2),                   # (hid, hid)
        "b2": b2,
        "w3T": jnp.transpose(w3),                   # (hid, in_dim)
        "b3": b3,
    }


def _reference_forward(z0, t, params):
    """Pure-JAX f32 Euler reference (mirrors ode_solve / ODEAdjoint.forward)."""

    def elu(x):
        return jnp.where(x > 0, x, jnp.exp(x) - 1.0)

    def f(z, tt):
        h1 = elu(z @ params["w1zT"] + tt * params["w1t"] + params["b1"])
        h2 = elu(h1 @ params["w2T"] + params["b2"])
        return h2 @ params["w3T"] + params["b3"]

    zs = [z0]
    z = z0
    for i in range(len(t) - 1):
        n = int(math.ceil(abs(t[i + 1] - t[i]) / H_MAX))
        h = (t[i + 1] - t[i]) / n if n > 0 else 0.0
        tt = t[i]
        for _ in range(n):
            z = z + h * f(z, tt)
            tt = tt + h
        zs.append(z)
    return jnp.stack(zs, axis=0)


if __name__ == "__main__":
    key = jax.random.PRNGKey(0)
    k_params, k_z0 = jax.random.split(key)

    batch, in_dim, hid_dim = 4, 16, 32
    params = init_nnodef_params(k_params, in_dim, hid_dim)
    z0 = jax.random.normal(k_z0, (batch, in_dim), dtype=jnp.float32)

    model = NeuralODEPallas(params)

    # default t = [0.0, 1.0], return_whole_sequence=False -> z[-1]
    z_final = model(z0, t=(0.0, 1.0), return_whole_sequence=False)
    jax.block_until_ready(z_final)
    assert z_final.shape == (batch, in_dim)
    assert jnp.all(jnp.isfinite(z_final))

    # multi-interval trajectory, whole sequence (exercises the fused grid)
    zs = model(z0, t=(0.0, 0.5, 1.0), return_whole_sequence=True)
    jax.block_until_ready(zs)
    assert zs.shape == (3, batch, in_dim)
    assert jnp.all(jnp.isfinite(zs))

    # loose parity vs pure-JAX f32 reference (kernel uses bf16 MXU operands)
    ref_final = _reference_forward(z0, [0.0, 1.0], params)[-1]
    max_err = float(jnp.max(jnp.abs(z_final - ref_final)))
    assert max_err < 1e-1, f"max abs err vs reference: {max_err}"

    print("KERNEL_OK")
</pallas_src>

<mosaic_0001>
module attributes {stable_mosaic.version = 11 : i64} {
  func.func @kernel(%arg0: i32, %arg1: i32, %arg2: memref<1xf32, #tpu.memory_space<smem>>, %arg3: memref<1xf32, #tpu.memory_space<smem>>, %arg4: memref<1xi32, #tpu.memory_space<smem>>, %arg5: memref<8x16xf32, #tpu.memory_space<vmem>>, %arg6: memref<16x32xbf16, #tpu.memory_space<vmem>>, %arg7: memref<1x32xf32, #tpu.memory_space<vmem>>, %arg8: memref<1x32xf32, #tpu.memory_space<vmem>>, %arg9: memref<32x32xbf16, #tpu.memory_space<vmem>>, %arg10: memref<1x32xf32, #tpu.memory_space<vmem>>, %arg11: memref<32x16xbf16, #tpu.memory_space<vmem>>, %arg12: memref<1x16xf32, #tpu.memory_space<vmem>>, %arg13: memref<1x8x16xf32, #tpu.memory_space<vmem>>, %arg14: memref<8x16xf32, #tpu.memory_space<vmem>>) attributes {dimension_semantics = [#tpu.dimension_semantics<parallel>, #tpu.dimension_semantics<arbitrary>], iteration_bounds = array<i64: 1, 1>, scalar_prefetch = 0 : i64, scratch_operands = 1 : i64, tpu.core_type = #tpu.core_type<tc>, window_params = [{transform_indices = @transform_0, window_bounds = array<i64: 1>}, {transform_indices = @transform_1, window_bounds = array<i64: 1>}, {transform_indices = @transform_2, window_bounds = array<i64: 1>}, {transform_indices = @transform_3, window_bounds = array<i64: 8, 16>}, {pipeline_mode = #tpu.pipeline_mode<synchronous>, transform_indices = @transform_4, window_bounds = array<i64: 16, 32>}, {pipeline_mode = #tpu.pipeline_mode<synchronous>, transform_indices = @transform_5, window_bounds = array<i64: 1, 32>}, {pipeline_mode = #tpu.pipeline_mode<synchronous>, transform_indices = @transform_6, window_bounds = array<i64: 1, 32>}, {pipeline_mode = #tpu.pipeline_mode<synchronous>, transform_indices = @transform_7, window_bounds = array<i64: 32, 32>}, {pipeline_mode = #tpu.pipeline_mode<synchronous>, transform_indices = @transform_8, window_bounds = array<i64: 1, 32>}, {pipeline_mode = #tpu.pipeline_mode<synchronous>, transform_indices = @transform_9, window_bounds = array<i64: 32, 16>}, {pipeline_mode = #tpu.pipeline_mode<synchronous>, transform_indices = @transform_10, window_bounds = array<i64: 1, 16>}, {transform_indices = @transform_11, window_bounds = array<i64: 1, 8, 16>}]} {
    %c0_i32 = arith.constant 0 : i32
    %0 = arith.cmpi eq, %arg1, %c0_i32 : i32
    %1 = arith.extui %0 : i1 to i32
    %c0_i32_0 = arith.constant 0 : i32
    %2 = arith.cmpi ne, %1, %c0_i32_0 : i32
    scf.if %2 {
      %c0_181 = arith.constant 0 : index
      %c0_182 = arith.constant 0 : index
      %669 = vector.load %arg5[%c0_181, %c0_182] : memref<8x16xf32, #tpu.memory_space<vmem>>, vector<8x16xf32>
      %c0_183 = arith.constant 0 : index
      %c0_184 = arith.constant 0 : index
      %670 = vector.load %arg14[%c0_183, %c0_184] : memref<8x16xf32, #tpu.memory_space<vmem>>, vector<8x16xf32>
      tpu.vector_store %arg14[%c0_183, %c0_184], %669 {strides = array<i32>} : memref<8x16xf32, #tpu.memory_space<vmem>>, vector<8x16xf32>,
    } else {
    }
    %3 = arith.index_cast %arg1 : i32 to index
    %4 = memref.load %arg2[%3] : memref<1xf32, #tpu.memory_space<smem>>
    %5 = arith.index_cast %arg1 : i32 to index
    %6 = memref.load %arg3[%5] : memref<1xf32, #tpu.memory_space<smem>>
    %7 = arith.index_cast %arg1 : i32 to index
    %8 = memref.load %arg4[%7] : memref<1xi32, #tpu.memory_space<smem>>
    %c0 = arith.constant 0 : index
    %c0_1 = arith.constant 0 : index
    %9 = vector.load %arg6[%c0, %c0_1] : memref<16x32xbf16, #tpu.memory_space<vmem>>, vector<16x32xbf16>
    %c0_2 = arith.constant 0 : index
    %c0_3 = arith.constant 0 : index
    %10 = vector.load %arg9[%c0_2, %c0_3] : memref<32x32xbf16, #tpu.memory_space<vmem>>, vector<32x32xbf16>
    %c0_4 = arith.constant 0 : index
    %c0_5 = arith.constant 0 : index
    %11 = vector.load %arg11[%c0_4, %c0_5] : memref<32x16xbf16, #tpu.memory_space<vmem>>, vector<32x16xbf16>
    %c0_6 = arith.constant 0 : index
    %c0_7 = arith.constant 0 : index
    %12 = vector.load %arg7[%c0_6, %c0_7] : memref<1x32xf32, #tpu.memory_space<vmem>>, vector<1x32xf32>
    %13 = vector.shape_cast %12 : vector<1x32xf32> to vector<1x32xf32>
    %14 = vector.broadcast %13 : vector<1x32xf32> to vector<8x32xf32>
    %c0_8 = arith.constant 0 : index
    %c0_9 = arith.constant 0 : index
    %15 = vector.load %arg8[%c0_8, %c0_9] : memref<1x32xf32, #tpu.memory_space<vmem>>, vector<1x32xf32>
    %16 = vector.shape_cast %15 : vector<1x32xf32> to vector<1x32xf32>
    %17 = vector.broadcast %16 : vector<1x32xf32> to vector<8x32xf32>
    %c0_10 = arith.constant 0 : index
    %c0_11 = arith.constant 0 : index
    %18 = vector.load %arg10[%c0_10, %c0_11] : memref<1x32xf32, #tpu.memory_space<vmem>>, vector<1x32xf32>
    %19 = vector.shape_cast %18 : vector<1x32xf32> to vector<1x32xf32>
    %20 = vector.broadcast %19 : vector<1x32xf32> to vector<8x32xf32>
    %c0_12 = arith.constant 0 : index
    %c0_13 = arith.constant 0 : index
    %21 = vector.load %arg12[%c0_12, %c0_13] : memref<1x16xf32, #tpu.memory_space<vmem>>, vector<1x16xf32>
    %22 = vector.shape_cast %21 : vector<1x16xf32> to vector<1x16xf32>
    %23 = vector.broadcast %22 : vector<1x16xf32> to vector<8x16xf32>
    %c0_14 = arith.constant 0 : index
    %c0_15 = arith.constant 0 : index
    %24 = vector.load %arg14[%c0_14, %c0_15] : memref<8x16xf32, #tpu.memory_space<vmem>>, vector<8x16xf32>
    %c0_i32_16 = arith.constant 0 : i32
    %25 = arith.cmpi slt, %c0_i32_16, %8 : i32
    %cst = arith.constant 0.000000e+00 : f32
    %26 = arith.select %25, %6, %cst : f32
    %27 = arith.sitofp %c0_i32_16 : i32 to f32
    %28 = arith.mulf %27, %6 : f32
    %29 = arith.addf %4, %28 : f32
    %30 = arith.truncf %24 : vector<8x16xf32> to vector<8x16xbf16>
    %cst_17 = arith.constant dense<0.000000e+00> : vector<8x32xf32>
    %31 = tpu.matmul %30, %9, %cst_17 {dimension_numbers = #tpu.dot_dimension_numbers<[1], [0], [0], [1], [0, 0, 1, 1], [], []>} : vector<8x16xbf16>, vector<16x32xbf16>, vector<8x32xf32> -> vector<8x32xf32>
    %32 = vector.broadcast %29 : f32 to vector<8x32xf32>
    %33 = arith.mulf %32, %14 : vector<8x32xf32>
    %34 = arith.addf %31, %33 : vector<8x32xf32>
    %35 = arith.addf %34, %17 : vector<8x32xf32>
    %cst_18 = arith.constant 0.000000e+00 : f32
    %36 = vector.broadcast %cst_18 : f32 to vector<8x32xf32>
    %37 = arith.cmpf ogt, %35, %36 : vector<8x32xf32>
    %38 = math.exp %35 : vector<8x32xf32>
    %cst_19 = arith.constant 1.000000e+00 : f32
    %39 = vector.broadcast %cst_19 : f32 to vector<8x32xf32>
    %40 = arith.subf %38, %39 : vector<8x32xf32>
    %41 = arith.select %37, %35, %40 : vector<8x32xi1>, vector<8x32xf32>
    %42 = arith.truncf %41 : vector<8x32xf32> to vector<8x32xbf16>
    %cst_20 = arith.constant dense<0.000000e+00> : vector<8x32xf32>
    %43 = tpu.matmul %42, %10, %cst_20 {dimension_numbers = #tpu.dot_dimension_numbers<[1], [0], [0], [1], [0, 0, 1, 1], [], []>} : vector<8x32xbf16>, vector<32x32xbf16>, vector<8x32xf32> -> vector<8x32xf32>
    %44 = arith.addf %43, %20 : vector<8x32xf32>
    %cst_21 = arith.constant 0.000000e+00 : f32
    %45 = vector.broadcast %cst_21 : f32 to vector<8x32xf32>
    %46 = arith.cmpf ogt, %44, %45 : vector<8x32xf32>
    %47 = math.exp %44 : vector<8x32xf32>
    %cst_22 = arith.constant 1.000000e+00 : f32
    %48 = vector.broadcast %cst_22 : f32 to vector<8x32xf32>
    %49 = arith.subf %47, %48 : vector<8x32xf32>
    %50 = arith.select %46, %44, %49 : vector<8x32xi1>, vector<8x32xf32>
    %51 = arith.truncf %50 : vector<8x32xf32> to vector<8x32xbf16>
    %cst_23 = arith.constant dense<0.000000e+00> : vector<8x16xf32>
    %52 = tpu.matmul %51, %11, %cst_23 {dimension_numbers = #tpu.dot_dimension_numbers<[1], [0], [0], [1], [0, 0, 1, 1], [], []>} : vector<8x32xbf16>, vector<32x16xbf16>, vector<8x16xf32> -> vector<8x16xf32>
    %53 = arith.addf %52, %23 : vector<8x16xf32>
    %54 = vector.broadcast %26 : f32 to vector<8x16xf32>
    %55 = arith.mulf %54, %53 : vector<8x16xf32>
    %56 = arith.addf %24, %55 : vector<8x16xf32>
    %c1_i32 = arith.constant 1 : i32
    %57 = arith.cmpi slt, %c1_i32, %8 : i32
    %cst_24 = arith.constant 0.000000e+00 : f32
    %58 = arith.select %57, %6, %cst_24 : f32
    %59 = arith.sitofp %c1_i32 : i32 to f32
    %60 = arith.mulf %59, %6 : f32
    %61 = arith.addf %4, %60 : f32
    %62 = arith.truncf %56 : vector<8x16xf32> to vector<8x16xbf16>
    %cst_25 = arith.constant dense<0.000000e+00> : vector<8x32xf32>
    %63 = tpu.matmul %62, %9, %cst_25 {dimension_numbers = #tpu.dot_dimension_numbers<[1], [0], [0], [1], [0, 0, 1, 1], [], []>} : vector<8x16xbf16>, vector<16x32xbf16>, vector<8x32xf32> -> vector<8x32xf32>
    %64 = vector.broadcast %61 : f32 to vector<8x32xf32>
    %65 = arith.mulf %64, %14 : vector<8x32xf32>
    %66 = arith.addf %63, %65 : vector<8x32xf32>
    %67 = arith.addf %66, %17 : vector<8x32xf32>
    %cst_26 = arith.constant 0.000000e+00 : f32
    %68 = vector.broadcast %cst_26 : f32 to vector<8x32xf32>
    %69 = arith.cmpf ogt, %67, %68 : vector<8x32xf32>
    %70 = math.exp %67 : vector<8x32xf32>
    %cst_27 = arith.constant 1.000000e+00 : f32
    %71 = vector.broadcast %cst_27 : f32 to vector<8x32xf32>
    %72 = arith.subf %70, %71 : vector<8x32xf32>
    %73 = arith.select %69, %67, %72 : vector<8x32xi1>, vector<8x32xf32>
    %74 = arith.truncf %73 : vector<8x32xf32> to vector<8x32xbf16>
    %cst_28 = arith.constant dense<0.000000e+00> : vector<8x32xf32>
    %75 = tpu.matmul %74, %10, %cst_28 {dimension_numbers = #tpu.dot_dimension_numbers<[1], [0], [0], [1], [0, 0, 1, 1], [], []>} : vector<8x32xbf16>, vector<32x32xbf16>, vector<8x32xf32> -> vector<8x32xf32>
    %76 = arith.addf %75, %20 : vector<8x32xf32>
    %cst_29 = arith.constant 0.000000e+00 : f32
    %77 = vector.broadcast %cst_29 : f32 to vector<8x32xf32>
    %78 = arith.cmpf ogt, %76, %77 : vector<8x32xf32>
    %79 = math.exp %76 : vector<8x32xf32>
    %cst_30 = arith.constant 1.000000e+00 : f32
    %80 = vector.broadcast %cst_30 : f32 to vector<8x32xf32>
    %81 = arith.subf %79, %80 : vector<8x32xf32>
    %82 = arith.select %78, %76, %81 : vector<8x32xi1>, vector<8x32xf32>
    %83 = arith.truncf %82 : vector<8x32xf32> to vector<8x32xbf16>
    %cst_31 = arith.constant dense<0.000000e+00> : vector<8x16xf32>
    %84 = tpu.matmul %83, %11, %cst_31 {dimension_numbers = #tpu.dot_dimension_numbers<[1], [0], [0], [1], [0, 0, 1, 1], [], []>} : vector<8x32xbf16>, vector<32x16xbf16>, vector<8x16xf32> -> vector<8x16xf32>
    %85 = arith.addf %84, %23 : vector<8x16xf32>
    %86 = vector.broadcast %58 : f32 to vector<8x16xf32>
    %87 = arith.mulf %86, %85 : vector<8x16xf32>
    %88 = arith.addf %56, %87 : vector<8x16xf32>
    %c2_i32 = arith.constant 2 : i32
    %89 = arith.cmpi slt, %c2_i32, %8 : i32
    %cst_32 = arith.constant 0.000000e+00 : f32
    %90 = arith.select %89, %6, %cst_32 : f32
    %91 = arith.sitofp %c2_i32 : i32 to f32
    %92 = arith.mulf %91, %6 : f32
    %93 = arith.addf %4, %92 : f32
    %94 = arith.truncf %88 : vector<8x16xf32> to vector<8x16xbf16>
    %cst_33 = arith.constant dense<0.000000e+00> : vector<8x32xf32>
    %95 = tpu.matmul %94, %9, %cst_33 {dimension_numbers = #tpu.dot_dimension_numbers<[1], [0], [0], [1], [0, 0, 1, 1], [], []>} : vector<8x16xbf16>, vector<16x32xbf16>, vector<8x32xf32> -> vector<8x32xf32>
    %96 = vector.broadcast %93 : f32 to vector<8x32xf32>
    %97 = arith.mulf %96, %14 : vector<8x32xf32>
    %98 = arith.addf %95, %97 : vector<8x32xf32>
    %99 = arith.addf %98, %17 : vector<8x32xf32>
    %cst_34 = arith.constant 0.000000e+00 : f32
    %100 = vector.broadcast %cst_34 : f32 to vector<8x32xf32>
    %101 = arith.cmpf ogt, %99, %100 : vector<8x32xf32>
    %102 = math.exp %99 : vector<8x32xf32>
    %cst_35 = arith.constant 1.000000e+00 : f32
    %103 = vector.broadcast %cst_35 : f32 to vector<8x32xf32>
    %104 = arith.subf %102, %103 : vector<8x32xf32>
    %105 = arith.select %101, %99, %104 : vector<8x32xi1>, vector<8x32xf32>
    %106 = arith.truncf %105 : vector<8x32xf32> to vector<8x32xbf16>
    %cst_36 = arith.constant dense<0.000000e+00> : vector<8x32xf32>
    %107 = tpu.matmul %106, %10, %cst_36 {dimension_numbers = #tpu.dot_dimension_numbers<[1], [0], [0], [1], [0, 0, 1, 1], [], []>} : vector<8x32xbf16>, vector<32x32xbf16>, vector<8x32xf32> -> vector<8x32xf32>
    %108 = arith.addf %107, %20 : vector<8x32xf32>
    %cst_37 = arith.constant 0.000000e+00 : f32
    %109 = vector.broadcast %cst_37 : f32 to vector<8x32xf32>
    %110 = arith.cmpf ogt, %108, %109 : vector<8x32xf32>
    %111 = math.exp %108 : vector<8x32xf32>
    %cst_38 = arith.constant 1.000000e+00 : f32
    %112 = vector.broadcast %cst_38 : f32 to vector<8x32xf32>
    %113 = arith.subf %111, %112 : vector<8x32xf32>
    %114 = arith.select %110, %108, %113 : vector<8x32xi1>, vector<8x32xf32>
    %115 = arith.truncf %114 : vector<8x32xf32> to vector<8x32xbf16>
    %cst_39 = arith.constant dense<0.000000e+00> : vector<8x16xf32>
    %116 = tpu.matmul %115, %11, %cst_39 {dimension_numbers = #tpu.dot_dimension_numbers<[1], [0], [0], [1], [0, 0, 1, 1], [], []>} : vector<8x32xbf16>, vector<32x16xbf16>, vector<8x16xf32> -> vector<8x16xf32>
    %117 = arith.addf %116, %23 : vector<8x16xf32>
    %118 = vector.broadcast %90 : f32 to vector<8x16xf32>
    %119 = arith.mulf %118, %117 : vector<8x16xf32>
    %120 = arith.addf %88, %119 : vector<8x16xf32>
    %c3_i32 = arith.constant 3 : i32
    %121 = arith.cmpi slt, %c3_i32, %8 : i32
    %cst_40 = arith.constant 0.000000e+00 : f32
    %122 = arith.select %121, %6, %cst_40 : f32
    %123 = arith.sitofp %c3_i32 : i32 to f32
    %124 = arith.mulf %123, %6 : f32
    %125 = arith.addf %4, %124 : f32
    %126 = arith.truncf %120 : vector<8x16xf32> to vector<8x16xbf16>
    %cst_41 = arith.constant dense<0.000000e+00> : vector<8x32xf32>
    %127 = tpu.matmul %126, %9, %cst_41 {dimension_numbers = #tpu.dot_dimension_numbers<[1], [0], [0], [1], [0, 0, 1, 1], [], []>} : vector<8x16xbf16>, vector<16x32xbf16>, vector<8x32xf32> -> vector<8x32xf32>
    %128 = vector.broadcast %125 : f32 to vector<8x32xf32>
    %129 = arith.mulf %128, %14 : vector<8x32xf32>
    %130 = arith.addf %127, %129 : vector<8x32xf32>
    %131 = arith.addf %130, %17 : vector<8x32xf32>
    %cst_42 = arith.constant 0.000000e+00 : f32
    %132 = vector.broadcast %cst_42 : f32 to vector<8x32xf32>
    %133 = arith.cmpf ogt, %131, %132 : vector<8x32xf32>
    %134 = math.exp %131 : vector<8x32xf32>
    %cst_43 = arith.constant 1.000000e+00 : f32
    %135 = vector.broadcast %cst_43 : f32 to vector<8x32xf32>
    %136 = arith.subf %134, %135 : vector<8x32xf32>
    %137 = arith.select %133, %131, %136 : vector<8x32xi1>, vector<8x32xf32>
    %138 = arith.truncf %137 : vector<8x32xf32> to vector<8x32xbf16>
    %cst_44 = arith.constant dense<0.000000e+00> : vector<8x32xf32>
    %139 = tpu.matmul %138, %10, %cst_44 {dimension_numbers = #tpu.dot_dimension_numbers<[1], [0], [0], [1], [0, 0, 1, 1], [], []>} : vector<8x32xbf16>, vector<32x32xbf16>, vector<8x32xf32> -> vector<8x32xf32>
    %140 = arith.addf %139, %20 : vector<8x32xf32>
    %cst_45 = arith.constant 0.000000e+00 : f32
    %141 = vector.broadcast %cst_45 : f32 to vector<8x32xf32>
    %142 = arith.cmpf ogt, %140, %141 : vector<8x32xf32>
    %143 = math.exp %140 : vector<8x32xf32>
    %cst_46 = arith.constant 1.000000e+00 : f32
    %144 = vector.broadcast %cst_46 : f32 to vector<8x32xf32>
    %145 = arith.subf %143, %144 : vector<8x32xf32>
    %146 = arith.select %142, %140, %145 : vector<8x32xi1>, vector<8x32xf32>
    %147 = arith.truncf %146 : vector<8x32xf32> to vector<8x32xbf16>
    %cst_47 = arith.constant dense<0.000000e+00> : vector<8x16xf32>
    %148 = tpu.matmul %147, %11, %cst_47 {dimension_numbers = #tpu.dot_dimension_numbers<[1], [0], [0], [1], [0, 0, 1, 1], [], []>} : vector<8x32xbf16>, vector<32x16xbf16>, vector<8x16xf32> -> vector<8x16xf32>
    %149 = arith.addf %148, %23 : vector<8x16xf32>
    %150 = vector.broadcast %122 : f32 to vector<8x16xf32>
    %151 = arith.mulf %150, %149 : vector<8x16xf32>
    %152 = arith.addf %120, %151 : vector<8x16xf32>
    %c4_i32 = arith.constant 4 : i32
    %153 = arith.cmpi slt, %c4_i32, %8 : i32
    %cst_48 = arith.constant 0.000000e+00 : f32
    %154 = arith.select %153, %6, %cst_48 : f32
    %155 = arith.sitofp %c4_i32 : i32 to f32
    %156 = arith.mulf %155, %6 : f32
    %157 = arith.addf %4, %156 : f32
    %158 = arith.truncf %152 : vector<8x16xf32> to vector<8x16xbf16>
    %cst_49 = arith.constant dense<0.000000e+00> : vector<8x32xf32>
    %159 = tpu.matmul %158, %9, %cst_49 {dimension_numbers = #tpu.dot_dimension_numbers<[1], [0], [0], [1], [0, 0, 1, 1], [], []>} : vector<8x16xbf16>, vector<16x32xbf16>, vector<8x32xf32> -> vector<8x32xf32>
    %160 = vector.broadcast %157 : f32 to vector<8x32xf32>
    %161 = arith.mulf %160, %14 : vector<8x32xf32>
    %162 = arith.addf %159, %161 : vector<8x32xf32>
    %163 = arith.addf %162, %17 : vector<8x32xf32>
    %cst_50 = arith.constant 0.000000e+00 : f32
    %164 = vector.broadcast %cst_50 : f32 to vector<8x32xf32>
    %165 = arith.cmpf ogt, %163, %164 : vector<8x32xf32>
    %166 = math.exp %163 : vector<8x32xf32>
    %cst_51 = arith.constant 1.000000e+00 : f32
    %167 = vector.broadcast %cst_51 : f32 to vector<8x32xf32>
    %168 = arith.subf %166, %167 : vector<8x32xf32>
    %169 = arith.select %165, %163, %168 : vector<8x32xi1>, vector<8x32xf32>
    %170 = arith.truncf %169 : vector<8x32xf32> to vector<8x32xbf16>
    %cst_52 = arith.constant dense<0.000000e+00> : vector<8x32xf32>
    %171 = tpu.matmul %170, %10, %cst_52 {dimension_numbers = #tpu.dot_dimension_numbers<[1], [0], [0], [1], [0, 0, 1, 1], [], []>} : vector<8x32xbf16>, vector<32x32xbf16>, vector<8x32xf32> -> vector<8x32xf32>
    %172 = arith.addf %171, %20 : vector<8x32xf32>
    %cst_53 = arith.constant 0.000000e+00 : f32
    %173 = vector.broadcast %cst_53 : f32 to vector<8x32xf32>
    %174 = arith.cmpf ogt, %172, %173 : vector<8x32xf32>
    %175 = math.exp %172 : vector<8x32xf32>
    %cst_54 = arith.constant 1.000000e+00 : f32
    %176 = vector.broadcast %cst_54 : f32 to vector<8x32xf32>
    %177 = arith.subf %175, %176 : vector<8x32xf32>
    %178 = arith.select %174, %172, %177 : vector<8x32xi1>, vector<8x32xf32>
    %179 = arith.truncf %178 : vector<8x32xf32> to vector<8x32xbf16>
    %cst_55 = arith.constant dense<0.000000e+00> : vector<8x16xf32>
    %180 = tpu.matmul %179, %11, %cst_55 {dimension_numbers = #tpu.dot_dimension_numbers<[1], [0], [0], [1], [0, 0, 1, 1], [], []>} : vector<8x32xbf16>, vector<32x16xbf16>, vector<8x16xf32> -> vector<8x16xf32>
    %181 = arith.addf %180, %23 : vector<8x16xf32>
    %182 = vector.broadcast %154 : f32 to vector<8x16xf32>
    %183 = arith.mulf %182, %181 : vector<8x16xf32>
    %184 = arith.addf %152, %183 : vector<8x16xf32>
    %c5_i32 = arith.constant 5 : i32
    %185 = arith.cmpi slt, %c5_i32, %8 : i32
    %cst_56 = arith.constant 0.000000e+00 : f32
    %186 = arith.select %185, %6, %cst_56 : f32
    %187 = arith.sitofp %c5_i32 : i32 to f32
    %188 = arith.mulf %187, %6 : f32
    %189 = arith.addf %4, %188 : f32
    %190 = arith.truncf %184 : vector<8x16xf32> to vector<8x16xbf16>
    %cst_57 = arith.constant dense<0.000000e+00> : vector<8x32xf32>
    %191 = tpu.matmul %190, %9, %cst_57 {dimension_numbers = #tpu.dot_dimension_numbers<[1], [0], [0], [1], [0, 0, 1, 1], [], []>} : vector<8x16xbf16>, vector<16x32xbf16>, vector<8x32xf32> -> vector<8x32xf32>
    %192 = vector.broadcast %189 : f32 to vector<8x32xf32>
    %193 = arith.mulf %192, %14 : vector<8x32xf32>
    %194 = arith.addf %191, %193 : vector<8x32xf32>
    %195 = arith.addf %194, %17 : vector<8x32xf32>
    %cst_58 = arith.constant 0.000000e+00 : f32
    %196 = vector.broadcast %cst_58 : f32 to vector<8x32xf32>
    %197 = arith.cmpf ogt, %195, %196 : vector<8x32xf32>
    %198 = math.exp %195 : vector<8x32xf32>
    %cst_59 = arith.constant 1.000000e+00 : f32
    %199 = vector.broadcast %cst_59 : f32 to vector<8x32xf32>
    %200 = arith.subf %198, %199 : vector<8x32xf32>
    %201 = arith.select %197, %195, %200 : vector<8x32xi1>, vector<8x32xf32>
    %202 = arith.truncf %201 : vector<8x32xf32> to vector<8x32xbf16>
    %cst_60 = arith.constant dense<0.000000e+00> : vector<8x32xf32>
    %203 = tpu.matmul %202, %10, %cst_60 {dimension_numbers = #tpu.dot_dimension_numbers<[1], [0], [0], [1], [0, 0, 1, 1], [], []>} : vector<8x32xbf16>, vector<32x32xbf16>, vector<8x32xf32> -> vector<8x32xf32>
    %204 = arith.addf %203, %20 : vector<8x32xf32>
    %cst_61 = arith.constant 0.000000e+00 : f32
    %205 = vector.broadcast %cst_61 : f32 to vector<8x32xf32>
    %206 = arith.cmpf ogt, %204, %205 : vector<8x32xf32>
    %207 = math.exp %204 : vector<8x32xf32>
    %cst_62 = arith.constant 1.000000e+00 : f32
    %208 = vector.broadcast %cst_62 : f32 to vector<8x32xf32>
    %209 = arith.subf %207, %208 : vector<8x32xf32>
    %210 = arith.select %206, %204, %209 : vector<8x32xi1>, vector<8x32xf32>
    %211 = arith.truncf %210 : vector<8x32xf32> to vector<8x32xbf16>
    %cst_63 = arith.constant dense<0.000000e+00> : vector<8x16xf32>
    %212 = tpu.matmul %211, %11, %cst_63 {dimension_numbers = #tpu.dot_dimension_numbers<[1], [0], [0], [1], [0, 0, 1, 1], [], []>} : vector<8x32xbf16>, vector<32x16xbf16>, vector<8x16xf32> -> vector<8x16xf32>
    %213 = arith.addf %212, %23 : vector<8x16xf32>
    %214 = vector.broadcast %186 : f32 to vector<8x16xf32>
    %215 = arith.mulf %214, %213 : vector<8x16xf32>
    %216 = arith.addf %184, %215 : vector<8x16xf32>
    %c6_i32 = arith.constant 6 : i32
    %217 = arith.cmpi slt, %c6_i32, %8 : i32
    %cst_64 = arith.constant 0.000000e+00 : f32
    %218 = arith.select %217, %6, %cst_64 : f32
    %219 = arith.sitofp %c6_i32 : i32 to f32
    %220 = arith.mulf %219, %6 : f32
    %221 = arith.addf %4, %220 : f32
    %222 = arith.truncf %216 : vector<8x16xf32> to vector<8x16xbf16>
    %cst_65 = arith.constant dense<0.000000e+00> : vector<8x32xf32>
    %223 = tpu.matmul %222, %9, %cst_65 {dimension_numbers = #tpu.dot_dimension_numbers<[1], [0], [0], [1], [0, 0, 1, 1], [], []>} : vector<8x16xbf16>, vector<16x32xbf16>, vector<8x32xf32> -> vector<8x32xf32>
    %224 = vector.broadcast %221 : f32 to vector<8x32xf32>
    %225 = arith.mulf %224, %14 : vector<8x32xf32>
    %226 = arith.addf %223, %225 : vector<8x32xf32>
    %227 = arith.addf %226, %17 : vector<8x32xf32>
    %cst_66 = arith.constant 0.000000e+00 : f32
    %228 = vector.broadcast %cst_66 : f32 to vector<8x32xf32>
    %229 = arith.cmpf ogt, %227, %228 : vector<8x32xf32>
    %230 = math.exp %227 : vector<8x32xf32>
    %cst_67 = arith.constant 1.000000e+00 : f32
    %231 = vector.broadcast %cst_67 : f32 to vector<8x32xf32>
    %232 = arith.subf %230, %231 : vector<8x32xf32>
    %233 = arith.select %229, %227, %232 : vector<8x32xi1>, vector<8x32xf32>
    %234 = arith.truncf %233 : vector<8x32xf32> to vector<8x32xbf16>
    %cst_68 = arith.constant dense<0.000000e+00> : vector<8x32xf32>
    %235 = tpu.matmul %234, %10, %cst_68 {dimension_numbers = #tpu.dot_dimension_numbers<[1], [0], [0], [1], [0, 0, 1, 1], [], []>} : vector<8x32xbf16>, vector<32x32xbf16>, vector<8x32xf32> -> vector<8x32xf32>
    %236 = arith.addf %235, %20 : vector<8x32xf32>
    %cst_69 = arith.constant 0.000000e+00 : f32
    %237 = vector.broadcast %cst_69 : f32 to vector<8x32xf32>
    %238 = arith.cmpf ogt, %236, %237 : vector<8x32xf32>
    %239 = math.exp %236 : vector<8x32xf32>
    %cst_70 = arith.constant 1.000000e+00 : f32
    %240 = vector.broadcast %cst_70 : f32 to vector<8x32xf32>
    %241 = arith.subf %239, %240 : vector<8x32xf32>
    %242 = arith.select %238, %236, %241 : vector<8x32xi1>, vector<8x32xf32>
    %243 = arith.truncf %242 : vector<8x32xf32> to vector<8x32xbf16>
    %cst_71 = arith.constant dense<0.000000e+00> : vector<8x16xf32>
    %244 = tpu.matmul %243, %11, %cst_71 {dimension_numbers = #tpu.dot_dimension_numbers<[1], [0], [0], [1], [0, 0, 1, 1], [], []>} : vector<8x32xbf16>, vector<32x16xbf16>, vector<8x16xf32> -> vector<8x16xf32>
    %245 = arith.addf %244, %23 : vector<8x16xf32>
    %246 = vector.broadcast %218 : f32 to vector<8x16xf32>
    %247 = arith.mulf %246, %245 : vector<8x16xf32>
    %248 = arith.addf %216, %247 : vector<8x16xf32>
    %c7_i32 = arith.constant 7 : i32
    %249 = arith.cmpi slt, %c7_i32, %8 : i32
    %cst_72 = arith.constant 0.000000e+00 : f32
    %250 = arith.select %249, %6, %cst_72 : f32
    %251 = arith.sitofp %c7_i32 : i32 to f32
    %252 = arith.mulf %251, %6 : f32
    %253 = arith.addf %4, %252 : f32
    %254 = arith.truncf %248 : vector<8x16xf32> to vector<8x16xbf16>
    %cst_73 = arith.constant dense<0.000000e+00> : vector<8x32xf32>
    %255 = tpu.matmul %254, %9, %cst_73 {dimension_numbers = #tpu.dot_dimension_numbers<[1], [0], [0], [1], [0, 0, 1, 1], [], []>} : vector<8x16xbf16>, vector<16x32xbf16>, vector<8x32xf32> -> vector<8x32xf32>
    %256 = vector.broadcast %253 : f32 to vector<8x32xf32>
    %257 = arith.mulf %256, %14 : vector<8x32xf32>
    %258 = arith.addf %255, %257 : vector<8x32xf32>
    %259 = arith.addf %258, %17 : vector<8x32xf32>
    %cst_74 = arith.constant 0.000000e+00 : f32
    %260 = vector.broadcast %cst_74 : f32 to vector<8x32xf32>
    %261 = arith.cmpf ogt, %259, %260 : vector<8x32xf32>
    %262 = math.exp %259 : vector<8x32xf32>
    %cst_75 = arith.constant 1.000000e+00 : f32
    %263 = vector.broadcast %cst_75 : f32 to vector<8x32xf32>
    %264 = arith.subf %262, %263 : vector<8x32xf32>
    %265 = arith.select %261, %259, %264 : vector<8x32xi1>, vector<8x32xf32>
    %266 = arith.truncf %265 : vector<8x32xf32> to vector<8x32xbf16>
    %cst_76 = arith.constant dense<0.000000e+00> : vector<8x32xf32>
    %267 = tpu.matmul %266, %10, %cst_76 {dimension_numbers = #tpu.dot_dimension_numbers<[1], [0], [0], [1], [0, 0, 1, 1], [], []>} : vector<8x32xbf16>, vector<32x32xbf16>, vector<8x32xf32> -> vector<8x32xf32>
    %268 = arith.addf %267, %20 : vector<8x32xf32>
    %cst_77 = arith.constant 0.000000e+00 : f32
    %269 = vector.broadcast %cst_77 : f32 to vector<8x32xf32>
    %270 = arith.cmpf ogt, %268, %269 : vector<8x32xf32>
    %271 = math.exp %268 : vector<8x32xf32>
    %cst_78 = arith.constant 1.000000e+00 : f32
    %272 = vector.broadcast %cst_78 : f32 to vector<8x32xf32>
    %273 = arith.subf %271, %272 : vector<8x32xf32>
    %274 = arith.select %270, %268, %273 : vector<8x32xi1>, vector<8x32xf32>
    %275 = arith.truncf %274 : vector<8x32xf32> to vector<8x32xbf16>
    %cst_79 = arith.constant dense<0.000000e+00> : vector<8x16xf32>
    %276 = tpu.matmul %275, %11, %cst_79 {dimension_numbers = #tpu.dot_dimension_numbers<[1], [0], [0], [1], [0, 0, 1, 1], [], []>} : vector<8x32xbf16>, vector<32x16xbf16>, vector<8x16xf32> -> vector<8x16xf32>
    %277 = arith.addf %276, %23 : vector<8x16xf32>
    %278 = vector.broadcast %250 : f32 to vector<8x16xf32>
    %279 = arith.mulf %278, %277 : vector<8x16xf32>
    %280 = arith.addf %248, %279 : vector<8x16xf32>
    %c8_i32 = arith.constant 8 : i32
    %281 = arith.cmpi slt, %c8_i32, %8 : i32
    %cst_80 = arith.constant 0.000000e+00 : f32
    %282 = arith.select %281, %6, %cst_80 : f32
    %283 = arith.sitofp %c8_i32 : i32 to f32
    %284 = arith.mulf %283, %6 : f32
    %285 = arith.addf %4, %284 : f32
    %286 = arith.truncf %280 : vector<8x16xf32> to vector<8x16xbf16>
    %cst_81 = arith.constant dense<0.000000e+00> : vector<8x32xf32>
    %287 = tpu.matmul %286, %9, %cst_81 {dimension_numbers = #tpu.dot_dimension_numbers<[1], [0], [0], [1], [0, 0, 1, 1], [], []>} : vector<8x16xbf16>, vector<16x32xbf16>, vector<8x32xf32> -> vector<8x32xf32>
    %288 = vector.broadcast %285 : f32 to vector<8x32xf32>
    %289 = arith.mulf %288, %14 : vector<8x32xf32>
    %290 = arith.addf %287, %289 : vector<8x32xf32>
    %291 = arith.addf %290, %17 : vector<8x32xf32>
    %cst_82 = arith.constant 0.000000e+00 : f32
    %292 = vector.broadcast %cst_82 : f32 to vector<8x32xf32>
    %293 = arith.cmpf ogt, %291, %292 : vector<8x32xf32>
    %294 = math.exp %291 : vector<8x32xf32>
    %cst_83 = arith.constant 1.000000e+00 : f32
    %295 = vector.broadcast %cst_83 : f32 to vector<8x32xf32>
    %296 = arith.subf %294, %295 : vector<8x32xf32>
    %297 = arith.select %293, %291, %296 : vector<8x32xi1>, vector<8x32xf32>
    %298 = arith.truncf %297 : vector<8x32xf32> to vector<8x32xbf16>
    %cst_84 = arith.constant dense<0.000000e+00> : vector<8x32xf32>
    %299 = tpu.matmul %298, %10, %cst_84 {dimension_numbers = #tpu.dot_dimension_numbers<[1], [0], [0], [1], [0, 0, 1, 1], [], []>} : vector<8x32xbf16>, vector<32x32xbf16>, vector<8x32xf32> -> vector<8x32xf32>
    %300 = arith.addf %299, %20 : vector<8x32xf32>
    %cst_85 = arith.constant 0.000000e+00 : f32
    %301 = vector.broadcast %cst_85 : f32 to vector<8x32xf32>
    %302 = arith.cmpf ogt, %300, %301 : vector<8x32xf32>
    %303 = math.exp %300 : vector<8x32xf32>
    %cst_86 = arith.constant 1.000000e+00 : f32
    %304 = vector.broadcast %cst_86 : f32 to vector<8x32xf32>
    %305 = arith.subf %303, %304 : vector<8x32xf32>
    %306 = arith.select %302, %300, %305 : vector<8x32xi1>, vector<8x32xf32>
    %307 = arith.truncf %306 : vector<8x32xf32> to vector<8x32xbf16>
    %cst_87 = arith.constant dense<0.000000e+00> : vector<8x16xf32>
    %308 = tpu.matmul %307, %11, %cst_87 {dimension_numbers = #tpu.dot_dimension_numbers<[1], [0], [0], [1], [0, 0, 1, 1], [], []>} : vector<8x32xbf16>, vector<32x16xbf16>, vector<8x16xf32> -> vector<8x16xf32>
    %309 = arith.addf %308, %23 : vector<8x16xf32>
    %310 = vector.broadcast %282 : f32 to vector<8x16xf32>
    %311 = arith.mulf %310, %309 : vector<8x16xf32>
    %312 = arith.addf %280, %311 : vector<8x16xf32>
    %c9_i32 = arith.constant 9 : i32
    %313 = arith.cmpi slt, %c9_i32, %8 : i32
    %cst_88 = arith.constant 0.000000e+00 : f32
    %314 = arith.select %313, %6, %cst_88 : f32
    %315 = arith.sitofp %c9_i32 : i32 to f32
    %316 = arith.mulf %315, %6 : f32
    %317 = arith.addf %4, %316 : f32
    %318 = arith.truncf %312 : vector<8x16xf32> to vector<8x16xbf16>
    %cst_89 = arith.constant dense<0.000000e+00> : vector<8x32xf32>
    %319 = tpu.matmul %318, %9, %cst_89 {dimension_numbers = #tpu.dot_dimension_numbers<[1], [0], [0], [1], [0, 0, 1, 1], [], []>} : vector<8x16xbf16>, vector<16x32xbf16>, vector<8x32xf32> -> vector<8x32xf32>
    %320 = vector.broadcast %317 : f32 to vector<8x32xf32>
    %321 = arith.mulf %320, %14 : vector<8x32xf32>
    %322 = arith.addf %319, %321 : vector<8x32xf32>
    %323 = arith.addf %322, %17 : vector<8x32xf32>
    %cst_90 = arith.constant 0.000000e+00 : f32
    %324 = vector.broadcast %cst_90 : f32 to vector<8x32xf32>
    %325 = arith.cmpf ogt, %323, %324 : vector<8x32xf32>
    %326 = math.exp %323 : vector<8x32xf32>
    %cst_91 = arith.constant 1.000000e+00 : f32
    %327 = vector.broadcast %cst_91 : f32 to vector<8x32xf32>
    %328 = arith.subf %326, %327 : vector<8x32xf32>
    %329 = arith.select %325, %323, %328 : vector<8x32xi1>, vector<8x32xf32>
    %330 = arith.truncf %329 : vector<8x32xf32> to vector<8x32xbf16>
    %cst_92 = arith.constant dense<0.000000e+00> : vector<8x32xf32>
    %331 = tpu.matmul %330, %10, %cst_92 {dimension_numbers = #tpu.dot_dimension_numbers<[1], [0], [0], [1], [0, 0, 1, 1], [], []>} : vector<8x32xbf16>, vector<32x32xbf16>, vector<8x32xf32> -> vector<8x32xf32>
    %332 = arith.addf %331, %20 : vector<8x32xf32>
    %cst_93 = arith.constant 0.000000e+00 : f32
    %333 = vector.broadcast %cst_93 : f32 to vector<8x32xf32>
    %334 = arith.cmpf ogt, %332, %333 : vector<8x32xf32>
    %335 = math.exp %332 : vector<8x32xf32>
    %cst_94 = arith.constant 1.000000e+00 : f32
    %336 = vector.broadcast %cst_94 : f32 to vector<8x32xf32>
    %337 = arith.subf %335, %336 : vector<8x32xf32>
    %338 = arith.select %334, %332, %337 : vector<8x32xi1>, vector<8x32xf32>
    %339 = arith.truncf %338 : vector<8x32xf32> to vector<8x32xbf16>
    %cst_95 = arith.constant dense<0.000000e+00> : vector<8x16xf32>
    %340 = tpu.matmul %339, %11, %cst_95 {dimension_numbers = #tpu.dot_dimension_numbers<[1], [0], [0], [1], [0, 0, 1, 1], [], []>} : vector<8x32xbf16>, vector<32x16xbf16>, vector<8x16xf32> -> vector<8x16xf32>
    %341 = arith.addf %340, %23 : vector<8x16xf32>
    %342 = vector.broadcast %314 : f32 to vector<8x16xf32>
    %343 = arith.mulf %342, %341 : vector<8x16xf32>
    %344 = arith.addf %312, %343 : vector<8x16xf32>
    %c10_i32 = arith.constant 10 : i32
    %345 = arith.cmpi slt, %c10_i32, %8 : i32
    %cst_96 = arith.constant 0.000000e+00 : f32
    %346 = arith.select %345, %6, %cst_96 : f32
    %347 = arith.sitofp %c10_i32 : i32 to f32
    %348 = arith.mulf %347, %6 : f32
    %349 = arith.addf %4, %348 : f32
    %350 = arith.truncf %344 : vector<8x16xf32> to vector<8x16xbf16>
    %cst_97 = arith.constant dense<0.000000e+00> : vector<8x32xf32>
    %351 = tpu.matmul %350, %9, %cst_97 {dimension_numbers = #tpu.dot_dimension_numbers<[1], [0], [0], [1], [0, 0, 1, 1], [], []>} : vector<8x16xbf16>, vector<16x32xbf16>, vector<8x32xf32> -> vector<8x32xf32>
    %352 = vector.broadcast %349 : f32 to vector<8x32xf32>
    %353 = arith.mulf %352, %14 : vector<8x32xf32>
    %354 = arith.addf %351, %353 : vector<8x32xf32>
    %355 = arith.addf %354, %17 : vector<8x32xf32>
    %cst_98 = arith.constant 0.000000e+00 : f32
    %356 = vector.broadcast %cst_98 : f32 to vector<8x32xf32>
    %357 = arith.cmpf ogt, %355, %356 : vector<8x32xf32>
    %358 = math.exp %355 : vector<8x32xf32>
    %cst_99 = arith.constant 1.000000e+00 : f32
    %359 = vector.broadcast %cst_99 : f32 to vector<8x32xf32>
    %360 = arith.subf %358, %359 : vector<8x32xf32>
    %361 = arith.select %357, %355, %360 : vector<8x32xi1>, vector<8x32xf32>
    %362 = arith.truncf %361 : vector<8x32xf32> to vector<8x32xbf16>
    %cst_100 = arith.constant dense<0.000000e+00> : vector<8x32xf32>
    %363 = tpu.matmul %362, %10, %cst_100 {dimension_numbers = #tpu.dot_dimension_numbers<[1], [0], [0], [1], [0, 0, 1, 1], [], []>} : vector<8x32xbf16>, vector<32x32xbf16>, vector<8x32xf32> -> vector<8x32xf32>
    %364 = arith.addf %363, %20 : vector<8x32xf32>
    %cst_101 = arith.constant 0.000000e+00 : f32
    %365 = vector.broadcast %cst_101 : f32 to vector<8x32xf32>
    %366 = arith.cmpf ogt, %364, %365 : vector<8x32xf32>
    %367 = math.exp %364 : vector<8x32xf32>
    %cst_102 = arith.constant 1.000000e+00 : f32
    %368 = vector.broadcast %cst_102 : f32 to vector<8x32xf32>
    %369 = arith.subf %367, %368 : vector<8x32xf32>
    %370 = arith.select %366, %364, %369 : vector<8x32xi1>, vector<8x32xf32>
    %371 = arith.truncf %370 : vector<8x32xf32> to vector<8x32xbf16>
    %cst_103 = arith.constant dense<0.000000e+00> : vector<8x16xf32>
    %372 = tpu.matmul %371, %11, %cst_103 {dimension_numbers = #tpu.dot_dimension_numbers<[1], [0], [0], [1], [0, 0, 1, 1], [], []>} : vector<8x32xbf16>, vector<32x16xbf16>, vector<8x16xf32> -> vector<8x16xf32>
    %373 = arith.addf %372, %23 : vector<8x16xf32>
    %374 = vector.broadcast %346 : f32 to vector<8x16xf32>
    %375 = arith.mulf %374, %373 : vector<8x16xf32>
    %376 = arith.addf %344, %375 : vector<8x16xf32>
    %c11_i32 = arith.constant 11 : i32
    %377 = arith.cmpi slt, %c11_i32, %8 : i32
    %cst_104 = arith.constant 0.000000e+00 : f32
    %378 = arith.select %377, %6, %cst_104 : f32
    %379 = arith.sitofp %c11_i32 : i32 to f32
    %380 = arith.mulf %379, %6 : f32
    %381 = arith.addf %4, %380 : f32
    %382 = arith.truncf %376 : vector<8x16xf32> to vector<8x16xbf16>
    %cst_105 = arith.constant dense<0.000000e+00> : vector<8x32xf32>
    %383 = tpu.matmul %382, %9, %cst_105 {dimension_numbers = #tpu.dot_dimension_numbers<[1], [0], [0], [1], [0, 0, 1, 1], [], []>} : vector<8x16xbf16>, vector<16x32xbf16>, vector<8x32xf32> -> vector<8x32xf32>
    %384 = vector.broadcast %381 : f32 to vector<8x32xf32>
    %385 = arith.mulf %384, %14 : vector<8x32xf32>
    %386 = arith.addf %383, %385 : vector<8x32xf32>
    %387 = arith.addf %386, %17 : vector<8x32xf32>
    %cst_106 = arith.constant 0.000000e+00 : f32
    %388 = vector.broadcast %cst_106 : f32 to vector<8x32xf32>
    %389 = arith.cmpf ogt, %387, %388 : vector<8x32xf32>
    %390 = math.exp %387 : vector<8x32xf32>
    %cst_107 = arith.constant 1.000000e+00 : f32
    %391 = vector.broadcast %cst_107 : f32 to vector<8x32xf32>
    %392 = arith.subf %390, %391 : vector<8x32xf32>
    %393 = arith.select %389, %387, %392 : vector<8x32xi1>, vector<8x32xf32>
    %394 = arith.truncf %393 : vector<8x32xf32> to vector<8x32xbf16>
    %cst_108 = arith.constant dense<0.000000e+00> : vector<8x32xf32>
    %395 = tpu.matmul %394, %10, %cst_108 {dimension_numbers = #tpu.dot_dimension_numbers<[1], [0], [0], [1], [0, 0, 1, 1], [], []>} : vector<8x32xbf16>, vector<32x32xbf16>, vector<8x32xf32> -> vector<8x32xf32>
    %396 = arith.addf %395, %20 : vector<8x32xf32>
    %cst_109 = arith.constant 0.000000e+00 : f32
    %397 = vector.broadcast %cst_109 : f32 to vector<8x32xf32>
    %398 = arith.cmpf ogt, %396, %397 : vector<8x32xf32>
    %399 = math.exp %396 : vector<8x32xf32>
    %cst_110 = arith.constant 1.000000e+00 : f32
    %400 = vector.broadcast %cst_110 : f32 to vector<8x32xf32>
    %401 = arith.subf %399, %400 : vector<8x32xf32>
    %402 = arith.select %398, %396, %401 : vector<8x32xi1>, vector<8x32xf32>
    %403 = arith.truncf %402 : vector<8x32xf32> to vector<8x32xbf16>
    %cst_111 = arith.constant dense<0.000000e+00> : vector<8x16xf32>
    %404 = tpu.matmul %403, %11, %cst_111 {dimension_numbers = #tpu.dot_dimension_numbers<[1], [0], [0], [1], [0, 0, 1, 1], [], []>} : vector<8x32xbf16>, vector<32x16xbf16>, vector<8x16xf32> -> vector<8x16xf32>
    %405 = arith.addf %404, %23 : vector<8x16xf32>
    %406 = vector.broadcast %378 : f32 to vector<8x16xf32>
    %407 = arith.mulf %406, %405 : vector<8x16xf32>
    %408 = arith.addf %376, %407 : vector<8x16xf32>
    %c12_i32 = arith.constant 12 : i32
    %409 = arith.cmpi slt, %c12_i32, %8 : i32
    %cst_112 = arith.constant 0.000000e+00 : f32
    %410 = arith.select %409, %6, %cst_112 : f32
    %411 = arith.sitofp %c12_i32 : i32 to f32
    %412 = arith.mulf %411, %6 : f32
    %413 = arith.addf %4, %412 : f32
    %414 = arith.truncf %408 : vector<8x16xf32> to vector<8x16xbf16>
    %cst_113 = arith.constant dense<0.000000e+00> : vector<8x32xf32>
    %415 = tpu.matmul %414, %9, %cst_113 {dimension_numbers = #tpu.dot_dimension_numbers<[1], [0], [0], [1], [0, 0, 1, 1], [], []>} : vector<8x16xbf16>, vector<16x32xbf16>, vector<8x32xf32> -> vector<8x32xf32>
    %416 = vector.broadcast %413 : f32 to vector<8x32xf32>
    %417 = arith.mulf %416, %14 : vector<8x32xf32>
    %418 = arith.addf %415, %417 : vector<8x32xf32>
    %419 = arith.addf %418, %17 : vector<8x32xf32>
    %cst_114 = arith.constant 0.000000e+00 : f32
    %420 = vector.broadcast %cst_114 : f32 to vector<8x32xf32>
    %421 = arith.cmpf ogt, %419, %420 : vector<8x32xf32>
    %422 = math.exp %419 : vector<8x32xf32>
    %cst_115 = arith.constant 1.000000e+00 : f32
    %423 = vector.broadcast %cst_115 : f32 to vector<8x32xf32>
    %424 = arith.subf %422, %423 : vector<8x32xf32>
    %425 = arith.select %421, %419, %424 : vector<8x32xi1>, vector<8x32xf32>
    %426 = arith.truncf %425 : vector<8x32xf32> to vector<8x32xbf16>
    %cst_116 = arith.constant dense<0.000000e+00> : vector<8x32xf32>
    %427 = tpu.matmul %426, %10, %cst_116 {dimension_numbers = #tpu.dot_dimension_numbers<[1], [0], [0], [1], [0, 0, 1, 1], [], []>} : vector<8x32xbf16>, vector<32x32xbf16>, vector<8x32xf32> -> vector<8x32xf32>
    %428 = arith.addf %427, %20 : vector<8x32xf32>
    %cst_117 = arith.constant 0.000000e+00 : f32
    %429 = vector.broadcast %cst_117 : f32 to vector<8x32xf32>
    %430 = arith.cmpf ogt, %428, %429 : vector<8x32xf32>
    %431 = math.exp %428 : vector<8x32xf32>
    %cst_118 = arith.constant 1.000000e+00 : f32
    %432 = vector.broadcast %cst_118 : f32 to vector<8x32xf32>
    %433 = arith.subf %431, %432 : vector<8x32xf32>
    %434 = arith.select %430, %428, %433 : vector<8x32xi1>, vector<8x32xf32>
    %435 = arith.truncf %434 : vector<8x32xf32> to vector<8x32xbf16>
    %cst_119 = arith.constant dense<0.000000e+00> : vector<8x16xf32>
    %436 = tpu.matmul %435, %11, %cst_119 {dimension_numbers = #tpu.dot_dimension_numbers<[1], [0], [0], [1], [0, 0, 1, 1], [], []>} : vector<8x32xbf16>, vector<32x16xbf16>, vector<8x16xf32> -> vector<8x16xf32>
    %437 = arith.addf %436, %23 : vector<8x16xf32>
    %438 = vector.broadcast %410 : f32 to vector<8x16xf32>
    %439 = arith.mulf %438, %437 : vector<8x16xf32>
    %440 = arith.addf %408, %439 : vector<8x16xf32>
    %c13_i32 = arith.constant 13 : i32
    %441 = arith.cmpi slt, %c13_i32, %8 : i32
    %cst_120 = arith.constant 0.000000e+00 : f32
    %442 = arith.select %441, %6, %cst_120 : f32
    %443 = arith.sitofp %c13_i32 : i32 to f32
    %444 = arith.mulf %443, %6 : f32
    %445 = arith.addf %4, %444 : f32
    %446 = arith.truncf %440 : vector<8x16xf32> to vector<8x16xbf16>
    %cst_121 = arith.constant dense<0.000000e+00> : vector<8x32xf32>
    %447 = tpu.matmul %446, %9, %cst_121 {dimension_numbers = #tpu.dot_dimension_numbers<[1], [0], [0], [1], [0, 0, 1, 1], [], []>} : vector<8x16xbf16>, vector<16x32xbf16>, vector<8x32xf32> -> vector<8x32xf32>
    %448 = vector.broadcast %445 : f32 to vector<8x32xf32>
    %449 = arith.mulf %448, %14 : vector<8x32xf32>
    %450 = arith.addf %447, %449 : vector<8x32xf32>
    %451 = arith.addf %450, %17 : vector<8x32xf32>
    %cst_122 = arith.constant 0.000000e+00 : f32
    %452 = vector.broadcast %cst_122 : f32 to vector<8x32xf32>
    %453 = arith.cmpf ogt, %451, %452 : vector<8x32xf32>
    %454 = math.exp %451 : vector<8x32xf32>
    %cst_123 = arith.constant 1.000000e+00 : f32
    %455 = vector.broadcast %cst_123 : f32 to vector<8x32xf32>
    %456 = arith.subf %454, %455 : vector<8x32xf32>
    %457 = arith.select %453, %451, %456 : vector<8x32xi1>, vector<8x32xf32>
    %458 = arith.truncf %457 : vector<8x32xf32> to vector<8x32xbf16>
    %cst_124 = arith.constant dense<0.000000e+00> : vector<8x32xf32>
    %459 = tpu.matmul %458, %10, %cst_124 {dimension_numbers = #tpu.dot_dimension_numbers<[1], [0], [0], [1], [0, 0, 1, 1], [], []>} : vector<8x32xbf16>, vector<32x32xbf16>, vector<8x32xf32> -> vector<8x32xf32>
    %460 = arith.addf %459, %20 : vector<8x32xf32>
    %cst_125 = arith.constant 0.000000e+00 : f32
    %461 = vector.broadcast %cst_125 : f32 to vector<8x32xf32>
    %462 = arith.cmpf ogt, %460, %461 : vector<8x32xf32>
    %463 = math.exp %460 : vector<8x32xf32>
    %cst_126 = arith.constant 1.000000e+00 : f32
    %464 = vector.broadcast %cst_126 : f32 to vector<8x32xf32>
    %465 = arith.subf %463, %464 : vector<8x32xf32>
    %466 = arith.select %462, %460, %465 : vector<8x32xi1>, vector<8x32xf32>
    %467 = arith.truncf %466 : vector<8x32xf32> to vector<8x32xbf16>
    %cst_127 = arith.constant dense<0.000000e+00> : vector<8x16xf32>
    %468 = tpu.matmul %467, %11, %cst_127 {dimension_numbers = #tpu.dot_dimension_numbers<[1], [0], [0], [1], [0, 0, 1, 1], [], []>} : vector<8x32xbf16>, vector<32x16xbf16>, vector<8x16xf32> -> vector<8x16xf32>
    %469 = arith.addf %468, %23 : vector<8x16xf32>
    %470 = vector.broadcast %442 : f32 to vector<8x16xf32>
    %471 = arith.mulf %470, %469 : vector<8x16xf32>
    %472 = arith.addf %440, %471 : vector<8x16xf32>
    %c14_i32 = arith.constant 14 : i32
    %473 = arith.cmpi slt, %c14_i32, %8 : i32
    %cst_128 = arith.constant 0.000000e+00 : f32
    %474 = arith.select %473, %6, %cst_128 : f32
    %475 = arith.sitofp %c14_i32 : i32 to f32
    %476 = arith.mulf %475, %6 : f32
    %477 = arith.addf %4, %476 : f32
    %478 = arith.truncf %472 : vector<8x16xf32> to vector<8x16xbf16>
    %cst_129 = arith.constant dense<0.000000e+00> : vector<8x32xf32>
    %479 = tpu.matmul %478, %9, %cst_129 {dimension_numbers = #tpu.dot_dimension_numbers<[1], [0], [0], [1], [0, 0, 1, 1], [], []>} : vector<8x16xbf16>, vector<16x32xbf16>, vector<8x32xf32> -> vector<8x32xf32>
    %480 = vector.broadcast %477 : f32 to vector<8x32xf32>
    %481 = arith.mulf %480, %14 : vector<8x32xf32>
    %482 = arith.addf %479, %481 : vector<8x32xf32>
    %483 = arith.addf %482, %17 : vector<8x32xf32>
    %cst_130 = arith.constant 0.000000e+00 : f32
    %484 = vector.broadcast %cst_130 : f32 to vector<8x32xf32>
    %485 = arith.cmpf ogt, %483, %484 : vector<8x32xf32>
    %486 = math.exp %483 : vector<8x32xf32>
    %cst_131 = arith.constant 1.000000e+00 : f32
    %487 = vector.broadcast %cst_131 : f32 to vector<8x32xf32>
    %488 = arith.subf %486, %487 : vector<8x32xf32>
    %489 = arith.select %485, %483, %488 : vector<8x32xi1>, vector<8x32xf32>
    %490 = arith.truncf %489 : vector<8x32xf32> to vector<8x32xbf16>
    %cst_132 = arith.constant dense<0.000000e+00> : vector<8x32xf32>
    %491 = tpu.matmul %490, %10, %cst_132 {dimension_numbers = #tpu.dot_dimension_numbers<[1], [0], [0], [1], [0, 0, 1, 1], [], []>} : vector<8x32xbf16>, vector<32x32xbf16>, vector<8x32xf32> -> vector<8x32xf32>
    %492 = arith.addf %491, %20 : vector<8x32xf32>
    %cst_133 = arith.constant 0.000000e+00 : f32
    %493 = vector.broadcast %cst_133 : f32 to vector<8x32xf32>
    %494 = arith.cmpf ogt, %492, %493 : vector<8x32xf32>
    %495 = math.exp %492 : vector<8x32xf32>
    %cst_134 = arith.constant 1.000000e+00 : f32
    %496 = vector.broadcast %cst_134 : f32 to vector<8x32xf32>
    %497 = arith.subf %495, %496 : vector<8x32xf32>
    %498 = arith.select %494, %492, %497 : vector<8x32xi1>, vector<8x32xf32>
    %499 = arith.truncf %498 : vector<8x32xf32> to vector<8x32xbf16>
    %cst_135 = arith.constant dense<0.000000e+00> : vector<8x16xf32>
    %500 = tpu.matmul %499, %11, %cst_135 {dimension_numbers = #tpu.dot_dimension_numbers<[1], [0], [0], [1], [0, 0, 1, 1], [], []>} : vector<8x32xbf16>, vector<32x16xbf16>, vector<8x16xf32> -> vector<8x16xf32>
    %501 = arith.addf %500, %23 : vector<8x16xf32>
    %502 = vector.broadcast %474 : f32 to vector<8x16xf32>
    %503 = arith.mulf %502, %501 : vector<8x16xf32>
    %504 = arith.addf %472, %503 : vector<8x16xf32>
    %c15_i32 = arith.constant 15 : i32
    %505 = arith.cmpi slt, %c15_i32, %8 : i32
    %cst_136 = arith.constant 0.000000e+00 : f32
    %506 = arith.select %505, %6, %cst_136 : f32
    %507 = arith.sitofp %c15_i32 : i32 to f32
    %508 = arith.mulf %507, %6 : f32
    %509 = arith.addf %4, %508 : f32
    %510 = arith.truncf %504 : vector<8x16xf32> to vector<8x16xbf16>
    %cst_137 = arith.constant dense<0.000000e+00> : vector<8x32xf32>
    %511 = tpu.matmul %510, %9, %cst_137 {dimension_numbers = #tpu.dot_dimension_numbers<[1], [0], [0], [1], [0, 0, 1, 1], [], []>} : vector<8x16xbf16>, vector<16x32xbf16>, vector<8x32xf32> -> vector<8x32xf32>
    %512 = vector.broadcast %509 : f32 to vector<8x32xf32>
    %513 = arith.mulf %512, %14 : vector<8x32xf32>
    %514 = arith.addf %511, %513 : vector<8x32xf32>
    %515 = arith.addf %514, %17 : vector<8x32xf32>
    %cst_138 = arith.constant 0.000000e+00 : f32
    %516 = vector.broadcast %cst_138 : f32 to vector<8x32xf32>
    %517 = arith.cmpf ogt, %515, %516 : vector<8x32xf32>
    %518 = math.exp %515 : vector<8x32xf32>
    %cst_139 = arith.constant 1.000000e+00 : f32
    %519 = vector.broadcast %cst_139 : f32 to vector<8x32xf32>
    %520 = arith.subf %518, %519 : vector<8x32xf32>
    %521 = arith.select %517, %515, %520 : vector<8x32xi1>, vector<8x32xf32>
    %522 = arith.truncf %521 : vector<8x32xf32> to vector<8x32xbf16>
    %cst_140 = arith.constant dense<0.000000e+00> : vector<8x32xf32>
    %523 = tpu.matmul %522, %10, %cst_140 {dimension_numbers = #tpu.dot_dimension_numbers<[1], [0], [0], [1], [0, 0, 1, 1], [], []>} : vector<8x32xbf16>, vector<32x32xbf16>, vector<8x32xf32> -> vector<8x32xf32>
    %524 = arith.addf %523, %20 : vector<8x32xf32>
    %cst_141 = arith.constant 0.000000e+00 : f32
    %525 = vector.broadcast %cst_141 : f32 to vector<8x32xf32>
    %526 = arith.cmpf ogt, %524, %525 : vector<8x32xf32>
    %527 = math.exp %524 : vector<8x32xf32>
    %cst_142 = arith.constant 1.000000e+00 : f32
    %528 = vector.broadcast %cst_142 : f32 to vector<8x32xf32>
    %529 = arith.subf %527, %528 : vector<8x32xf32>
    %530 = arith.select %526, %524, %529 : vector<8x32xi1>, vector<8x32xf32>
    %531 = arith.truncf %530 : vector<8x32xf32> to vector<8x32xbf16>
    %cst_143 = arith.constant dense<0.000000e+00> : vector<8x16xf32>
    %532 = tpu.matmul %531, %11, %cst_143 {dimension_numbers = #tpu.dot_dimension_numbers<[1], [0], [0], [1], [0, 0, 1, 1], [], []>} : vector<8x32xbf16>, vector<32x16xbf16>, vector<8x16xf32> -> vector<8x16xf32>
    %533 = arith.addf %532, %23 : vector<8x16xf32>
    %534 = vector.broadcast %506 : f32 to vector<8x16xf32>
    %535 = arith.mulf %534, %533 : vector<8x16xf32>
    %536 = arith.addf %504, %535 : vector<8x16xf32>
    %c16_i32 = arith.constant 16 : i32
    %537 = arith.cmpi slt, %c16_i32, %8 : i32
    %cst_144 = arith.constant 0.000000e+00 : f32
    %538 = arith.select %537, %6, %cst_144 : f32
    %539 = arith.sitofp %c16_i32 : i32 to f32
    %540 = arith.mulf %539, %6 : f32
    %541 = arith.addf %4, %540 : f32
    %542 = arith.truncf %536 : vector<8x16xf32> to vector<8x16xbf16>
    %cst_145 = arith.constant dense<0.000000e+00> : vector<8x32xf32>
    %543 = tpu.matmul %542, %9, %cst_145 {dimension_numbers = #tpu.dot_dimension_numbers<[1], [0], [0], [1], [0, 0, 1, 1], [], []>} : vector<8x16xbf16>, vector<16x32xbf16>, vector<8x32xf32> -> vector<8x32xf32>
    %544 = vector.broadcast %541 : f32 to vector<8x32xf32>
    %545 = arith.mulf %544, %14 : vector<8x32xf32>
    %546 = arith.addf %543, %545 : vector<8x32xf32>
    %547 = arith.addf %546, %17 : vector<8x32xf32>
    %cst_146 = arith.constant 0.000000e+00 : f32
    %548 = vector.broadcast %cst_146 : f32 to vector<8x32xf32>
    %549 = arith.cmpf ogt, %547, %548 : vector<8x32xf32>
    %550 = math.exp %547 : vector<8x32xf32>
    %cst_147 = arith.constant 1.000000e+00 : f32
    %551 = vector.broadcast %cst_147 : f32 to vector<8x32xf32>
    %552 = arith.subf %550, %551 : vector<8x32xf32>
    %553 = arith.select %549, %547, %552 : vector<8x32xi1>, vector<8x32xf32>
    %554 = arith.truncf %553 : vector<8x32xf32> to vector<8x32xbf16>
    %cst_148 = arith.constant dense<0.000000e+00> : vector<8x32xf32>
    %555 = tpu.matmul %554, %10, %cst_148 {dimension_numbers = #tpu.dot_dimension_numbers<[1], [0], [0], [1], [0, 0, 1, 1], [], []>} : vector<8x32xbf16>, vector<32x32xbf16>, vector<8x32xf32> -> vector<8x32xf32>
    %556 = arith.addf %555, %20 : vector<8x32xf32>
    %cst_149 = arith.constant 0.000000e+00 : f32
    %557 = vector.broadcast %cst_149 : f32 to vector<8x32xf32>
    %558 = arith.cmpf ogt, %556, %557 : vector<8x32xf32>
    %559 = math.exp %556 : vector<8x32xf32>
    %cst_150 = arith.constant 1.000000e+00 : f32
    %560 = vector.broadcast %cst_150 : f32 to vector<8x32xf32>
    %561 = arith.subf %559, %560 : vector<8x32xf32>
    %562 = arith.select %558, %556, %561 : vector<8x32xi1>, vector<8x32xf32>
    %563 = arith.truncf %562 : vector<8x32xf32> to vector<8x32xbf16>
    %cst_151 = arith.constant dense<0.000000e+00> : vector<8x16xf32>
    %564 = tpu.matmul %563, %11, %cst_151 {dimension_numbers = #tpu.dot_dimension_numbers<[1], [0], [0], [1], [0, 0, 1, 1], [], []>} : vector<8x32xbf16>, vector<32x16xbf16>, vector<8x16xf32> -> vector<8x16xf32>
    %565 = arith.addf %564, %23 : vector<8x16xf32>
    %566 = vector.broadcast %538 : f32 to vector<8x16xf32>
    %567 = arith.mulf %566, %565 : vector<8x16xf32>
    %568 = arith.addf %536, %567 : vector<8x16xf32>
    %c17_i32 = arith.constant 17 : i32
    %569 = arith.cmpi slt, %c17_i32, %8 : i32
    %cst_152 = arith.constant 0.000000e+00 : f32
    %570 = arith.select %569, %6, %cst_152 : f32
    %571 = arith.sitofp %c17_i32 : i32 to f32
    %572 = arith.mulf %571, %6 : f32
    %573 = arith.addf %4, %572 : f32
    %574 = arith.truncf %568 : vector<8x16xf32> to vector<8x16xbf16>
    %cst_153 = arith.constant dense<0.000000e+00> : vector<8x32xf32>
    %575 = tpu.matmul %574, %9, %cst_153 {dimension_numbers = #tpu.dot_dimension_numbers<[1], [0], [0], [1], [0, 0, 1, 1], [], []>} : vector<8x16xbf16>, vector<16x32xbf16>, vector<8x32xf32> -> vector<8x32xf32>
    %576 = vector.broadcast %573 : f32 to vector<8x32xf32>
    %577 = arith.mulf %576, %14 : vector<8x32xf32>
    %578 = arith.addf %575, %577 : vector<8x32xf32>
    %579 = arith.addf %578, %17 : vector<8x32xf32>
    %cst_154 = arith.constant 0.000000e+00 : f32
    %580 = vector.broadcast %cst_154 : f32 to vector<8x32xf32>
    %581 = arith.cmpf ogt, %579, %580 : vector<8x32xf32>
    %582 = math.exp %579 : vector<8x32xf32>
    %cst_155 = arith.constant 1.000000e+00 : f32
    %583 = vector.broadcast %cst_155 : f32 to vector<8x32xf32>
    %584 = arith.subf %582, %583 : vector<8x32xf32>
    %585 = arith.select %581, %579, %584 : vector<8x32xi1>, vector<8x32xf32>
    %586 = arith.truncf %585 : vector<8x32xf32> to vector<8x32xbf16>
    %cst_156 = arith.constant dense<0.000000e+00> : vector<8x32xf32>
    %587 = tpu.matmul %586, %10, %cst_156 {dimension_numbers = #tpu.dot_dimension_numbers<[1], [0], [0], [1], [0, 0, 1, 1], [], []>} : vector<8x32xbf16>, vector<32x32xbf16>, vector<8x32xf32> -> vector<8x32xf32>
    %588 = arith.addf %587, %20 : vector<8x32xf32>
    %cst_157 = arith.constant 0.000000e+00 : f32
    %589 = vector.broadcast %cst_157 : f32 to vector<8x32xf32>
    %590 = arith.cmpf ogt, %588, %589 : vector<8x32xf32>
    %591 = math.exp %588 : vector<8x32xf32>
    %cst_158 = arith.constant 1.000000e+00 : f32
    %592 = vector.broadcast %cst_158 : f32 to vector<8x32xf32>
    %593 = arith.subf %591, %592 : vector<8x32xf32>
    %594 = arith.select %590, %588, %593 : vector<8x32xi1>, vector<8x32xf32>
    %595 = arith.truncf %594 : vector<8x32xf32> to vector<8x32xbf16>
    %cst_159 = arith.constant dense<0.000000e+00> : vector<8x16xf32>
    %596 = tpu.matmul %595, %11, %cst_159 {dimension_numbers = #tpu.dot_dimension_numbers<[1], [0], [0], [1], [0, 0, 1, 1], [], []>} : vector<8x32xbf16>, vector<32x16xbf16>, vector<8x16xf32> -> vector<8x16xf32>
    %597 = arith.addf %596, %23 : vector<8x16xf32>
    %598 = vector.broadcast %570 : f32 to vector<8x16xf32>
    %599 = arith.mulf %598, %597 : vector<8x16xf32>
    %600 = arith.addf %568, %599 : vector<8x16xf32>
    %c18_i32 = arith.constant 18 : i32
    %601 = arith.cmpi slt, %c18_i32, %8 : i32
    %cst_160 = arith.constant 0.000000e+00 : f32
    %602 = arith.select %601, %6, %cst_160 : f32
    %603 = arith.sitofp %c18_i32 : i32 to f32
    %604 = arith.mulf %603, %6 : f32
    %605 = arith.addf %4, %604 : f32
    %606 = arith.truncf %600 : vector<8x16xf32> to vector<8x16xbf16>
    %cst_161 = arith.constant dense<0.000000e+00> : vector<8x32xf32>
    %607 = tpu.matmul %606, %9, %cst_161 {dimension_numbers = #tpu.dot_dimension_numbers<[1], [0], [0], [1], [0, 0, 1, 1], [], []>} : vector<8x16xbf16>, vector<16x32xbf16>, vector<8x32xf32> -> vector<8x32xf32>
    %608 = vector.broadcast %605 : f32 to vector<8x32xf32>
    %609 = arith.mulf %608, %14 : vector<8x32xf32>
    %610 = arith.addf %607, %609 : vector<8x32xf32>
    %611 = arith.addf %610, %17 : vector<8x32xf32>
    %cst_162 = arith.constant 0.000000e+00 : f32
    %612 = vector.broadcast %cst_162 : f32 to vector<8x32xf32>
    %613 = arith.cmpf ogt, %611, %612 : vector<8x32xf32>
    %614 = math.exp %611 : vector<8x32xf32>
    %cst_163 = arith.constant 1.000000e+00 : f32
    %615 = vector.broadcast %cst_163 : f32 to vector<8x32xf32>
    %616 = arith.subf %614, %615 : vector<8x32xf32>
    %617 = arith.select %613, %611, %616 : vector<8x32xi1>, vector<8x32xf32>
    %618 = arith.truncf %617 : vector<8x32xf32> to vector<8x32xbf16>
    %cst_164 = arith.constant dense<0.000000e+00> : vector<8x32xf32>
    %619 = tpu.matmul %618, %10, %cst_164 {dimension_numbers = #tpu.dot_dimension_numbers<[1], [0], [0], [1], [0, 0, 1, 1], [], []>} : vector<8x32xbf16>, vector<32x32xbf16>, vector<8x32xf32> -> vector<8x32xf32>
    %620 = arith.addf %619, %20 : vector<8x32xf32>
    %cst_165 = arith.constant 0.000000e+00 : f32
    %621 = vector.broadcast %cst_165 : f32 to vector<8x32xf32>
    %622 = arith.cmpf ogt, %620, %621 : vector<8x32xf32>
    %623 = math.exp %620 : vector<8x32xf32>
    %cst_166 = arith.constant 1.000000e+00 : f32
    %624 = vector.broadcast %cst_166 : f32 to vector<8x32xf32>
    %625 = arith.subf %623, %624 : vector<8x32xf32>
    %626 = arith.select %622, %620, %625 : vector<8x32xi1>, vector<8x32xf32>
    %627 = arith.truncf %626 : vector<8x32xf32> to vector<8x32xbf16>
    %cst_167 = arith.constant dense<0.000000e+00> : vector<8x16xf32>
    %628 = tpu.matmul %627, %11, %cst_167 {dimension_numbers = #tpu.dot_dimension_numbers<[1], [0], [0], [1], [0, 0, 1, 1], [], []>} : vector<8x32xbf16>, vector<32x16xbf16>, vector<8x16xf32> -> vector<8x16xf32>
    %629 = arith.addf %628, %23 : vector<8x16xf32>
    %630 = vector.broadcast %602 : f32 to vector<8x16xf32>
    %631 = arith.mulf %630, %629 : vector<8x16xf32>
    %632 = arith.addf %600, %631 : vector<8x16xf32>
    %c19_i32 = arith.constant 19 : i32
    %633 = arith.cmpi slt, %c19_i32, %8 : i32
    %cst_168 = arith.constant 0.000000e+00 : f32
    %634 = arith.select %633, %6, %cst_168 : f32
    %635 = arith.sitofp %c19_i32 : i32 to f32
    %636 = arith.mulf %635, %6 : f32
    %637 = arith.addf %4, %636 : f32
    %638 = arith.truncf %632 : vector<8x16xf32> to vector<8x16xbf16>
    %cst_169 = arith.constant dense<0.000000e+00> : vector<8x32xf32>
    %639 = tpu.matmul %638, %9, %cst_169 {dimension_numbers = #tpu.dot_dimension_numbers<[1], [0], [0], [1], [0, 0, 1, 1], [], []>} : vector<8x16xbf16>, vector<16x32xbf16>, vector<8x32xf32> -> vector<8x32xf32>
    %640 = vector.broadcast %637 : f32 to vector<8x32xf32>
    %641 = arith.mulf %640, %14 : vector<8x32xf32>
    %642 = arith.addf %639, %641 : vector<8x32xf32>
    %643 = arith.addf %642, %17 : vector<8x32xf32>
    %cst_170 = arith.constant 0.000000e+00 : f32
    %644 = vector.broadcast %cst_170 : f32 to vector<8x32xf32>
    %645 = arith.cmpf ogt, %643, %644 : vector<8x32xf32>
    %646 = math.exp %643 : vector<8x32xf32>
    %cst_171 = arith.constant 1.000000e+00 : f32
    %647 = vector.broadcast %cst_171 : f32 to vector<8x32xf32>
    %648 = arith.subf %646, %647 : vector<8x32xf32>
    %649 = arith.select %645, %643, %648 : vector<8x32xi1>, vector<8x32xf32>
    %650 = arith.truncf %649 : vector<8x32xf32> to vector<8x32xbf16>
    %cst_172 = arith.constant dense<0.000000e+00> : vector<8x32xf32>
    %651 = tpu.matmul %650, %10, %cst_172 {dimension_numbers = #tpu.dot_dimension_numbers<[1], [0], [0], [1], [0, 0, 1, 1], [], []>} : vector<8x32xbf16>, vector<32x32xbf16>, vector<8x32xf32> -> vector<8x32xf32>
    %652 = arith.addf %651, %20 : vector<8x32xf32>
    %cst_173 = arith.constant 0.000000e+00 : f32
    %653 = vector.broadcast %cst_173 : f32 to vector<8x32xf32>
    %654 = arith.cmpf ogt, %652, %653 : vector<8x32xf32>
    %655 = math.exp %652 : vector<8x32xf32>
    %cst_174 = arith.constant 1.000000e+00 : f32
    %656 = vector.broadcast %cst_174 : f32 to vector<8x32xf32>
    %657 = arith.subf %655, %656 : vector<8x32xf32>
    %658 = arith.select %654, %652, %657 : vector<8x32xi1>, vector<8x32xf32>
    %659 = arith.truncf %658 : vector<8x32xf32> to vector<8x32xbf16>
    %cst_175 = arith.constant dense<0.000000e+00> : vector<8x16xf32>
    %660 = tpu.matmul %659, %11, %cst_175 {dimension_numbers = #tpu.dot_dimension_numbers<[1], [0], [0], [1], [0, 0, 1, 1], [], []>} : vector<8x32xbf16>, vector<32x16xbf16>, vector<8x16xf32> -> vector<8x16xf32>
    %661 = arith.addf %660, %23 : vector<8x16xf32>
    %662 = vector.broadcast %634 : f32 to vector<8x16xf32>
    %663 = arith.mulf %662, %661 : vector<8x16xf32>
    %664 = arith.addf %632, %663 : vector<8x16xf32>
    %c20_i32 = arith.constant 20 : i32
    %c0_176 = arith.constant 0 : index
    %c0_177 = arith.constant 0 : index
    %665 = vector.load %arg14[%c0_176, %c0_177] : memref<8x16xf32, #tpu.memory_space<vmem>>, vector<8x16xf32>
    tpu.vector_store %arg14[%c0_176, %c0_177], %664 {strides = array<i32>} : memref<8x16xf32, #tpu.memory_space<vmem>>, vector<8x16xf32>,
    %c0_178 = arith.constant 0 : index
    %c0_179 = arith.constant 0 : index
    %c0_180 = arith.constant 0 : index
    %666 = vector.load %arg13[%c0_178, %c0_179, %c0_180] : memref<1x8x16xf32, #tpu.memory_space<vmem>>, vector<1x8x16xf32>
    %667 = vector.shape_cast %666 : vector<1x8x16xf32> to vector<8x16xf32>
    %668 = vector.shape_cast %664 : vector<8x16xf32> to vector<1x8x16xf32>
    tpu.vector_store %arg13[%c0_178, %c0_179, %c0_180], %668 {strides = array<i32>} : memref<1x8x16xf32, #tpu.memory_space<vmem>>, vector<1x8x16xf32>,
    return
  }
  func.func @transform_0(%arg0: i32, %arg1: i32) -> i32 {
    %c0_i32 = arith.constant 0 : i32
    %c0_i32_0 = arith.constant 0 : i32
    return %c0_i32 : i32
  }
  func.func @transform_1(%arg0: i32, %arg1: i32) -> i32 {
    %c0_i32 = arith.constant 0 : i32
    %c0_i32_0 = arith.constant 0 : i32
    return %c0_i32 : i32
  }
  func.func @transform_2(%arg0: i32, %arg1: i32) -> i32 {
    %c0_i32 = arith.constant 0 : i32
    %c0_i32_0 = arith.constant 0 : i32
    return %c0_i32 : i32
  }
  func.func @transform_3(%arg0: i32, %arg1: i32) -> (i32, i32) {
    %c0_i32 = arith.constant 0 : i32
    %c0_i32_0 = arith.constant 0 : i32
    return %arg0, %c0_i32 : i32, i32
  }
  func.func @transform_4(%arg0: i32, %arg1: i32) -> (i32, i32) {
    %c0_i32 = arith.constant 0 : i32
    %c0_i32_0 = arith.constant 0 : i32
    %c0_i32_1 = arith.constant 0 : i32
    return %c0_i32, %c0_i32_0 : i32, i32
  }
  func.func @transform_5(%arg0: i32, %arg1: i32) -> (i32, i32) {
    %c0_i32 = arith.constant 0 : i32
    %c0_i32_0 = arith.constant 0 : i32
    %c0_i32_1 = arith.constant 0 : i32
    return %c0_i32, %c0_i32_0 : i32, i32
  }
  func.func @transform_6(%arg0: i32, %arg1: i32) -> (i32, i32) {
    %c0_i32 = arith.constant 0 : i32
    %c0_i32_0 = arith.constant 0 : i32
    %c0_i32_1 = arith.constant 0 : i32
    return %c0_i32, %c0_i32_0 : i32, i32
  }
  func.func @transform_7(%arg0: i32, %arg1: i32) -> (i32, i32) {
    %c0_i32 = arith.constant 0 : i32
    %c0_i32_0 = arith.constant 0 : i32
    %c0_i32_1 = arith.constant 0 : i32
    return %c0_i32, %c0_i32_0 : i32, i32
  }
  func.func @transform_8(%arg0: i32, %arg1: i32) -> (i32, i32) {
    %c0_i32 = arith.constant 0 : i32
    %c0_i32_0 = arith.constant 0 : i32
    %c0_i32_1 = arith.constant 0 : i32
    return %c0_i32, %c0_i32_0 : i32, i32
  }
  func.func @transform_9(%arg0: i32, %arg1: i32) -> (i32, i32) {
    %c0_i32 = arith.constant 0 : i32
    %c0_i32_0 = arith.constant 0 : i32
    %c0_i32_1 = arith.constant 0 : i32
    return %c0_i32, %c0_i32_0 : i32, i32
  }
  func.func @transform_10(%arg0: i32, %arg1: i32) -> (i32, i32) {
    %c0_i32 = arith.constant 0 : i32
    %c0_i32_0 = arith.constant 0 : i32
    %c0_i32_1 = arith.constant 0 : i32
    return %c0_i32, %c0_i32_0 : i32, i32
  }
  func.func @transform_11(%arg0: i32, %arg1: i32) -> (i32, i32, i32) {
    %c0_i32 = arith.constant 0 : i32
    %c0_i32_0 = arith.constant 0 : i32
    return %arg1, %arg0, %c0_i32 : i32, i32, i32
  }
}

</mosaic_0001>

<llo_original>
// kernel: tpu_custom_call.1
$region0: #{tpu_custom_call.1}
  #allocation0 [shape = 'u32[]', space=smem, size = 0x4, offset = 0x4, fixed_abs, tag = 'smem constant byte address 0x4 - core index']
  #allocation1 [shape = 'u32[144,128]{1,0:T(1,128)}', space=vmem, size = 0x12000, scoped, tag = 'internal scratch']
  #allocation2 [shape = 'f32[8,16]{1,0:T(8,128)}', space=vmem, size = 0x1000, scoped, tag = 'scratch operand']
  #allocation3 [shape = 'f32[1]{0:T(128)S(6)}', space=smem, size = 0x200, scoped, tag = 'scoped memory for tpu_custom_call.1']
  #allocation4 [shape = 'f32[1]{0:T(128)S(6)}', space=smem, size = 0x200, scoped, tag = 'scoped memory for tpu_custom_call.1']
  #allocation5 [shape = 's32[1]{0:T(128)S(6)}', space=smem, size = 0x200, scoped, tag = 'scoped memory for tpu_custom_call.1']
  %s0 = inlined_call_operand.<no memory space> [shape: f32[1], index: 0, kind: input, shape index: {}]
  %s1 = inlined_call_operand.<no memory space> [shape: f32[1], index: 1, kind: input, shape index: {}]
  %s2 = inlined_call_operand.<no memory space> [shape: s32[1], index: 2, kind: input, shape index: {}]
  %s3 = inlined_call_operand.vmem [shape: f32[8,16], index: 3, kind: input, shape index: {}]
  %s4 = inlined_call_operand.hbm [shape: bf16[16,32], index: 4, kind: input, shape index: {}]
  %s5 = inlined_call_operand.vmem [shape: f32[1,32], index: 5, kind: input, shape index: {}]
  %s6 = inlined_call_operand.vmem [shape: f32[1,32], index: 6, kind: input, shape index: {}]
  %s7 = inlined_call_operand.vmem [shape: bf16[32,32], index: 7, kind: input, shape index: {}]
  %s8 = inlined_call_operand.vmem [shape: f32[1,32], index: 8, kind: input, shape index: {}]
  %s9 = inlined_call_operand.vmem [shape: bf16[32,16], index: 9, kind: input, shape index: {}]
  %s10 = inlined_call_operand.vmem [shape: f32[1,16], index: 10, kind: input, shape index: {}]
  %s11 = inlined_call_operand.hbm [shape: f32[1,8,16], index: 11, kind: output, shape index: {}]
  %s12 = sld [smem:[#allocation0]]
  $region62: #{tpu_custom_call.1} parent=0
    _
  %s14 = ssub.s32 1, %s12
  %s15 = scalar_select 0, %s14, %s12
  %16 = sst [smem:[#allocation3]] %s0
  %17 = sst [smem:[#allocation4]] %s1
  %18 = sst [smem:[#allocation5]] %s2
  $region1: #{tpu_custom_call.1} parent=0
    #allocation6 [shape = 'u8[4096]{0}', space=vmem, size = 0x1000, scoped, tag = 'input window, operand 4, single buffered']
    #allocation7 [shape = 's32[1]{0}', space=sflag, size = 0x4, scoped, tag = 'scoped memory for tpu_custom_call.1']
    #allocation8 [shape = 's32[1]{0}', space=sflag, size = 0x4, scoped, tag = 'scoped memory for tpu_custom_call.1']
    #allocation9 [shape = 'u8[4096]{0}', space=vmem, size = 0x1000, scoped, tag = 'output window, operand 0, single buffered']
    %19 = vsyncpa [#allocation7], 0
    %20 = vsyncpa [#allocation8], 0
    // Predicated region
    $region2: #{tpu_custom_call.1} parent=1 // pred_check
      _
    $region3: #{tpu_custom_call.1} parent=1 // pred_check_branch
      %22 = sbr.rel (0) target = $region5
    $region4: #{tpu_custom_call.1} parent=1 // pred_region
      _
    $region5: #{tpu_custom_call.1} parent=1 // pred_fallthru
      _
    // Predicated region
    $region6: #{tpu_custom_call.1} parent=1 // pred_check
      _
    $region7: #{tpu_custom_call.1} parent=1 // pred_check_branch
      %24 = sbr.rel (0) target = $region9
    $region8: #{tpu_custom_call.1} parent=1 // pred_region
      _
    $region9: #{tpu_custom_call.1} parent=1 // pred_fallthru
      _
    // Predicated region
    $region10: #{tpu_custom_call.1} parent=1 // pred_check
      _
    $region11: #{tpu_custom_call.1} parent=1 // pred_check_branch
      %26 = sbr.rel (0) target = $region13
    $region12: #{tpu_custom_call.1} parent=1 // pred_region
      _
    $region13: #{tpu_custom_call.1} parent=1 // pred_fallthru
      _
    // Predicated region
    $region14: #{tpu_custom_call.1} parent=1 // pred_check
      _
    $region15: #{tpu_custom_call.1} parent=1 // pred_check_branch
      %28 = sbr.rel (0) target = $region17
    $region16: #{tpu_custom_call.1} parent=1 // pred_region
      _
    $region17: #{tpu_custom_call.1} parent=1 // pred_fallthru
      _
    // Predicated region
    $region18: #{tpu_custom_call.1} parent=1 // pred_check
      _
    $region19: #{tpu_custom_call.1} parent=1 // pred_check_branch
      %30 = sbr.rel (0) target = $region21
    $region20: #{tpu_custom_call.1} parent=1 // pred_region
      %s32 = ssub.s32 128, 128
      %33 = vsyncadd [#allocation7], %s32
      %s34 = sshll.u32 [#allocation6], 4
      %s35 = int_to_ptr.vmem [resolvable:$true] %s34
      %40 = dma.hbm_to_vmem [thread:$0]  %s4, 128, %s35, [#allocation7], 64, 64, 4
    $region21: #{tpu_custom_call.1} parent=1 // pred_fallthru
      _
    // Predicated region
    $region22: #{tpu_custom_call.1} parent=1 // pred_check
      _
    $region23: #{tpu_custom_call.1} parent=1 // pred_check_branch
      %42 = sbr.rel (0) target = $region25
    $region24: #{tpu_custom_call.1} parent=1 // pred_region
      _
    $region25: #{tpu_custom_call.1} parent=1 // pred_fallthru
      _
    // Predicated region
    $region26: #{tpu_custom_call.1} parent=1 // pred_check
      _
    $region27: #{tpu_custom_call.1} parent=1 // pred_check_branch
      %44 = sbr.rel (0) target = $region29
    $region28: #{tpu_custom_call.1} parent=1 // pred_region
      _
    $region29: #{tpu_custom_call.1} parent=1 // pred_fallthru
      _
    // Predicated region
    $region30: #{tpu_custom_call.1} parent=1 // pred_check
      _
    $region31: #{tpu_custom_call.1} parent=1 // pred_check_branch
      %46 = sbr.rel (0) target = $region33
    $region32: #{tpu_custom_call.1} parent=1 // pred_region
      _
    $region33: #{tpu_custom_call.1} parent=1 // pred_fallthru
      _
    // Predicated region
    $region34: #{tpu_custom_call.1} parent=1 // pred_check
      _
    $region35: #{tpu_custom_call.1} parent=1 // pred_check_branch
      %48 = sbr.rel (0) target = $region37
    $region36: #{tpu_custom_call.1} parent=1 // pred_region
      _
    $region37: #{tpu_custom_call.1} parent=1 // pred_fallthru
      _
    // Predicated region
    $region38: #{tpu_custom_call.1} parent=1 // pred_check
      _
    $region39: #{tpu_custom_call.1} parent=1 // pred_check_branch
      %50 = sbr.rel (0) target = $region41
    $region40: #{tpu_custom_call.1} parent=1 // pred_region
      _
    $region41: #{tpu_custom_call.1} parent=1 // pred_fallthru
      _
    // Predicated region
    $region42: #{tpu_custom_call.1} parent=1 // pred_check
      _
    $region43: #{tpu_custom_call.1} parent=1 // pred_check_branch
      %52 = sbr.rel (0) target = $region45
    $region44: #{tpu_custom_call.1} parent=1 // pred_region
      _
    $region45: #{tpu_custom_call.1} parent=1 // pred_fallthru
      _
    // Predicated region
    $region46: #{tpu_custom_call.1} parent=1 // pred_check
      _
    $region47: #{tpu_custom_call.1} parent=1 // pred_check_branch
      %54 = sbr.rel (0) target = $region49
    $region48: #{tpu_custom_call.1} parent=1 // pred_region
      %55 = dma.done [#allocation7], 128
    $region49: #{tpu_custom_call.1} parent=1 // pred_fallthru
      _
    %p57 = scmp.eq.s32.totalorder 0, 0
    // Predicated region
    $region50: #{tpu_custom_call.1} parent=1 // pred_check
      %p58 = pneg %p57
    $region51: #{tpu_custom_call.1} parent=1 // pred_check_branch
      %60 = sbr.rel (%p58) target = $region53
    $region52: #{tpu_custom_call.1} parent=1 // pred_region
      %v61 = vld [vmem:[%s3] sm:$0xff]
      %vm62 = vcmask 130048
      %63 = vst.msk [vmem:[#allocation2] sm:$0xff] %vm62, %v61
    $region53: #{tpu_custom_call.1} parent=1 // pred_fallthru
      _
    %s64 = sld [smem:[#allocation3]]
    %s65 = sld [smem:[#allocation4]]
    %s66 = sld [smem:[#allocation5]]
    %v67 = vld [vmem:[#allocation6] sm:$0xf]
    %v68 = vld [vmem:[#allocation6 + $0x4] sm:$0xf]
    %v69 = vld [vmem:[%s7] sm:$0xf]
    %v70 = vld [vmem:[%s7 + $0x4] sm:$0xf]
    %v71 = vld [vmem:[%s7 + $0x8] sm:$0xf]
    %v72 = vld [vmem:[%s7 + $0xc] sm:$0xf]
    %v73 = vld [vmem:[%s9] sm:$0xf]
    %v74 = vld [vmem:[%s9 + $0x4] sm:$0xf]
    %v75 = vld [vmem:[%s9 + $0x8] sm:$0xf]
    %v76 = vld [vmem:[%s9 + $0xc] sm:$0xf]
    %v77 = vld [vmem:[%s5] sm:$0x1]
    %v79 = vlaneseq
    %v80 = vshrl.u32 %v79, 7
    %v81 = vsub.s32 0, %v80
    %v82 = vrot.slane %v77, %v81
    %v84 = vld [vmem:[%s6] sm:$0x1]
    %v86 = vlaneseq
    %v87 = vshrl.u32 %v86, 7
    %v88 = vsub.s32 0, %v87
    %v89 = vrot.slane %v84, %v88
    %v91 = vld [vmem:[%s8] sm:$0x1]
    %v93 = vlaneseq
    %v94 = vshrl.u32 %v93, 7
    %v95 = vsub.s32 0, %v94
    %v96 = vrot.slane %v91, %v95
    %v98 = vld [vmem:[%s10] sm:$0x1]
    %v100 = vlaneseq
    %v101 = vshrl.u32 %v100, 7
    %v102 = vsub.s32 0, %v101
    %v103 = vrot.slane %v98, %v102
    %v105 = vld [vmem:[#allocation2] sm:$0xff]
    %p106 = scmp.gt.s32.totalorder %s66, 0
    %s107 = scalar_select %p106, %s65, 0.0
    %s108 = smul.f32 %s65, 0.0
    %s109 = sadd.f32 %s64, %s108
    %v110 = vpack.c.bf16 %v105, %v105
    %v111 = vstv %s109
    %v112 = vmul.f32 %v111, %v82
    %v115 = vunpack.c.l.b16 %v67
    %v116 = vunpack.c.l.b16 %v68
    %v117 = vpack.c.b16 %v116, %v115
    %vm119 = vcmask 130048
    %v121 = vsel %vm119, %v110, 0
    %123 = vmatprep.subr.bf16.mxu0 0
    %124 = vmatpush1.bf16.msra.mxu0 %v117
    %125 = vmatprep.subr.bf16.mxu0 0
    %126 = vmatpush1.bf16.msra.mxu0 0
    %127 = vmatprep.subr.bf16.mxu0 0
    %128 = vmatpush1.bf16.msra.mxu0 0
    %129 = vmatprep.subr.bf16.mxu0 0
    %130 = vmatpush1.bf16.msra.mxu0 0
    %131 = vmatprep.subr.bf16.mxu0 0
    %132 = vmatpush1.bf16.msra.mxu0 0
    %133 = vmatprep.subr.bf16.mxu0 0
    %134 = vmatpush1.bf16.msra.mxu0 0
    %135 = vmatprep.subr.bf16.mxu0 0
    %136 = vmatpush1.bf16.msra.mxu0 0
    %137 = vmatprep.subr.bf16.mxu0 0
    %138 = vmatpush1.bf16.msra.mxu0 0
    %139 = vmatprep.subr.bf16.mxu0 0
    %140 = vmatpush1.bf16.msra.mxu0 0
    %141 = vmatprep.subr.bf16.mxu0 0
    %142 = vmatpush1.bf16.msra.mxu0 0
    %143 = vmatprep.subr.bf16.mxu0 0
    %144 = vmatpush1.bf16.msra.mxu0 0
    %145 = vmatprep.subr.bf16.mxu0 0
    %146 = vmatpush1.bf16.msra.mxu0 0
    %147 = vmatprep.subr.bf16.mxu0 0
    %148 = vmatpush1.bf16.msra.mxu0 0
    %149 = vmatprep.subr.bf16.mxu0 0
    %150 = vmatpush1.bf16.msra.mxu0 0
    %151 = vmatprep.subr.bf16.mxu0 0
    %152 = vmatpush1.bf16.msra.mxu0 0
    %153 = vmatprep.subr.bf16.mxu0 0
    %154 = vmatpush1.bf16.msra.mxu0 0
    %155 = vmatprep.mubr.bf16.mxu0 0
    %156 = vmatmul.mubr.bf16.gmra.mrb[0].mxu0 %v121
    %v157 = vpop.f32.mrb[0].mxu0
    %v158 = vadd.f32 %v112, %v157
    %v159 = vpop.f32.mrb[0].mxu0
    %v160 = vpop.f32.mrb[0].mxu0
    %v161 = vpop.f32.mrb[0].mxu0
    %162 = vdwg.mxu0
    %v163 = vadd.f32 %v158, %v89
    %vm164 = vcmp.gt.f32.partialorder %v163, 0.0
    %v165 = vmul.f32 %v163, 1.442695
    %v166 = vpow.pop %v165
    %v167 = vsub.f32 %v166, 1.0
    %v168 = vsel %vm164, %v163, %v167
    %v169 = vpack.c.bf16 %v168, %v168
    %v174 = vunpack.c.l.b16 %v69
    %v175 = vunpack.c.l.b16 %v70
    %v176 = vunpack.c.l.b16 %v71
    %v177 = vunpack.c.l.b16 %v72
    %v178 = vpack.c.b16 %v175, %v174
    %v179 = vpack.c.b16 %v177, %v176
    %vm182 = vcmask 261120
    %v184 = vsel %vm182, %v169, 0
    %186 = vmatprep.subr.bf16.mxu0 0
    %187 = vmatpush1.bf16.msra.mxu0 %v178
    %188 = vmatprep.subr.bf16.mxu0 0
    %189 = vmatpush1.bf16.msra.mxu0 %v179
    %190 = vmatprep.subr.bf16.mxu0 0
    %191 = vmatpush1.bf16.msra.mxu0 0
    %192 = vmatprep.subr.bf16.mxu0 0
    %193 = vmatpush1.bf16.msra.mxu0 0
    %194 = vmatprep.subr.bf16.mxu0 0
    %195 = vmatpush1.bf16.msra.mxu0 0
    %196 = vmatprep.subr.bf16.mxu0 0
    %197 = vmatpush1.bf16.msra.mxu0 0
    %198 = vmatprep.subr.bf16.mxu0 0
    %199 = vmatpush1.bf16.msra.mxu0 0
    %200 = vmatprep.subr.bf16.mxu0 0
    %201 = vmatpush1.bf16.msra.mxu0 0
    %202 = vmatprep.subr.bf16.mxu0 0
    %203 = vmatpush1.bf16.msra.mxu0 0
    %204 = vmatprep.subr.bf16.mxu0 0
    %205 = vmatpush1.bf16.msra.mxu0 0
    %206 = vmatprep.subr.bf16.mxu0 0
    %207 = vmatpush1.bf16.msra.mxu0 0
    %208 = vmatprep.subr.bf16.mxu0 0
    %209 = vmatpush1.bf16.msra.mxu0 0
    %210 = vmatprep.subr.bf16.mxu0 0
    %211 = vmatpush1.bf16.msra.mxu0 0
    %212 = vmatprep.subr.bf16.mxu0 0
    %213 = vmatpush1.bf16.msra.mxu0 0
    %214 = vmatprep.subr.bf16.mxu0 0
    %215 = vmatpush1.bf16.msra.mxu0 0
    %216 = vmatprep.subr.bf16.mxu0 0
    %217 = vmatpush1.bf16.msra.mxu0 0
    %218 = vmatprep.mubr.bf16.mxu0 0
    %219 = vmatmul.mubr.bf16.gmra.mrb[0].mxu0 %v184
    %v220 = vpop.f32.mrb[0].mxu0
    %v221 = vadd.f32 %v96, %v220
    %v222 = vpop.f32.mrb[0].mxu0
    %v223 = vpop.f32.mrb[0].mxu0
    %v224 = vpop.f32.mrb[0].mxu0
    %225 = vdwg.mxu0
    %vm226 = vcmp.gt.f32.partialorder %v221, 0.0
    %v227 = vmul.f32 %v221, 1.442695
    %v228 = vpow.pop %v227
    %v229 = vsub.f32 %v228, 1.0
    %v230 = vsel %vm226, %v221, %v229
    %v231 = vpack.c.bf16 %v230, %v230
    %v236 = vunpack.c.l.b16 %v73
    %v237 = vunpack.c.l.b16 %v74
    %v238 = vunpack.c.l.b16 %v75
    %v239 = vunpack.c.l.b16 %v76
    %v240 = vpack.c.b16 %v237, %v236
    %v241 = vpack.c.b16 %v239, %v238
    %v245 = vsel %vm182, %v231, 0
    %247 = vmatprep.subr.bf16.mxu0 0
    %248 = vmatpush1.bf16.msra.mxu0 %v240
    %249 = vmatprep.subr.bf16.mxu0 0
    %250 = vmatpush1.bf16.msra.mxu0 %v241
    %251 = vmatprep.subr.bf16.mxu0 0
    %252 = vmatpush1.bf16.msra.mxu0 0
    %253 = vmatprep.subr.bf16.mxu0 0
    %254 = vmatpush1.bf16.msra.mxu0 0
    %255 = vmatprep.subr.bf16.mxu0 0
    %256 = vmatpush1.bf16.msra.mxu0 0
    %257 = vmatprep.subr.bf16.mxu0 0
    %258 = vmatpush1.bf16.msra.mxu0 0
    %259 = vmatprep.subr.bf16.mxu0 0
    %260 = vmatpush1.bf16.msra.mxu0 0
    %261 = vmatprep.subr.bf16.mxu0 0
    %262 = vmatpush1.bf16.msra.mxu0 0
    %263 = vmatprep.subr.bf16.mxu0 0
    %264 = vmatpush1.bf16.msra.mxu0 0
    %265 = vmatprep.subr.bf16.mxu0 0
    %266 = vmatpush1.bf16.msra.mxu0 0
    %267 = vmatprep.subr.bf16.mxu0 0
    %268 = vmatpush1.bf16.msra.mxu0 0
    %269 = vmatprep.subr.bf16.mxu0 0
    %270 = vmatpush1.bf16.msra.mxu0 0
    %271 = vmatprep.subr.bf16.mxu0 0
    %272 = vmatpush1.bf16.msra.mxu0 0
    %273 = vmatprep.subr.bf16.mxu0 0
    %274 = vmatpush1.bf16.msra.mxu0 0
    %275 = vmatprep.subr.bf16.mxu0 0
    %276 = vmatpush1.bf16.msra.mxu0 0
    %277 = vmatprep.subr.bf16.mxu0 0
    %278 = vmatpush1.bf16.msra.mxu0 0
    %279 = vmatprep.mubr.bf16.mxu0 0
    %280 = vmatmul.mubr.bf16.gmra.mrb[0].mxu0 %v245
    %v281 = vpop.f32.mrb[0].mxu0
    %v282 = vadd.f32 %v103, %v281
    %v283 = vpop.f32.mrb[0].mxu0
    %v284 = vpop.f32.mrb[0].mxu0
    %v285 = vpop.f32.mrb[0].mxu0
    %286 = vdwg.mxu0
    %v287 = vstv %s107
    %v288 = vmul.f32 %v287, %v282
    %v289 = vadd.f32 %v105, %v288
    %p290 = scmp.gt.s32.totalorder %s66, 1
    %s291 = scalar_select %p290, %s65, 0.0
    %s292 = sadd.f32 %s64, %s65
    %v293 = vpack.c.bf16 %v289, %v289
    %v294 = vstv %s292
    %v295 = vmul.f32 %v294, %v82
    %v297 = vsel %vm119, %v293, 0
    %299 = vmatprep.subr.bf16.mxu0 0
    %300 = vmatpush1.bf16.msra.mxu0 %v117
    %301 = vmatprep.subr.bf16.mxu0 0
    %302 = vmatpush1.bf16.msra.mxu0 0
    %303 = vmatprep.subr.bf16.mxu0 0
    %304 = vmatpush1.bf16.msra.mxu0 0
    %305 = vmatprep.subr.bf16.mxu0 0
    %306 = vmatpush1.bf16.msra.mxu0 0
    %307 = vmatprep.subr.bf16.mxu0 0
    %308 = vmatpush1.bf16.msra.mxu0 0
    %309 = vmatprep.subr.bf16.mxu0 0
    %310 = vmatpush1.bf16.msra.mxu0 0
    %311 = vmatprep.subr.bf16.mxu0 0
    %312 = vmatpush1.bf16.msra.mxu0 0
    %313 = vmatprep.subr.bf16.mxu0 0
    %314 = vmatpush1.bf16.msra.mxu0 0
    %315 = vmatprep.subr.bf16.mxu0 0
    %316 = vmatpush1.bf16.msra.mxu0 0
    %317 = vmatprep.subr.bf16.mxu0 0
    %318 = vmatpush1.bf16.msra.mxu0 0
    %319 = vmatprep.subr.bf16.mxu0 0
    %320 = vmatpush1.bf16.msra.mxu0 0
    %321 = vmatprep.subr.bf16.mxu0 0
    %322 = vmatpush1.bf16.msra.mxu0 0
    %323 = vmatprep.subr.bf16.mxu0 0
    %324 = vmatpush1.bf16.msra.mxu0 0
    %325 = vmatprep.subr.bf16.mxu0 0
    %326 = vmatpush1.bf16.msra.mxu0 0
    %327 = vmatprep.subr.bf16.mxu0 0
    %328 = vmatpush1.bf16.msra.mxu0 0
    %329 = vmatprep.subr.bf16.mxu0 0
    %330 = vmatpush1.bf16.msra.mxu0 0
    %331 = vmatprep.mubr.bf16.mxu0 0
    %332 = vmatmul.mubr.bf16.gmra.mrb[0].mxu0 %v297
    %v333 = vpop.f32.mrb[0].mxu0
    %v334 = vadd.f32 %v295, %v333
    %v335 = vpop.f32.mrb[0].mxu0
    %v336 = vpop.f32.mrb[0].mxu0
    %v337 = vpop.f32.mrb[0].mxu0
    %338 = vdwg.mxu0
    %v339 = vadd.f32 %v334, %v89
    %vm340 = vcmp.gt.f32.partialorder %v339, 0.0
    %v341 = vmul.f32 %v339, 1.442695
    %v342 = vpow.pop %v341
    %v343 = vsub.f32 %v342, 1.0
    %v344 = vsel %vm340, %v339, %v343
    %v345 = vpack.c.bf16 %v344, %v344
    %v347 = vsel %vm182, %v345, 0
    %349 = vmatprep.subr.bf16.mxu0 0
    %350 = vmatpush1.bf16.msra.mxu0 %v178
    %351 = vmatprep.subr.bf16.mxu0 0
    %352 = vmatpush1.bf16.msra.mxu0 %v179
    %353 = vmatprep.subr.bf16.mxu0 0
    %354 = vmatpush1.bf16.msra.mxu0 0
    %355 = vmatprep.subr.bf16.mxu0 0
    %356 = vmatpush1.bf16.msra.mxu0 0
    %357 = vmatprep.subr.bf16.mxu0 0
    %358 = vmatpush1.bf16.msra.mxu0 0
    %359 = vmatprep.subr.bf16.mxu0 0
    %360 = vmatpush1.bf16.msra.mxu0 0
    %361 = vmatprep.subr.bf16.mxu0 0
    %362 = vmatpush1.bf16.msra.mxu0 0
    %363 = vmatprep.subr.bf16.mxu0 0
    %364 = vmatpush1.bf16.msra.mxu0 0
    %365 = vmatprep.subr.bf16.mxu0 0
    %366 = vmatpush1.bf16.msra.mxu0 0
    %367 = vmatprep.subr.bf16.mxu0 0
    %368 = vmatpush1.bf16.msra.mxu0 0
    %369 = vmatprep.subr.bf16.mxu0 0
    %370 = vmatpush1.bf16.msra.mxu0 0
    %371 = vmatprep.subr.bf16.mxu0 0
    %372 = vmatpush1.bf16.msra.mxu0 0
    %373 = vmatprep.subr.bf16.mxu0 0
    %374 = vmatpush1.bf16.msra.mxu0 0
    %375 = vmatprep.subr.bf16.mxu0 0
    %376 = vmatpush1.bf16.msra.mxu0 0
    %377 = vmatprep.subr.bf16.mxu0 0
    %378 = vmatpush1.bf16.msra.mxu0 0
    %379 = vmatprep.subr.bf16.mxu0 0
    %380 = vmatpush1.bf16.msra.mxu0 0
    %381 = vmatprep.mubr.bf16.mxu0 0
    %382 = vmatmul.mubr.bf16.gmra.mrb[0].mxu0 %v347
    %v383 = vpop.f32.mrb[0].mxu0
    %v384 = vadd.f32 %v96, %v383
    %v385 = vpop.f32.mrb[0].mxu0
    %v386 = vpop.f32.mrb[0].mxu0
    %v387 = vpop.f32.mrb[0].mxu0
    %388 = vdwg.mxu0
    %vm389 = vcmp.gt.f32.partialorder %v384, 0.0
    %v390 = vmul.f32 %v384, 1.442695
    %v391 = vpow.pop %v390
    %v392 = vsub.f32 %v391, 1.0
    %v393 = vsel %vm389, %v384, %v392
    %v394 = vpack.c.bf16 %v393, %v393
    %v396 = vsel %vm182, %v394, 0
    %398 = vmatprep.subr.bf16.mxu0 0
    %399 = vmatpush1.bf16.msra.mxu0 %v240
    %400 = vmatprep.subr.bf16.mxu0 0
    %401 = vmatpush1.bf16.msra.mxu0 %v241
    %402 = vmatprep.subr.bf16.mxu0 0
    %403 = vmatpush1.bf16.msra.mxu0 0
    %404 = vmatprep.subr.bf16.mxu0 0
    %405 = vmatpush1.bf16.msra.mxu0 0
    %406 = vmatprep.subr.bf16.mxu0 0
    %407 = vmatpush1.bf16.msra.mxu0 0
    %408 = vmatprep.subr.bf16.mxu0 0
    %409 = vmatpush1.bf16.msra.mxu0 0
    %410 = vmatprep.subr.bf16.mxu0 0
    %411 = vmatpush1.bf16.msra.mxu0 0
    %412 = vmatprep.subr.bf16.mxu0 0
    %413 = vmatpush1.bf16.msra.mxu0 0
    %414 = vmatprep.subr.bf16.mxu0 0
    %415 = vmatpush1.bf16.msra.mxu0 0
    %416 = vmatprep.subr.bf16.mxu0 0
    %417 = vmatpush1.bf16.msra.mxu0 0
    %418 = vmatprep.subr.bf16.mxu0 0
    %419 = vmatpush1.bf16.msra.mxu0 0
    %420 = vmatprep.subr.bf16.mxu0 0
    %421 = vmatpush1.bf16.msra.mxu0 0
    %422 = vmatprep.subr.bf16.mxu0 0
    %423 = vmatpush1.bf16.msra.mxu0 0
    %424 = vmatprep.subr.bf16.mxu0 0
    %425 = vmatpush1.bf16.msra.mxu0 0
    %426 = vmatprep.subr.bf16.mxu0 0
    %427 = vmatpush1.bf16.msra.mxu0 0
    %428 = vmatprep.subr.bf16.mxu0 0
    %429 = vmatpush1.bf16.msra.mxu0 0
    %430 = vmatprep.mubr.bf16.mxu0 0
    %431 = vmatmul.mubr.bf16.gmra.mrb[0].mxu0 %v396
    %v432 = vpop.f32.mrb[0].mxu0
    %v433 = vadd.f32 %v103, %v432
    %v434 = vpop.f32.mrb[0].mxu0
    %v435 = vpop.f32.mrb[0].mxu0
    %v436 = vpop.f32.mrb[0].mxu0
    %437 = vdwg.mxu0
    %v438 = vstv %s291
    %v439 = vmul.f32 %v438, %v433
    %v440 = vadd.f32 %v289, %v439
    %p441 = scmp.gt.s32.totalorder %s66, 2
    %s442 = scalar_select %p441, %s65, 0.0
    %s443 = smul.f32 %s65, 2.0
    %s444 = sadd.f32 %s64, %s443
    %v445 = vpack.c.bf16 %v440, %v440
    %v446 = vstv %s444
    %v447 = vmul.f32 %v446, %v82
    %v449 = vsel %vm119, %v445, 0
    %451 = vmatprep.subr.bf16.mxu0 0
    %452 = vmatpush1.bf16.msra.mxu0 %v117
    %453 = vmatprep.subr.bf16.mxu0 0
    %454 = vmatpush1.bf16.msra.mxu0 0
    %455 = vmatprep.subr.bf16.mxu0 0
    %456 = vmatpush1.bf16.msra.mxu0 0
    %457 = vmatprep.subr.bf16.mxu0 0
    %458 = vmatpush1.bf16.msra.mxu0 0
    %459 = vmatprep.subr.bf16.mxu0 0
    %460 = vmatpush1.bf16.msra.mxu0 0
    %461 = vmatprep.subr.bf16.mxu0 0
    %462 = vmatpush1.bf16.msra.mxu0 0
    %463 = vmatprep.subr.bf16.mxu0 0
    %464 = vmatpush1.bf16.msra.mxu0 0
    %465 = vmatprep.subr.bf16.mxu0 0
    %466 = vmatpush1.bf16.msra.mxu0 0
    %467 = vmatprep.subr.bf16.mxu0 0
    %468 = vmatpush1.bf16.msra.mxu0 0
    %469 = vmatprep.subr.bf16.mxu0 0
    %470 = vmatpush1.bf16.msra.mxu0 0
    %471 = vmatprep.subr.bf16.mxu0 0
    %472 = vmatpush1.bf16.msra.mxu0 0
    %473 = vmatprep.subr.bf16.mxu0 0
    %474 = vmatpush1.bf16.msra.mxu0 0
    %475 = vmatprep.subr.bf16.mxu0 0
    %476 = vmatpush1.bf16.msra.mxu0 0
    %477 = vmatprep.subr.bf16.mxu0 0
    %478 = vmatpush1.bf16.msra.mxu0 0
    %479 = vmatprep.subr.bf16.mxu0 0
    %480 = vmatpush1.bf16.msra.mxu0 0
    %481 = vmatprep.subr.bf16.mxu0 0
    %482 = vmatpush1.bf16.msra.mxu0 0
    %483 = vmatprep.mubr.bf16.mxu0 0
    %484 = vmatmul.mubr.bf16.gmra.mrb[0].mxu0 %v449
    %v485 = vpop.f32.mrb[0].mxu0
    %v486 = vadd.f32 %v447, %v485
    %v487 = vpop.f32.mrb[0].mxu0
    %v488 = vpop.f32.mrb[0].mxu0
    %v489 = vpop.f32.mrb[0].mxu0
    %490 = vdwg.mxu0
    %v491 = vadd.f32 %v486, %v89
    %vm492 = vcmp.gt.f32.partialorder %v491, 0.0
    %v493 = vmul.f32 %v491, 1.442695
    %v494 = vpow.pop %v493
    %v495 = vsub.f32 %v494, 1.0
    %v496 = vsel %vm492, %v491, %v495
    %v497 = vpack.c.bf16 %v496, %v496
    %v499 = vsel %vm182, %v497, 0
    %501 = vmatprep.subr.bf16.mxu0 0
    %502 = vmatpush1.bf16.msra.mxu0 %v178
    %503 = vmatprep.subr.bf16.mxu0 0
    %504 = vmatpush1.bf16.msra.mxu0 %v179
    %505 = vmatprep.subr.bf16.mxu0 0
    %506 = vmatpush1.bf16.msra.mxu0 0
    %507 = vmatprep.subr.bf16.mxu0 0
    %508 = vmatpush1.bf16.msra.mxu0 0
    %509 = vmatprep.subr.bf16.mxu0 0
    %510 = vmatpush1.bf16.msra.mxu0 0
    %511 = vmatprep.subr.bf16.mxu0 0
    %512 = vmatpush1.bf16.msra.mxu0 0
    %513 = vmatprep.subr.bf16.mxu0 0
    %514 = vmatpush1.bf16.msra.mxu0 0
    %515 = vmatprep.subr.bf16.mxu0 0
    %516 = vmatpush1.bf16.msra.mxu0 0
    %517 = vmatprep.subr.bf16.mxu0 0
    %518 = vmatpush1.bf16.msra.mxu0 0
    %519 = vmatprep.subr.bf16.mxu0 0
    %520 = vmatpush1.bf16.msra.mxu0 0
    %521 = vmatprep.subr.bf16.mxu0 0
    %522 = vmatpush1.bf16.msra.mxu0 0
    %523 = vmatprep.subr.bf16.mxu0 0
    %524 = vmatpush1.bf16.msra.mxu0 0
    %525 = vmatprep.subr.bf16.mxu0 0
    %526 = vmatpush1.bf16.msra.mxu0 0
    %527 = vmatprep.subr.bf16.mxu0 0
    %528 = vmatpush1.bf16.msra.mxu0 0
    %529 = vmatprep.subr.bf16.mxu0 0
    %530 = vmatpush1.bf16.msra.mxu0 0
    %531 = vmatprep.subr.bf16.mxu0 0
    %532 = vmatpush1.bf16.msra.mxu0 0
    %533 = vmatprep.mubr.bf16.mxu0 0
    %534 = vmatmul.mubr.bf16.gmra.mrb[0].mxu0 %v499
    %v535 = vpop.f32.mrb[0].mxu0
    %v536 = vadd.f32 %v96, %v535
    %v537 = vpop.f32.mrb[0].mxu0
    %v538 = vpop.f32.mrb[0].mxu0
    %v539 = vpop.f32.mrb[0].mxu0
    %540 = vdwg.mxu0
    %vm541 = vcmp.gt.f32.partialorder %v536, 0.0
    %v542 = vmul.f32 %v536, 1.442695
    %v543 = vpow.pop %v542
    %v544 = vsub.f32 %v543, 1.0
    %v545 = vsel %vm541, %v536, %v544
    %v546 = vpack.c.bf16 %v545, %v545
    %v548 = vsel %vm182, %v546, 0
    %550 = vmatprep.subr.bf16.mxu0 0
    %551 = vmatpush1.bf16.msra.mxu0 %v240
    %552 = vmatprep.subr.bf16.mxu0 0
    %553 = vmatpush1.bf16.msra.mxu0 %v241
    %554 = vmatprep.subr.bf16.mxu0 0
    %555 = vmatpush1.bf16.msra.mxu0 0
    %556 = vmatprep.subr.bf16.mxu0 0
    %557 = vmatpush1.bf16.msra.mxu0 0
    %558 = vmatprep.subr.bf16.mxu0 0
    %559 = vmatpush1.bf16.msra.mxu0 0
    %560 = vmatprep.subr.bf16.mxu0 0
    %561 = vmatpush1.bf16.msra.mxu0 0
    %562 = vmatprep.subr.bf16.mxu0 0
    %563 = vmatpush1.bf16.msra.mxu0 0
    %564 = vmatprep.subr.bf16.mxu0 0
    %565 = vmatpush1.bf16.msra.mxu0 0
    %566 = vmatprep.subr.bf16.mxu0 0
    %567 = vmatpush1.bf16.msra.mxu0 0
    %568 = vmatprep.subr.bf16.mxu0 0
    %569 = vmatpush1.bf16.msra.mxu0 0
    %570 = vmatprep.subr.bf16.mxu0 0
    %571 = vmatpush1.bf16.msra.mxu0 0
    %572 = vmatprep.subr.bf16.mxu0 0
    %573 = vmatpush1.bf16.msra.mxu0 0
    %574 = vmatprep.subr.bf16.mxu0 0
    %575 = vmatpush1.bf16.msra.mxu0 0
    %576 = vmatprep.subr.bf16.mxu0 0
    %577 = vmatpush1.bf16.msra.mxu0 0
    %578 = vmatprep.subr.bf16.mxu0 0
    %579 = vmatpush1.bf16.msra.mxu0 0
    %580 = vmatprep.subr.bf16.mxu0 0
    %581 = vmatpush1.bf16.msra.mxu0 0
    %582 = vmatprep.mubr.bf16.mxu0 0
    %583 = vmatmul.mubr.bf16.gmra.mrb[0].mxu0 %v548
    %v584 = vpop.f32.mrb[0].mxu0
    %v585 = vadd.f32 %v103, %v584
    %v586 = vpop.f32.mrb[0].mxu0
    %v587 = vpop.f32.mrb[0].mxu0
    %v588 = vpop.f32.mrb[0].mxu0
    %589 = vdwg.mxu0
    %v590 = vstv %s442
    %v591 = vmul.f32 %v590, %v585
    %v592 = vadd.f32 %v440, %v591
    %p593 = scmp.gt.s32.totalorder %s66, 3
    %s594 = scalar_select %p593, %s65, 0.0
    %s595 = smul.f32 %s65, 3.0
    %s596 = sadd.f32 %s64, %s595
    %v597 = vpack.c.bf16 %v592, %v592
    %v598 = vstv %s596
    %v599 = vmul.f32 %v598, %v82
    %v601 = vsel %vm119, %v597, 0
    %603 = vmatprep.subr.bf16.mxu0 0
    %604 = vmatpush1.bf16.msra.mxu0 %v117
    %605 = vmatprep.subr.bf16.mxu0 0
    %606 = vmatpush1.bf16.msra.mxu0 0
    %607 = vmatprep.subr.bf16.mxu0 0
    %608 = vmatpush1.bf16.msra.mxu0 0
    %609 = vmatprep.subr.bf16.mxu0 0
    %610 = vmatpush1.bf16.msra.mxu0 0
    %611 = vmatprep.subr.bf16.mxu0 0
    %612 = vmatpush1.bf16.msra.mxu0 0
    %613 = vmatprep.subr.bf16.mxu0 0
    %614 = vmatpush1.bf16.msra.mxu0 0
    %615 = vmatprep.subr.bf16.mxu0 0
    %616 = vmatpush1.bf16.msra.mxu0 0
    %617 = vmatprep.subr.bf16.mxu0 0
    %618 = vmatpush1.bf16.msra.mxu0 0
    %619 = vmatprep.subr.bf16.mxu0 0
    %620 = vmatpush1.bf16.msra.mxu0 0
    %621 = vmatprep.subr.bf16.mxu0 0
    %622 = vmatpush1.bf16.msra.mxu0 0
    %623 = vmatprep.subr.bf16.mxu0 0
    %624 = vmatpush1.bf16.msra.mxu0 0
    %625 = vmatprep.subr.bf16.mxu0 0
    %626 = vmatpush1.bf16.msra.mxu0 0
    %627 = vmatprep.subr.bf16.mxu0 0
    %628 = vmatpush1.bf16.msra.mxu0 0
    %629 = vmatprep.subr.bf16.mxu0 0
    %630 = vmatpush1.bf16.msra.mxu0 0
    %631 = vmatprep.subr.bf16.mxu0 0
    %632 = vmatpush1.bf16.msra.mxu0 0
    %633 = vmatprep.subr.bf16.mxu0 0
    %634 = vmatpush1.bf16.msra.mxu0 0
    %635 = vmatprep.mubr.bf16.mxu0 0
    %636 = vmatmul.mubr.bf16.gmra.mrb[0].mxu0 %v601
    %v637 = vpop.f32.mrb[0].mxu0
    %v638 = vadd.f32 %v599, %v637
    %v639 = vpop.f32.mrb[0].mxu0
    %v640 = vpop.f32.mrb[0].mxu0
    %v641 = vpop.f32.mrb[0].mxu0
    %642 = vdwg.mxu0
    %v643 = vadd.f32 %v638, %v89
    %vm644 = vcmp.gt.f32.partialorder %v643, 0.0
    %v645 = vmul.f32 %v643, 1.442695
    %v646 = vpow.pop %v645
    %v647 = vsub.f32 %v646, 1.0
    %v648 = vsel %vm644, %v643, %v647
    %v649 = vpack.c.bf16 %v648, %v648
    %v651 = vsel %vm182, %v649, 0
    %653 = vmatprep.subr.bf16.mxu0 0
    %654 = vmatpush1.bf16.msra.mxu0 %v178
    %655 = vmatprep.subr.bf16.mxu0 0
    %656 = vmatpush1.bf16.msra.mxu0 %v179
    %657 = vmatprep.subr.bf16.mxu0 0
    %658 = vmatpush1.bf16.msra.mxu0 0
    %659 = vmatprep.subr.bf16.mxu0 0
    %660 = vmatpush1.bf16.msra.mxu0 0
    %661 = vmatprep.subr.bf16.mxu0 0
    %662 = vmatpush1.bf16.msra.mxu0 0
    %663 = vmatprep.subr.bf16.mxu0 0
    %664 = vmatpush1.bf16.msra.mxu0 0
    %665 = vmatprep.subr.bf16.mxu0 0
    %666 = vmatpush1.bf16.msra.mxu0 0
    %667 = vmatprep.subr.bf16.mxu0 0
    %668 = vmatpush1.bf16.msra.mxu0 0
    %669 = vmatprep.subr.bf16.mxu0 0
    %670 = vmatpush1.bf16.msra.mxu0 0
    %671 = vmatprep.subr.bf16.mxu0 0
    %672 = vmatpush1.bf16.msra.mxu0 0
    %673 = vmatprep.subr.bf16.mxu0 0
    %674 = vmatpush1.bf16.msra.mxu0 0
    %675 = vmatprep.subr.bf16.mxu0 0
    %676 = vmatpush1.bf16.msra.mxu0 0
    %677 = vmatprep.subr.bf16.mxu0 0
    %678 = vmatpush1.bf16.msra.mxu0 0
    %679 = vmatprep.subr.bf16.mxu0 0
    %680 = vmatpush1.bf16.msra.mxu0 0
    %681 = vmatprep.subr.bf16.mxu0 0
    %682 = vmatpush1.bf16.msra.mxu0 0
    %683 = vmatprep.subr.bf16.mxu0 0
    %684 = vmatpush1.bf16.msra.mxu0 0
    %685 = vmatprep.mubr.bf16.mxu0 0
    %686 = vmatmul.mubr.bf16.gmra.mrb[0].mxu0 %v651
    %v687 = vpop.f32.mrb[0].mxu0
    %v688 = vadd.f32 %v96, %v687
    %v689 = vpop.f32.mrb[0].mxu0
    %v690 = vpop.f32.mrb[0].mxu0
    %v691 = vpop.f32.mrb[0].mxu0
    %692 = vdwg.mxu0
    %vm693 = vcmp.gt.f32.partialorder %v688, 0.0
    %v694 = vmul.f32 %v688, 1.442695
    %v695 = vpow.pop %v694
    %v696 = vsub.f32 %v695, 1.0
    %v697 = vsel %vm693, %v688, %v696
    %v698 = vpack.c.bf16 %v697, %v697
    %v700 = vsel %vm182, %v698, 0
    %702 = vmatprep.subr.bf16.mxu0 0
    %703 = vmatpush1.bf16.msra.mxu0 %v240
    %704 = vmatprep.subr.bf16.mxu0 0
    %705 = vmatpush1.bf16.msra.mxu0 %v241
    %706 = vmatprep.subr.bf16.mxu0 0
    %707 = vmatpush1.bf16.msra.mxu0 0
    %708 = vmatprep.subr.bf16.mxu0 0
    %709 = vmatpush1.bf16.msra.mxu0 0
    %710 = vmatprep.subr.bf16.mxu0 0
    %711 = vmatpush1.bf16.msra.mxu0 0
    %712 = vmatprep.subr.bf16.mxu0 0
    %713 = vmatpush1.bf16.msra.mxu0 0
    %714 = vmatprep.subr.bf16.mxu0 0
    %715 = vmatpush1.bf16.msra.mxu0 0
    %716 = vmatprep.subr.bf16.mxu0 0
    %717 = vmatpush1.bf16.msra.mxu0 0
    %718 = vmatprep.subr.bf16.mxu0 0
    %719 = vmatpush1.bf16.msra.mxu0 0
    %720 = vmatprep.subr.bf16.mxu0 0
    %721 = vmatpush1.bf16.msra.mxu0 0
    %722 = vmatprep.subr.bf16.mxu0 0
    %723 = vmatpush1.bf16.msra.mxu0 0
    %724 = vmatprep.subr.bf16.mxu0 0
    %725 = vmatpush1.bf16.msra.mxu0 0
    %726 = vmatprep.subr.bf16.mxu0 0
    %727 = vmatpush1.bf16.msra.mxu0 0
    %728 = vmatprep.subr.bf16.mxu0 0
    %729 = vmatpush1.bf16.msra.mxu0 0
    %730 = vmatprep.subr.bf16.mxu0 0
    %731 = vmatpush1.bf16.msra.mxu0 0
    %732 = vmatprep.subr.bf16.mxu0 0
    %733 = vmatpush1.bf16.msra.mxu0 0
    %734 = vmatprep.mubr.bf16.mxu0 0
    %735 = vmatmul.mubr.bf16.gmra.mrb[0].mxu0 %v700
    %v736 = vpop.f32.mrb[0].mxu0
    %v737 = vadd.f32 %v103, %v736
    %v738 = vpop.f32.mrb[0].mxu0
    %v739 = vpop.f32.mrb[0].mxu0
    %v740 = vpop.f32.mrb[0].mxu0
    %741 = vdwg.mxu0
    %v742 = vstv %s594
    %v743 = vmul.f32 %v742, %v737
    %v744 = vadd.f32 %v592, %v743
    %p745 = scmp.gt.s32.totalorder %s66, 4
    %s746 = scalar_select %p745, %s65, 0.0
    %s747 = smul.f32 %s65, 4.0
    %s748 = sadd.f32 %s64, %s747
    %v749 = vpack.c.bf16 %v744, %v744
    %v750 = vstv %s748
    %v751 = vmul.f32 %v750, %v82
    %v753 = vsel %vm119, %v749, 0
    %755 = vmatprep.subr.bf16.mxu0 0
    %756 = vmatpush1.bf16.msra.mxu0 %v117
    %757 = vmatprep.subr.bf16.mxu0 0
    %758 = vmatpush1.bf16.msra.mxu0 0
    %759 = vmatprep.subr.bf16.mxu0 0
    %760 = vmatpush1.bf16.msra.mxu0 0
    %761 = vmatprep.subr.bf16.mxu0 0
    %762 = vmatpush1.bf16.msra.mxu0 0
    %763 = vmatprep.subr.bf16.mxu0 0
    %764 = vmatpush1.bf16.msra.mxu0 0
    %765 = vmatprep.subr.bf16.mxu0 0
    %766 = vmatpush1.bf16.msra.mxu0 0
    %767 = vmatprep.subr.bf16.mxu0 0
    %768 = vmatpush1.bf16.msra.mxu0 0
    %769 = vmatprep.subr.bf16.mxu0 0
    %770 = vmatpush1.bf16.msra.mxu0 0
    %771 = vmatprep.subr.bf16.mxu0 0
    %772 = vmatpush1.bf16.msra.mxu0 0
    %773 = vmatprep.subr.bf16.mxu0 0
    %774 = vmatpush1.bf16.msra.mxu0 0
    %775 = vmatprep.subr.bf16.mxu0 0
    %776 = vmatpush1.bf16.msra.mxu0 0
    %777 = vmatprep.subr.bf16.mxu0 0
    %778 = vmatpush1.bf16.msra.mxu0 0
    %779 = vmatprep.subr.bf16.mxu0 0
    %780 = vmatpush1.bf16.msra.mxu0 0
    %781 = vmatprep.subr.bf16.mxu0 0
    %782 = vmatpush1.bf16.msra.mxu0 0
    %783 = vmatprep.subr.bf16.mxu0 0
    %784 = vmatpush1.bf16.msra.mxu0 0
    %785 = vmatprep.subr.bf16.mxu0 0
    %786 = vmatpush1.bf16.msra.mxu0 0
    %787 = vmatprep.mubr.bf16.mxu0 0
    %788 = vmatmul.mubr.bf16.gmra.mrb[0].mxu0 %v753
    %v789 = vpop.f32.mrb[0].mxu0
    %v790 = vadd.f32 %v751, %v789
    %v791 = vpop.f32.mrb[0].mxu0
    %v792 = vpop.f32.mrb[0].mxu0
    %v793 = vpop.f32.mrb[0].mxu0
    %794 = vdwg.mxu0
    %v795 = vadd.f32 %v790, %v89
    %vm796 = vcmp.gt.f32.partialorder %v795, 0.0
    %v797 = vmul.f32 %v795, 1.442695
    %v798 = vpow.pop %v797
    %v799 = vsub.f32 %v798, 1.0
    %v800 = vsel %vm796, %v795, %v799
    %v801 = vpack.c.bf16 %v800, %v800
    %v803 = vsel %vm182, %v801, 0
    %805 = vmatprep.subr.bf16.mxu0 0
    %806 = vmatpush1.bf16.msra.mxu0 %v178
    %807 = vmatprep.subr.bf16.mxu0 0
    %808 = vmatpush1.bf16.msra.mxu0 %v179
    %809 = vmatprep.subr.bf16.mxu0 0
    %810 = vmatpush1.bf16.msra.mxu0 0
    %811 = vmatprep.subr.bf16.mxu0 0
    %812 = vmatpush1.bf16.msra.mxu0 0
    %813 = vmatprep.subr.bf16.mxu0 0
    %814 = vmatpush1.bf16.msra.mxu0 0
    %815 = vmatprep.subr.bf16.mxu0 0
    %816 = vmatpush1.bf16.msra.mxu0 0
    %817 = vmatprep.subr.bf16.mxu0 0
    %818 = vmatpush1.bf16.msra.mxu0 0
    %819 = vmatprep.subr.bf16.mxu0 0
    %820 = vmatpush1.bf16.msra.mxu0 0
    %821 = vmatprep.subr.bf16.mxu0 0
    %822 = vmatpush1.bf16.msra.mxu0 0
    %823 = vmatprep.subr.bf16.mxu0 0
    %824 = vmatpush1.bf16.msra.mxu0 0
    %825 = vmatprep.subr.bf16.mxu0 0
    %826 = vmatpush1.bf16.msra.mxu0 0
    %827 = vmatprep.subr.bf16.mxu0 0
    %828 = vmatpush1.bf16.msra.mxu0 0
    %829 = vmatprep.subr.bf16.mxu0 0
    %830 = vmatpush1.bf16.msra.mxu0 0
    %831 = vmatprep.subr.bf16.mxu0 0
    %832 = vmatpush1.bf16.msra.mxu0 0
    %833 = vmatprep.subr.bf16.mxu0 0
    %834 = vmatpush1.bf16.msra.mxu0 0
    %835 = vmatprep.subr.bf16.mxu0 0
    %836 = vmatpush1.bf16.msra.mxu0 0
    %837 = vmatprep.mubr.bf16.mxu0 0
    %838 = vmatmul.mubr.bf16.gmra.mrb[0].mxu0 %v803
    %v839 = vpop.f32.mrb[0].mxu0
    %v840 = vadd.f32 %v96, %v839
    %v841 = vpop.f32.mrb[0].mxu0
    %v842 = vpop.f32.mrb[0].mxu0
    %v843 = vpop.f32.mrb[0].mxu0
    %844 = vdwg.mxu0
    %vm845 = vcmp.gt.f32.partialorder %v840, 0.0
    %v846 = vmul.f32 %v840, 1.442695
    %v847 = vpow.pop %v846
    %v848 = vsub.f32 %v847, 1.0
    %v849 = vsel %vm845, %v840, %v848
    %v850 = vpack.c.bf16 %v849, %v849
    %v852 = vsel %vm182, %v850, 0
    %854 = vmatprep.subr.bf16.mxu0 0
    %855 = vmatpush1.bf16.msra.mxu0 %v240
    %856 = vmatprep.subr.bf16.mxu0 0
    %857 = vmatpush1.bf16.msra.mxu0 %v241
    %858 = vmatprep.subr.bf16.mxu0 0
    %859 = vmatpush1.bf16.msra.mxu0 0
    %860 = vmatprep.subr.bf16.mxu0 0
    %861 = vmatpush1.bf16.msra.mxu0 0
    %862 = vmatprep.subr.bf16.mxu0 0
    %863 = vmatpush1.bf16.msra.mxu0 0
    %864 = vmatprep.subr.bf16.mxu0 0
    %865 = vmatpush1.bf16.msra.mxu0 0
    %866 = vmatprep.subr.bf16.mxu0 0
    %867 = vmatpush1.bf16.msra.mxu0 0
    %868 = vmatprep.subr.bf16.mxu0 0
    %869 = vmatpush1.bf16.msra.mxu0 0
    %870 = vmatprep.subr.bf16.mxu0 0
    %871 = vmatpush1.bf16.msra.mxu0 0
    %872 = vmatprep.subr.bf16.mxu0 0
    %873 = vmatpush1.bf16.msra.mxu0 0
    %874 = vmatprep.subr.bf16.mxu0 0
    %875 = vmatpush1.bf16.msra.mxu0 0
    %876 = vmatprep.subr.bf16.mxu0 0
    %877 = vmatpush1.bf16.msra.mxu0 0
    %878 = vmatprep.subr.bf16.mxu0 0
    %879 = vmatpush1.bf16.msra.mxu0 0
    %880 = vmatprep.subr.bf16.mxu0 0
    %881 = vmatpush1.bf16.msra.mxu0 0
    %882 = vmatprep.subr.bf16.mxu0 0
    %883 = vmatpush1.bf16.msra.mxu0 0
    %884 = vmatprep.subr.bf16.mxu0 0
    %885 = vmatpush1.bf16.msra.mxu0 0
    %886 = vmatprep.mubr.bf16.mxu0 0
    %887 = vmatmul.mubr.bf16.gmra.mrb[0].mxu0 %v852
    %v888 = vpop.f32.mrb[0].mxu0
    %v889 = vadd.f32 %v103, %v888
    %v890 = vpop.f32.mrb[0].mxu0
    %v891 = vpop.f32.mrb[0].mxu0
    %v892 = vpop.f32.mrb[0].mxu0
    %893 = vdwg.mxu0
    %v894 = vstv %s746
    %v895 = vmul.f32 %v894, %v889
    %v896 = vadd.f32 %v744, %v895
    %p897 = scmp.gt.s32.totalorder %s66, 5
    %s898 = scalar_select %p897, %s65, 0.0
    %s899 = smul.f32 %s65, 5.0
    %s900 = sadd.f32 %s64, %s899
    %v901 = vpack.c.bf16 %v896, %v896
    %v902 = vstv %s900
    %v903 = vmul.f32 %v902, %v82
    %v905 = vsel %vm119, %v901, 0
    %907 = vmatprep.subr.bf16.mxu0 0
    %908 = vmatpush1.bf16.msra.mxu0 %v117
    %909 = vmatprep.subr.bf16.mxu0 0
    %910 = vmatpush1.bf16.msra.mxu0 0
    %911 = vmatprep.subr.bf16.mxu0 0
    %912 = vmatpush1.bf16.msra.mxu0 0
    %913 = vmatprep.subr.bf16.mxu0 0
    %914 = vmatpush1.bf16.msra.mxu0 0
    %915 = vmatprep.subr.bf16.mxu0 0
    %916 = vmatpush1.bf16.msra.mxu0 0
    %917 = vmatprep.subr.bf16.mxu0 0
    %918 = vmatpush1.bf16.msra.mxu0 0
    %919 = vmatprep.subr.bf16.mxu0 0
    %920 = vmatpush1.bf16.msra.mxu0 0
    %921 = vmatprep.subr.bf16.mxu0 0
    %922 = vmatpush1.bf16.msra.mxu0 0
    %923 = vmatprep.subr.bf16.mxu0 0
    %924 = vmatpush1.bf16.msra.mxu0 0
    %925 = vmatprep.subr.bf16.mxu0 0
    %926 = vmatpush1.bf16.msra.mxu0 0
    %927 = vmatprep.subr.bf16.mxu0 0
    %928 = vmatpush1.bf16.msra.mxu0 0
    %929 = vmatprep.subr.bf16.mxu0 0
    %930 = vmatpush1.bf16.msra.mxu0 0
    %931 = vmatprep.subr.bf16.mxu0 0
    %932 = vmatpush1.bf16.msra.mxu0 0
    %933 = vmatprep.subr.bf16.mxu0 0
    %934 = vmatpush1.bf16.msra.mxu0 0
    %935 = vmatprep.subr.bf16.mxu0 0
    %936 = vmatpush1.bf16.msra.mxu0 0
    %937 = vmatprep.subr.bf16.mxu0 0
    %938 = vmatpush1.bf16.msra.mxu0 0
    %939 = vmatprep.mubr.bf16.mxu0 0
    %940 = vmatmul.mubr.bf16.gmra.mrb[0].mxu0 %v905
    %v941 = vpop.f32.mrb[0].mxu0
    %v942 = vadd.f32 %v903, %v941
    %v943 = vpop.f32.mrb[0].mxu0
    %v944 = vpop.f32.mrb[0].mxu0
    %v945 = vpop.f32.mrb[0].mxu0
    %946 = vdwg.mxu0
    %v947 = vadd.f32 %v942, %v89
    %vm948 = vcmp.gt.f32.partialorder %v947, 0.0
    %v949 = vmul.f32 %v947, 1.442695
    %v950 = vpow.pop %v949
    %v951 = vsub.f32 %v950, 1.0
    %v952 = vsel %vm948, %v947, %v951
    %v953 = vpack.c.bf16 %v952, %v952
    %v955 = vsel %vm182, %v953, 0
    %957 = vmatprep.subr.bf16.mxu0 0
    %958 = vmatpush1.bf16.msra.mxu0 %v178
    %959 = vmatprep.subr.bf16.mxu0 0
    %960 = vmatpush1.bf16.msra.mxu0 %v179
    %961 = vmatprep.subr.bf16.mxu0 0
    %962 = vmatpush1.bf16.msra.mxu0 0
    %963 = vmatprep.subr.bf16.mxu0 0
    %964 = vmatpush1.bf16.msra.mxu0 0
    %965 = vmatprep.subr.bf16.mxu0 0
    %966 = vmatpush1.bf16.msra.mxu0 0
    %967 = vmatprep.subr.bf16.mxu0 0
    %968 = vmatpush1.bf16.msra.mxu0 0
    %969 = vmatprep.subr.bf16.mxu0 0
    %970 = vmatpush1.bf16.msra.mxu0 0
    %971 = vmatprep.subr.bf16.mxu0 0
    %972 = vmatpush1.bf16.msra.mxu0 0
    %973 = vmatprep.subr.bf16.mxu0 0
    %974 = vmatpush1.bf16.msra.mxu0 0
    %975 = vmatprep.subr.bf16.mxu0 0
    %976 = vmatpush1.bf16.msra.mxu0 0
    %977 = vmatprep.subr.bf16.mxu0 0
    %978 = vmatpush1.bf16.msra.mxu0 0
    %979 = vmatprep.subr.bf16.mxu0 0
    %980 = vmatpush1.bf16.msra.mxu0 0
    %981 = vmatprep.subr.bf16.mxu0 0
    %982 = vmatpush1.bf16.msra.mxu0 0
    %983 = vmatprep.subr.bf16.mxu0 0
    %984 = vmatpush1.bf16.msra.mxu0 0
    %985 = vmatprep.subr.bf16.mxu0 0
    %986 = vmatpush1.bf16.msra.mxu0 0
    %987 = vmatprep.subr.bf16.mxu0 0
    %988 = vmatpush1.bf16.msra.mxu0 0
    %989 = vmatprep.mubr.bf16.mxu0 0
    %990 = vmatmul.mubr.bf16.gmra.mrb[0].mxu0 %v955
    %v991 = vpop.f32.mrb[0].mxu0
    %v992 = vadd.f32 %v96, %v991
    %v993 = vpop.f32.mrb[0].mxu0
    %v994 = vpop.f32.mrb[0].mxu0
    %v995 = vpop.f32.mrb[0].mxu0
    %996 = vdwg.mxu0
    %vm997 = vcmp.gt.f32.partialorder %v992, 0.0
    %v998 = vmul.f32 %v992, 1.442695
    %v999 = vpow.pop %v998
    %v1000 = vsub.f32 %v999, 1.0
    %v1001 = vsel %vm997, %v992, %v1000
    %v1002 = vpack.c.bf16 %v1001, %v1001
    %v1004 = vsel %vm182, %v1002, 0
    %1006 = vmatprep.subr.bf16.mxu0 0
    %1007 = vmatpush1.bf16.msra.mxu0 %v240
    %1008 = vmatprep.subr.bf16.mxu0 0
    %1009 = vmatpush1.bf16.msra.mxu0 %v241
    %1010 = vmatprep.subr.bf16.mxu0 0
    %1011 = vmatpush1.bf16.msra.mxu0 0
    %1012 = vmatprep.subr.bf16.mxu0 0
    %1013 = vmatpush1.bf16.msra.mxu0 0
    %1014 = vmatprep.subr.bf16.mxu0 0
    %1015 = vmatpush1.bf16.msra.mxu0 0
    %1016 = vmatprep.subr.bf16.mxu0 0
    %1017 = vmatpush1.bf16.msra.mxu0 0
    %1018 = vmatprep.subr.bf16.mxu0 0
    %1019 = vmatpush1.bf16.msra.mxu0 0
    %1020 = vmatprep.subr.bf16.mxu0 0
    %1021 = vmatpush1.bf16.msra.mxu0 0
    %1022 = vmatprep.subr.bf16.mxu0 0
    %1023 = vmatpush1.bf16.msra.mxu0 0
    %1024 = vmatprep.subr.bf16.mxu0 0
    %1025 = vmatpush1.bf16.msra.mxu0 0
    %1026 = vmatprep.subr.bf16.mxu0 0
    %1027 = vmatpush1.bf16.msra.mxu0 0
    %1028 = vmatprep.subr.bf16.mxu0 0
    %1029 = vmatpush1.bf16.msra.mxu0 0
    %1030 = vmatprep.subr.bf16.mxu0 0
    %1031 = vmatpush1.bf16.msra.mxu0 0
    %1032 = vmatprep.subr.bf16.mxu0 0
    %1033 = vmatpush1.bf16.msra.mxu0 0
    %1034 = vmatprep.subr.bf16.mxu0 0
    %1035 = vmatpush1.bf16.msra.mxu0 0
    %1036 = vmatprep.subr.bf16.mxu0 0
    %1037 = vmatpush1.bf16.msra.mxu0 0
    %1038 = vmatprep.mubr.bf16.mxu0 0
    %1039 = vmatmul.mubr.bf16.gmra.mrb[0].mxu0 %v1004
    %v1040 = vpop.f32.mrb[0].mxu0
    %v1041 = vadd.f32 %v103, %v1040
    %v1042 = vpop.f32.mrb[0].mxu0
    %v1043 = vpop.f32.mrb[0].mxu0
    %v1044 = vpop.f32.mrb[0].mxu0
    %1045 = vdwg.mxu0
    %v1046 = vstv %s898
    %v1047 = vmul.f32 %v1046, %v1041
    %v1048 = vadd.f32 %v896, %v1047
    %p1049 = scmp.gt.s32.totalorder %s66, 6
    %s1050 = scalar_select %p1049, %s65, 0.0
    %s1051 = smul.f32 %s65, 6.0
    %s1052 = sadd.f32 %s64, %s1051
    %v1053 = vpack.c.bf16 %v1048, %v1048
    %v1054 = vstv %s1052
    %v1055 = vmul.f32 %v1054, %v82
    %v1057 = vsel %vm119, %v1053, 0
    %1059 = vmatprep.subr.bf16.mxu0 0
    %1060 = vmatpush1.bf16.msra.mxu0 %v117
    %1061 = vmatprep.subr.bf16.mxu0 0
    %1062 = vmatpush1.bf16.msra.mxu0 0
    %1063 = vmatprep.subr.bf16.mxu0 0
    %1064 = vmatpush1.bf16.msra.mxu0 0
    %1065 = vmatprep.subr.bf16.mxu0 0
    %1066 = vmatpush1.bf16.msra.mxu0 0
    %1067 = vmatprep.subr.bf16.mxu0 0
    %1068 = vmatpush1.bf16.msra.mxu0 0
    %1069 = vmatprep.subr.bf16.mxu0 0
    %1070 = vmatpush1.bf16.msra.mxu0 0
    %1071 = vmatprep.subr.bf16.mxu0 0
    %1072 = vmatpush1.bf16.msra.mxu0 0
    %1073 = vmatprep.subr.bf16.mxu0 0
    %1074 = vmatpush1.bf16.msra.mxu0 0
    %1075 = vmatprep.subr.bf16.mxu0 0
    %1076 = vmatpush1.bf16.msra.mxu0 0
    %1077 = vmatprep.subr.bf16.mxu0 0
    %1078 = vmatpush1.bf16.msra.mxu0 0
    %1079 = vmatprep.subr.bf16.mxu0 0
    %1080 = vmatpush1.bf16.msra.mxu0 0
    %1081 = vmatprep.subr.bf16.mxu0 0
    %1082 = vmatpush1.bf16.msra.mxu0 0
    %1083 = vmatprep.subr.bf16.mxu0 0
    %1084 = vmatpush1.bf16.msra.mxu0 0
    %1085 = vmatprep.subr.bf16.mxu0 0
    %1086 = vmatpush1.bf16.msra.mxu0 0
    %1087 = vmatprep.subr.bf16.mxu0 0
    %1088 = vmatpush1.bf16.msra.mxu0 0
    %1089 = vmatprep.subr.bf16.mxu0 0
    %1090 = vmatpush1.bf16.msra.mxu0 0
    %1091 = vmatprep.mubr.bf16.mxu0 0
    %1092 = vmatmul.mubr.bf16.gmra.mrb[0].mxu0 %v1057
    %v1093 = vpop.f32.mrb[0].mxu0
    %v1094 = vadd.f32 %v1055, %v1093
    %v1095 = vpop.f32.mrb[0].mxu0
    %v1096 = vpop.f32.mrb[0].mxu0
    %v1097 = vpop.f32.mrb[0].mxu0
    %1098 = vdwg.mxu0
    %v1099 = vadd.f32 %v1094, %v89
    %vm1100 = vcmp.gt.f32.partialorder %v1099, 0.0
    %v1101 = vmul.f32 %v1099, 1.442695
    %v1102 = vpow.pop %v1101
    %v1103 = vsub.f32 %v1102, 1.0
    %v1104 = vsel %vm1100, %v1099, %v1103
    %v1105 = vpack.c.bf16 %v1104, %v1104
    %v1107 = vsel %vm182, %v1105, 0
    %1109 = vmatprep.subr.bf16.mxu0 0
    %1110 = vmatpush1.bf16.msra.mxu0 %v178
    %1111 = vmatprep.subr.bf16.mxu0 0
    %1112 = vmatpush1.bf16.msra.mxu0 %v179
    %1113 = vmatprep.subr.bf16.mxu0 0
    %1114 = vmatpush1.bf16.msra.mxu0 0
    %1115 = vmatprep.subr.bf16.mxu0 0
    %1116 = vmatpush1.bf16.msra.mxu0 0
    %1117 = vmatprep.subr.bf16.mxu0 0
    %1118 = vmatpush1.bf16.msra.mxu0 0
    %1119 = vmatprep.subr.bf16.mxu0 0
    %1120 = vmatpush1.bf16.msra.mxu0 0
    %1121 = vmatprep.subr.bf16.mxu0 0
    %1122 = vmatpush1.bf16.msra.mxu0 0
    %1123 = vmatprep.subr.bf16.mxu0 0
    %1124 = vmatpush1.bf16.msra.mxu0 0
    %1125 = vmatprep.subr.bf16.mxu0 0
    %1126 = vmatpush1.bf16.msra.mxu0 0
    %1127 = vmatprep.subr.bf16.mxu0 0
    %1128 = vmatpush1.bf16.msra.mxu0 0
    %1129 = vmatprep.subr.bf16.mxu0 0
    %1130 = vmatpush1.bf16.msra.mxu0 0
    %1131 = vmatprep.subr.bf16.mxu0 0
    %1132 = vmatpush1.bf16.msra.mxu0 0
    %1133 = vmatprep.subr.bf16.mxu0 0
    %1134 = vmatpush1.bf16.msra.mxu0 0
    %1135 = vmatprep.subr.bf16.mxu0 0
    %1136 = vmatpush1.bf16.msra.mxu0 0
    %1137 = vmatprep.subr.bf16.mxu0 0
    %1138 = vmatpush1.bf16.msra.mxu0 0
    %1139 = vmatprep.subr.bf16.mxu0 0
    %1140 = vmatpush1.bf16.msra.mxu0 0
    %1141 = vmatprep.mubr.bf16.mxu0 0
    %1142 = vmatmul.mubr.bf16.gmra.mrb[0].mxu0 %v1107
    %v1143 = vpop.f32.mrb[0].mxu0
    %v1144 = vadd.f32 %v96, %v1143
    %v1145 = vpop.f32.mrb[0].mxu0
    %v1146 = vpop.f32.mrb[0].mxu0
    %v1147 = vpop.f32.mrb[0].mxu0
    %1148 = vdwg.mxu0
    %vm1149 = vcmp.gt.f32.partialorder %v1144, 0.0
    %v1150 = vmul.f32 %v1144, 1.442695
    %v1151 = vpow.pop %v1150
    %v1152 = vsub.f32 %v1151, 1.0
    %v1153 = vsel %vm1149, %v1144, %v1152
    %v1154 = vpack.c.bf16 %v1153, %v1153
    %v1156 = vsel %vm182, %v1154, 0
    %1158 = vmatprep.subr.bf16.mxu0 0
    %1159 = vmatpush1.bf16.msra.mxu0 %v240
    %1160 = vmatprep.subr.bf16.mxu0 0
    %1161 = vmatpush1.bf16.msra.mxu0 %v241
    %1162 = vmatprep.subr.bf16.mxu0 0
    %1163 = vmatpush1.bf16.msra.mxu0 0
    %1164 = vmatprep.subr.bf16.mxu0 0
    %1165 = vmatpush1.bf16.msra.mxu0 0
    %1166 = vmatprep.subr.bf16.mxu0 0
    %1167 = vmatpush1.bf16.msra.mxu0 0
    %1168 = vmatprep.subr.bf16.mxu0 0
    %1169 = vmatpush1.bf16.msra.mxu0 0
    %1170 = vmatprep.subr.bf16.mxu0 0
    %1171 = vmatpush1.bf16.msra.mxu0 0
    %1172 = vmatprep.subr.bf16.mxu0 0
    %1173 = vmatpush1.bf16.msra.mxu0 0
    %1174 = vmatprep.subr.bf16.mxu0 0
    %1175 = vmatpush1.bf16.msra.mxu0 0
    %1176 = vmatprep.subr.bf16.mxu0 0
    %1177 = vmatpush1.bf16.msra.mxu0 0
    %1178 = vmatprep.subr.bf16.mxu0 0
    %1179 = vmatpush1.bf16.msra.mxu0 0
    %1180 = vmatprep.subr.bf16.mxu0 0
    %1181 = vmatpush1.bf16.msra.mxu0 0
    %1182 = vmatprep.subr.bf16.mxu0 0
    %1183 = vmatpush1.bf16.msra.mxu0 0
    %1184 = vmatprep.subr.bf16.mxu0 0
    %1185 = vmatpush1.bf16.msra.mxu0 0
    %1186 = vmatprep.subr.bf16.mxu0 0
    %1187 = vmatpush1.bf16.msra.mxu0 0
    %1188 = vmatprep.subr.bf16.mxu0 0
    %1189 = vmatpush1.bf16.msra.mxu0 0
    %1190 = vmatprep.mubr.bf16.mxu0 0
    %1191 = vmatmul.mubr.bf16.gmra.mrb[0].mxu0 %v1156
    %v1192 = vpop.f32.mrb[0].mxu0
    %v1193 = vadd.f32 %v103, %v1192
    %v1194 = vpop.f32.mrb[0].mxu0
    %v1195 = vpop.f32.mrb[0].mxu0
    %v1196 = vpop.f32.mrb[0].mxu0
    %1197 = vdwg.mxu0
    %v1198 = vstv %s1050
    %v1199 = vmul.f32 %v1198, %v1193
    %v1200 = vadd.f32 %v1048, %v1199
    %p1201 = scmp.gt.s32.totalorder %s66, 7
    %s1202 = scalar_select %p1201, %s65, 0.0
    %s1203 = smul.f32 %s65, 7.0
    %s1204 = sadd.f32 %s64, %s1203
    %v1205 = vpack.c.bf16 %v1200, %v1200
    %v1206 = vstv %s1204
    %v1207 = vmul.f32 %v1206, %v82
    %v1209 = vsel %vm119, %v1205, 0
    %1211 = vmatprep.subr.bf16.mxu0 0
    %1212 = vmatpush1.bf16.msra.mxu0 %v117
    %1213 = vmatprep.subr.bf16.mxu0 0
    %1214 = vmatpush1.bf16.msra.mxu0 0
    %1215 = vmatprep.subr.bf16.mxu0 0
    %1216 = vmatpush1.bf16.msra.mxu0 0
    %1217 = vmatprep.subr.bf16.mxu0 0
    %1218 = vmatpush1.bf16.msra.mxu0 0
    %1219 = vmatprep.subr.bf16.mxu0 0
    %1220 = vmatpush1.bf16.msra.mxu0 0
    %1221 = vmatprep.subr.bf16.mxu0 0
    %1222 = vmatpush1.bf16.msra.mxu0 0
    %1223 = vmatprep.subr.bf16.mxu0 0
    %1224 = vmatpush1.bf16.msra.mxu0 0
    %1225 = vmatprep.subr.bf16.mxu0 0
    %1226 = vmatpush1.bf16.msra.mxu0 0
    %1227 = vmatprep.subr.bf16.mxu0 0
    %1228 = vmatpush1.bf16.msra.mxu0 0
    %1229 = vmatprep.subr.bf16.mxu0 0
    %1230 = vmatpush1.bf16.msra.mxu0 0
    %1231 = vmatprep.subr.bf16.mxu0 0
    %1232 = vmatpush1.bf16.msra.mxu0 0
    %1233 = vmatprep.subr.bf16.mxu0 0
    %1234 = vmatpush1.bf16.msra.mxu0 0
    %1235 = vmatprep.subr.bf16.mxu0 0
    %1236 = vmatpush1.bf16.msra.mxu0 0
    %1237 = vmatprep.subr.bf16.mxu0 0
    %1238 = vmatpush1.bf16.msra.mxu0 0
    %1239 = vmatprep.subr.bf16.mxu0 0
    %1240 = vmatpush1.bf16.msra.mxu0 0
    %1241 = vmatprep.subr.bf16.mxu0 0
    %1242 = vmatpush1.bf16.msra.mxu0 0
    %1243 = vmatprep.mubr.bf16.mxu0 0
    %1244 = vmatmul.mubr.bf16.gmra.mrb[0].mxu0 %v1209
    %v1245 = vpop.f32.mrb[0].mxu0
    %v1246 = vadd.f32 %v1207, %v1245
    %v1247 = vpop.f32.mrb[0].mxu0
    %v1248 = vpop.f32.mrb[0].mxu0
    %v1249 = vpop.f32.mrb[0].mxu0
    %1250 = vdwg.mxu0
    %v1251 = vadd.f32 %v1246, %v89
    %vm1252 = vcmp.gt.f32.partialorder %v1251, 0.0
    %v1253 = vmul.f32 %v1251, 1.442695
    %v1254 = vpow.pop %v1253
    %v1255 = vsub.f32 %v1254, 1.0
    %v1256 = vsel %vm1252, %v1251, %v1255
    %v1257 = vpack.c.bf16 %v1256, %v1256
    %v1259 = vsel %vm182, %v1257, 0
    %1261 = vmatprep.subr.bf16.mxu0 0
    %1262 = vmatpush1.bf16.msra.mxu0 %v178
    %1263 = vmatprep.subr.bf16.mxu0 0
    %1264 = vmatpush1.bf16.msra.mxu0 %v179
    %1265 = vmatprep.subr.bf16.mxu0 0
    %1266 = vmatpush1.bf16.msra.mxu0 0
    %1267 = vmatprep.subr.bf16.mxu0 0
    %1268 = vmatpush1.bf16.msra.mxu0 0
    %1269 = vmatprep.subr.bf16.mxu0 0
    %1270 = vmatpush1.bf16.msra.mxu0 0
    %1271 = vmatprep.subr.bf16.mxu0 0
    %1272 = vmatpush1.bf16.msra.mxu0 0
    %1273 = vmatprep.subr.bf16.mxu0 0
    %1274 = vmatpush1.bf16.msra.mxu0 0
    %1275 = vmatprep.subr.bf16.mxu0 0
    %1276 = vmatpush1.bf16.msra.mxu0 0
    %1277 = vmatprep.subr.bf16.mxu0 0
    %1278 = vmatpush1.bf16.msra.mxu0 0
    %1279 = vmatprep.subr.bf16.mxu0 0
    %1280 = vmatpush1.bf16.msra.mxu0 0
    %1281 = vmatprep.subr.bf16.mxu0 0
    %1282 = vmatpush1.bf16.msra.mxu0 0
    %1283 = vmatprep.subr.bf16.mxu0 0
    %1284 = vmatpush1.bf16.msra.mxu0 0
    %1285 = vmatprep.subr.bf16.mxu0 0
    %1286 = vmatpush1.bf16.msra.mxu0 0
    %1287 = vmatprep.subr.bf16.mxu0 0
    %1288 = vmatpush1.bf16.msra.mxu0 0
    %1289 = vmatprep.subr.bf16.mxu0 0
    %1290 = vmatpush1.bf16.msra.mxu0 0
    %1291 = vmatprep.subr.bf16.mxu0 0
    %1292 = vmatpush1.bf16.msra.mxu0 0
    %1293 = vmatprep.mubr.bf16.mxu0 0
    %1294 = vmatmul.mubr.bf16.gmra.mrb[0].mxu0 %v1259
    %v1295 = vpop.f32.mrb[0].mxu0
    %v1296 = vadd.f32 %v96, %v1295
    %v1297 = vpop.f32.mrb[0].mxu0
    %v1298 = vpop.f32.mrb[0].mxu0
    %v1299 = vpop.f32.mrb[0].mxu0
    %1300 = vdwg.mxu0
    %vm1301 = vcmp.gt.f32.partialorder %v1296, 0.0
    %v1302 = vmul.f32 %v1296, 1.442695
    %v1303 = vpow.pop %v1302
    %v1304 = vsub.f32 %v1303, 1.0
    %v1305 = vsel %vm1301, %v1296, %v1304
    %v1306 = vpack.c.bf16 %v1305, %v1305
    %v1308 = vsel %vm182, %v1306, 0
    %1310 = vmatprep.subr.bf16.mxu0 0
    %1311 = vmatpush1.bf16.msra.mxu0 %v240
    %1312 = vmatprep.subr.bf16.mxu0 0
    %1313 = vmatpush1.bf16.msra.mxu0 %v241
    %1314 = vmatprep.subr.bf16.mxu0 0
    %1315 = vmatpush1.bf16.msra.mxu0 0
    %1316 = vmatprep.subr.bf16.mxu0 0
    %1317 = vmatpush1.bf16.msra.mxu0 0
    %1318 = vmatprep.subr.bf16.mxu0 0
    %1319 = vmatpush1.bf16.msra.mxu0 0
    %1320 = vmatprep.subr.bf16.mxu0 0
    %1321 = vmatpush1.bf16.msra.mxu0 0
    %1322 = vmatprep.subr.bf16.mxu0 0
    %1323 = vmatpush1.bf16.msra.mxu0 0
    %1324 = vmatprep.subr.bf16.mxu0 0
    %1325 = vmatpush1.bf16.msra.mxu0 0
    %1326 = vmatprep.subr.bf16.mxu0 0
    %1327 = vmatpush1.bf16.msra.mxu0 0
    %1328 = vmatprep.subr.bf16.mxu0 0
    %1329 = vmatpush1.bf16.msra.mxu0 0
    %1330 = vmatprep.subr.bf16.mxu0 0
    %1331 = vmatpush1.bf16.msra.mxu0 0
    %1332 = vmatprep.subr.bf16.mxu0 0
    %1333 = vmatpush1.bf16.msra.mxu0 0
    %1334 = vmatprep.subr.bf16.mxu0 0
    %1335 = vmatpush1.bf16.msra.mxu0 0
    %1336 = vmatprep.subr.bf16.mxu0 0
    %1337 = vmatpush1.bf16.msra.mxu0 0
    %1338 = vmatprep.subr.bf16.mxu0 0
    %1339 = vmatpush1.bf16.msra.mxu0 0
    %1340 = vmatprep.subr.bf16.mxu0 0
    %1341 = vmatpush1.bf16.msra.mxu0 0
    %1342 = vmatprep.mubr.bf16.mxu0 0
    %1343 = vmatmul.mubr.bf16.gmra.mrb[0].mxu0 %v1308
    %v1344 = vpop.f32.mrb[0].mxu0
    %v1345 = vadd.f32 %v103, %v1344
    %v1346 = vpop.f32.mrb[0].mxu0
    %v1347 = vpop.f32.mrb[0].mxu0
    %v1348 = vpop.f32.mrb[0].mxu0
    %1349 = vdwg.mxu0
    %v1350 = vstv %s1202
    %v1351 = vmul.f32 %v1350, %v1345
    %v1352 = vadd.f32 %v1200, %v1351
    %p1353 = scmp.gt.s32.totalorder %s66, 8
    %s1354 = scalar_select %p1353, %s65, 0.0
    %s1355 = smul.f32 %s65, 8.0
    %s1356 = sadd.f32 %s64, %s1355
    %v1357 = vpack.c.bf16 %v1352, %v1352
    %v1358 = vstv %s1356
    %v1359 = vmul.f32 %v1358, %v82
    %v1361 = vsel %vm119, %v1357, 0
    %1363 = vmatprep.subr.bf16.mxu0 0
    %1364 = vmatpush1.bf16.msra.mxu0 %v117
    %1365 = vmatprep.subr.bf16.mxu0 0
    %1366 = vmatpush1.bf16.msra.mxu0 0
    %1367 = vmatprep.subr.bf16.mxu0 0
    %1368 = vmatpush1.bf16.msra.mxu0 0
    %1369 = vmatprep.subr.bf16.mxu0 0
    %1370 = vmatpush1.bf16.msra.mxu0 0
    %1371 = vmatprep.subr.bf16.mxu0 0
    %1372 = vmatpush1.bf16.msra.mxu0 0
    %1373 = vmatprep.subr.bf16.mxu0 0
    %1374 = vmatpush1.bf16.msra.mxu0 0
    %1375 = vmatprep.subr.bf16.mxu0 0
    %1376 = vmatpush1.bf16.msra.mxu0 0
    %1377 = vmatprep.subr.bf16.mxu0 0
    %1378 = vmatpush1.bf16.msra.mxu0 0
    %1379 = vmatprep.subr.bf16.mxu0 0
    %1380 = vmatpush1.bf16.msra.mxu0 0
    %1381 = vmatprep.subr.bf16.mxu0 0
    %1382 = vmatpush1.bf16.msra.mxu0 0
    %1383 = vmatprep.subr.bf16.mxu0 0
    %1384 = vmatpush1.bf16.msra.mxu0 0
    %1385 = vmatprep.subr.bf16.mxu0 0
    %1386 = vmatpush1.bf16.msra.mxu0 0
    %1387 = vmatprep.subr.bf16.mxu0 0
    %1388 = vmatpush1.bf16.msra.mxu0 0
    %1389 = vmatprep.subr.bf16.mxu0 0
    %1390 = vmatpush1.bf16.msra.mxu0 0
    %1391 = vmatprep.subr.bf16.mxu0 0
    %1392 = vmatpush1.bf16.msra.mxu0 0
    %1393 = vmatprep.subr.bf16.mxu0 0
    %1394 = vmatpush1.bf16.msra.mxu0 0
    %1395 = vmatprep.mubr.bf16.mxu0 0
    %1396 = vmatmul.mubr.bf16.gmra.mrb[0].mxu0 %v1361
    %v1397 = vpop.f32.mrb[0].mxu0
    %v1398 = vadd.f32 %v1359, %v1397
    %v1399 = vpop.f32.mrb[0].mxu0
    %v1400 = vpop.f32.mrb[0].mxu0
    %v1401 = vpop.f32.mrb[0].mxu0
    %1402 = vdwg.mxu0
    %v1403 = vadd.f32 %v1398, %v89
    %vm1404 = vcmp.gt.f32.partialorder %v1403, 0.0
    %v1405 = vmul.f32 %v1403, 1.442695
    %v1406 = vpow.pop %v1405
    %v1407 = vsub.f32 %v1406, 1.0
    %v1408 = vsel %vm1404, %v1403, %v1407
    %v1409 = vpack.c.bf16 %v1408, %v1408
    %v1411 = vsel %vm182, %v1409, 0
    %1413 = vmatprep.subr.bf16.mxu0 0
    %1414 = vmatpush1.bf16.msra.mxu0 %v178
    %1415 = vmatprep.subr.bf16.mxu0 0
    %1416 = vmatpush1.bf16.msra.mxu0 %v179
    %1417 = vmatprep.subr.bf16.mxu0 0
    %1418 = vmatpush1.bf16.msra.mxu0 0
    %1419 = vmatprep.subr.bf16.mxu0 0
    %1420 = vmatpush1.bf16.msra.mxu0 0
    %1421 = vmatprep.subr.bf16.mxu0 0
    %1422 = vmatpush1.bf16.msra.mxu0 0
    %1423 = vmatprep.subr.bf16.mxu0 0
    %1424 = vmatpush1.bf16.msra.mxu0 0
    %1425 = vmatprep.subr.bf16.mxu0 0
    %1426 = vmatpush1.bf16.msra.mxu0 0
    %1427 = vmatprep.subr.bf16.mxu0 0
    %1428 = vmatpush1.bf16.msra.mxu0 0
    %1429 = vmatprep.subr.bf16.mxu0 0
    %1430 = vmatpush1.bf16.msra.mxu0 0
    %1431 = vmatprep.subr.bf16.mxu0 0
    %1432 = vmatpush1.bf16.msra.mxu0 0
    %1433 = vmatprep.subr.bf16.mxu0 0
    %1434 = vmatpush1.bf16.msra.mxu0 0
    %1435 = vmatprep.subr.bf16.mxu0 0
    %1436 = vmatpush1.bf16.msra.mxu0 0
    %1437 = vmatprep.subr.bf16.mxu0 0
    %1438 = vmatpush1.bf16.msra.mxu0 0
    %1439 = vmatprep.subr.bf16.mxu0 0
    %1440 = vmatpush1.bf16.msra.mxu0 0
    %1441 = vmatprep.subr.bf16.mxu0 0
    %1442 = vmatpush1.bf16.msra.mxu0 0
    %1443 = vmatprep.subr.bf16.mxu0 0
    %1444 = vmatpush1.bf16.msra.mxu0 0
    %1445 = vmatprep.mubr.bf16.mxu0 0
    %1446 = vmatmul.mubr.bf16.gmra.mrb[0].mxu0 %v1411
    %v1447 = vpop.f32.mrb[0].mxu0
    %v1448 = vadd.f32 %v96, %v1447
    %v1449 = vpop.f32.mrb[0].mxu0
    %v1450 = vpop.f32.mrb[0].mxu0
    %v1451 = vpop.f32.mrb[0].mxu0
    %1452 = vdwg.mxu0
    %vm1453 = vcmp.gt.f32.partialorder %v1448, 0.0
    %v1454 = vmul.f32 %v1448, 1.442695
    %v1455 = vpow.pop %v1454
    %v1456 = vsub.f32 %v1455, 1.0
    %v1457 = vsel %vm1453, %v1448, %v1456
    %v1458 = vpack.c.bf16 %v1457, %v1457
    %v1460 = vsel %vm182, %v1458, 0
    %1462 = vmatprep.subr.bf16.mxu0 0
    %1463 = vmatpush1.bf16.msra.mxu0 %v240
    %1464 = vmatprep.subr.bf16.mxu0 0
    %1465 = vmatpush1.bf16.msra.mxu0 %v241
    %1466 = vmatprep.subr.bf16.mxu0 0
    %1467 = vmatpush1.bf16.msra.mxu0 0
    %1468 = vmatprep.subr.bf16.mxu0 0
    %1469 = vmatpush1.bf16.msra.mxu0 0
    %1470 = vmatprep.subr.bf16.mxu0 0
    %1471 = vmatpush1.bf16.msra.mxu0 0
    %1472 = vmatprep.subr.bf16.mxu0 0
    %1473 = vmatpush1.bf16.msra.mxu0 0
    %1474 = vmatprep.subr.bf16.mxu0 0
    %1475 = vmatpush1.bf16.msra.mxu0 0
    %1476 = vmatprep.subr.bf16.mxu0 0
    %1477 = vmatpush1.bf16.msra.mxu0 0
    %1478 = vmatprep.subr.bf16.mxu0 0
    %1479 = vmatpush1.bf16.msra.mxu0 0
    %1480 = vmatprep.subr.bf16.mxu0 0
    %1481 = vmatpush1.bf16.msra.mxu0 0
    %1482 = vmatprep.subr.bf16.mxu0 0
    %1483 = vmatpush1.bf16.msra.mxu0 0
    %1484 = vmatprep.subr.bf16.mxu0 0
    %1485 = vmatpush1.bf16.msra.mxu0 0
    %1486 = vmatprep.subr.bf16.mxu0 0
    %1487 = vmatpush1.bf16.msra.mxu0 0
    %1488 = vmatprep.subr.bf16.mxu0 0
    %1489 = vmatpush1.bf16.msra.mxu0 0
    %1490 = vmatprep.subr.bf16.mxu0 0
    %1491 = vmatpush1.bf16.msra.mxu0 0
    %1492 = vmatprep.subr.bf16.mxu0 0
    %1493 = vmatpush1.bf16.msra.mxu0 0
    %1494 = vmatprep.mubr.bf16.mxu0 0
    %1495 = vmatmul.mubr.bf16.gmra.mrb[0].mxu0 %v1460
    %v1496 = vpop.f32.mrb[0].mxu0
    %v1497 = vadd.f32 %v103, %v1496
    %v1498 = vpop.f32.mrb[0].mxu0
    %v1499 = vpop.f32.mrb[0].mxu0
    %v1500 = vpop.f32.mrb[0].mxu0
    %1501 = vdwg.mxu0
    %v1502 = vstv %s1354
    %v1503 = vmul.f32 %v1502, %v1497
    %v1504 = vadd.f32 %v1352, %v1503
    %p1505 = scmp.gt.s32.totalorder %s66, 9
    %s1506 = scalar_select %p1505, %s65, 0.0
    %s1507 = smul.f32 %s65, 9.0
    %s1508 = sadd.f32 %s64, %s1507
    %v1509 = vpack.c.bf16 %v1504, %v1504
    %v1510 = vstv %s1508
    %v1511 = vmul.f32 %v1510, %v82
    %v1513 = vsel %vm119, %v1509, 0
    %1515 = vmatprep.subr.bf16.mxu0 0
    %1516 = vmatpush1.bf16.msra.mxu0 %v117
    %1517 = vmatprep.subr.bf16.mxu0 0
    %1518 = vmatpush1.bf16.msra.mxu0 0
    %1519 = vmatprep.subr.bf16.mxu0 0
    %1520 = vmatpush1.bf16.msra.mxu0 0
    %1521 = vmatprep.subr.bf16.mxu0 0
    %1522 = vmatpush1.bf16.msra.mxu0 0
    %1523 = vmatprep.subr.bf16.mxu0 0
    %1524 = vmatpush1.bf16.msra.mxu0 0
    %1525 = vmatprep.subr.bf16.mxu0 0
    %1526 = vmatpush1.bf16.msra.mxu0 0
    %1527 = vmatprep.subr.bf16.mxu0 0
    %1528 = vmatpush1.bf16.msra.mxu0 0
    %1529 = vmatprep.subr.bf16.mxu0 0
    %1530 = vmatpush1.bf16.msra.mxu0 0
    %1531 = vmatprep.subr.bf16.mxu0 0
    %1532 = vmatpush1.bf16.msra.mxu0 0
    %1533 = vmatprep.subr.bf16.mxu0 0
    %1534 = vmatpush1.bf16.msra.mxu0 0
    %1535 = vmatprep.subr.bf16.mxu0 0
    %1536 = vmatpush1.bf16.msra.mxu0 0
    %1537 = vmatprep.subr.bf16.mxu0 0
    %1538 = vmatpush1.bf16.msra.mxu0 0
    %1539 = vmatprep.subr.bf16.mxu0 0
    %1540 = vmatpush1.bf16.msra.mxu0 0
    %1541 = vmatprep.subr.bf16.mxu0 0
    %1542 = vmatpush1.bf16.msra.mxu0 0
    %1543 = vmatprep.subr.bf16.mxu0 0
    %1544 = vmatpush1.bf16.msra.mxu0 0
    %1545 = vmatprep.subr.bf16.mxu0 0
    %1546 = vmatpush1.bf16.msra.mxu0 0
    %1547 = vmatprep.mubr.bf16.mxu0 0
    %1548 = vmatmul.mubr.bf16.gmra.mrb[0].mxu0 %v1513
    %v1549 = vpop.f32.mrb[0].mxu0
    %v1550 = vadd.f32 %v1511, %v1549
    %v1551 = vpop.f32.mrb[0].mxu0
    %v1552 = vpop.f32.mrb[0].mxu0
    %v1553 = vpop.f32.mrb[0].mxu0
    %1554 = vdwg.mxu0
    %v1555 = vadd.f32 %v1550, %v89
    %vm1556 = vcmp.gt.f32.partialorder %v1555, 0.0
    %v1557 = vmul.f32 %v1555, 1.442695
    %v1558 = vpow.pop %v1557
    %v1559 = vsub.f32 %v1558, 1.0
    %v1560 = vsel %vm1556, %v1555, %v1559
    %v1561 = vpack.c.bf16 %v1560, %v1560
    %v1563 = vsel %vm182, %v1561, 0
    %1565 = vmatprep.subr.bf16.mxu0 0
    %1566 = vmatpush1.bf16.msra.mxu0 %v178
    %1567 = vmatprep.subr.bf16.mxu0 0
    %1568 = vmatpush1.bf16.msra.mxu0 %v179
    %1569 = vmatprep.subr.bf16.mxu0 0
    %1570 = vmatpush1.bf16.msra.mxu0 0
    %1571 = vmatprep.subr.bf16.mxu0 0
    %1572 = vmatpush1.bf16.msra.mxu0 0
    %1573 = vmatprep.subr.bf16.mxu0 0
    %1574 = vmatpush1.bf16.msra.mxu0 0
    %1575 = vmatprep.subr.bf16.mxu0 0
    %1576 = vmatpush1.bf16.msra.mxu0 0
    %1577 = vmatprep.subr.bf16.mxu0 0
    %1578 = vmatpush1.bf16.msra.mxu0 0
    %1579 = vmatprep.subr.bf16.mxu0 0
    %1580 = vmatpush1.bf16.msra.mxu0 0
    %1581 = vmatprep.subr.bf16.mxu0 0
    %1582 = vmatpush1.bf16.msra.mxu0 0
    %1583 = vmatprep.subr.bf16.mxu0 0
    %1584 = vmatpush1.bf16.msra.mxu0 0
    %1585 = vmatprep.subr.bf16.mxu0 0
    %1586 = vmatpush1.bf16.msra.mxu0 0
    %1587 = vmatprep.subr.bf16.mxu0 0
    %1588 = vmatpush1.bf16.msra.mxu0 0
    %1589 = vmatprep.subr.bf16.mxu0 0
    %1590 = vmatpush1.bf16.msra.mxu0 0
    %1591 = vmatprep.subr.bf16.mxu0 0
    %1592 = vmatpush1.bf16.msra.mxu0 0
    %1593 = vmatprep.subr.bf16.mxu0 0
    %1594 = vmatpush1.bf16.msra.mxu0 0
    %1595 = vmatprep.subr.bf16.mxu0 0
    %1596 = vmatpush1.bf16.msra.mxu0 0
    %1597 = vmatprep.mubr.bf16.mxu0 0
    %1598 = vmatmul.mubr.bf16.gmra.mrb[0].mxu0 %v1563
    %v1599 = vpop.f32.mrb[0].mxu0
    %v1600 = vadd.f32 %v96, %v1599
    %v1601 = vpop.f32.mrb[0].mxu0
    %v1602 = vpop.f32.mrb[0].mxu0
    %v1603 = vpop.f32.mrb[0].mxu0
    %1604 = vdwg.mxu0
    %vm1605 = vcmp.gt.f32.partialorder %v1600, 0.0
    %v1606 = vmul.f32 %v1600, 1.442695
    %v1607 = vpow.pop %v1606
    %v1608 = vsub.f32 %v1607, 1.0
    %v1609 = vsel %vm1605, %v1600, %v1608
    %v1610 = vpack.c.bf16 %v1609, %v1609
    %v1612 = vsel %vm182, %v1610, 0
    %1614 = vmatprep.subr.bf16.mxu0 0
    %1615 = vmatpush1.bf16.msra.mxu0 %v240
    %1616 = vmatprep.subr.bf16.mxu0 0
    %1617 = vmatpush1.bf16.msra.mxu0 %v241
    %1618 = vmatprep.subr.bf16.mxu0 0
    %1619 = vmatpush1.bf16.msra.mxu0 0
    %1620 = vmatprep.subr.bf16.mxu0 0
    %1621 = vmatpush1.bf16.msra.mxu0 0
    %1622 = vmatprep.subr.bf16.mxu0 0
    %1623 = vmatpush1.bf16.msra.mxu0 0
    %1624 = vmatprep.subr.bf16.mxu0 0
    %1625 = vmatpush1.bf16.msra.mxu0 0
    %1626 = vmatprep.subr.bf16.mxu0 0
    %1627 = vmatpush1.bf16.msra.mxu0 0
    %1628 = vmatprep.subr.bf16.mxu0 0
    %1629 = vmatpush1.bf16.msra.mxu0 0
    %1630 = vmatprep.subr.bf16.mxu0 0
    %1631 = vmatpush1.bf16.msra.mxu0 0
    %1632 = vmatprep.subr.bf16.mxu0 0
    %1633 = vmatpush1.bf16.msra.mxu0 0
    %1634 = vmatprep.subr.bf16.mxu0 0
    %1635 = vmatpush1.bf16.msra.mxu0 0
    %1636 = vmatprep.subr.bf16.mxu0 0
    %1637 = vmatpush1.bf16.msra.mxu0 0
    %1638 = vmatprep.subr.bf16.mxu0 0
    %1639 = vmatpush1.bf16.msra.mxu0 0
    %1640 = vmatprep.subr.bf16.mxu0 0
    %1641 = vmatpush1.bf16.msra.mxu0 0
    %1642 = vmatprep.subr.bf16.mxu0 0
    %1643 = vmatpush1.bf16.msra.mxu0 0
    %1644 = vmatprep.subr.bf16.mxu0 0
    %1645 = vmatpush1.bf16.msra.mxu0 0
    %1646 = vmatprep.mubr.bf16.mxu0 0
    %1647 = vmatmul.mubr.bf16.gmra.mrb[0].mxu0 %v1612
    %v1648 = vpop.f32.mrb[0].mxu0
    %v1649 = vadd.f32 %v103, %v1648
    %v1650 = vpop.f32.mrb[0].mxu0
    %v1651 = vpop.f32.mrb[0].mxu0
    %v1652 = vpop.f32.mrb[0].mxu0
    %1653 = vdwg.mxu0
    %v1654 = vstv %s1506
    %v1655 = vmul.f32 %v1654, %v1649
    %v1656 = vadd.f32 %v1504, %v1655
    %p1657 = scmp.gt.s32.totalorder %s66, 10
    %s1658 = scalar_select %p1657, %s65, 0.0
    %s1659 = smul.f32 %s65, 10.0
    %s1660 = sadd.f32 %s64, %s1659
    %v1661 = vpack.c.bf16 %v1656, %v1656
    %v1662 = vstv %s1660
    %v1663 = vmul.f32 %v1662, %v82
    %v1665 = vsel %vm119, %v1661, 0
    %1667 = vmatprep.subr.bf16.mxu0 0
    %1668 = vmatpush1.bf16.msra.mxu0 %v117
    %1669 = vmatprep.subr.bf16.mxu0 0
    %1670 = vmatpush1.bf16.msra.mxu0 0
    %1671 = vmatprep.subr.bf16.mxu0 0
    %1672 = vmatpush1.bf16.msra.mxu0 0
    %1673 = vmatprep.subr.bf16.mxu0 0
    %1674 = vmatpush1.bf16.msra.mxu0 0
    %1675 = vmatprep.subr.bf16.mxu0 0
    %1676 = vmatpush1.bf16.msra.mxu0 0
    %1677 = vmatprep.subr.bf16.mxu0 0
    %1678 = vmatpush1.bf16.msra.mxu0 0
    %1679 = vmatprep.subr.bf16.mxu0 0
    %1680 = vmatpush1.bf16.msra.mxu0 0
    %1681 = vmatprep.subr.bf16.mxu0 0
    %1682 = vmatpush1.bf16.msra.mxu0 0
    %1683 = vmatprep.subr.bf16.mxu0 0
    %1684 = vmatpush1.bf16.msra.mxu0 0
    %1685 = vmatprep.subr.bf16.mxu0 0
    %1686 = vmatpush1.bf16.msra.mxu0 0
    %1687 = vmatprep.subr.bf16.mxu0 0
    %1688 = vmatpush1.bf16.msra.mxu0 0
    %1689 = vmatprep.subr.bf16.mxu0 0
    %1690 = vmatpush1.bf16.msra.mxu0 0
    %1691 = vmatprep.subr.bf16.mxu0 0
    %1692 = vmatpush1.bf16.msra.mxu0 0
    %1693 = vmatprep.subr.bf16.mxu0 0
    %1694 = vmatpush1.bf16.msra.mxu0 0
    %1695 = vmatprep.subr.bf16.mxu0 0
    %1696 = vmatpush1.bf16.msra.mxu0 0
    %1697 = vmatprep.subr.bf16.mxu0 0
    %1698 = vmatpush1.bf16.msra.mxu0 0
    %1699 = vmatprep.mubr.bf16.mxu0 0
    %1700 = vmatmul.mubr.bf16.gmra.mrb[0].mxu0 %v1665
    %v1701 = vpop.f32.mrb[0].mxu0
    %v1702 = vadd.f32 %v1663, %v1701
    %v1703 = vpop.f32.mrb[0].mxu0
    %v1704 = vpop.f32.mrb[0].mxu0
    %v1705 = vpop.f32.mrb[0].mxu0
    %1706 = vdwg.mxu0
    %v1707 = vadd.f32 %v1702, %v89
    %vm1708 = vcmp.gt.f32.partialorder %v1707, 0.0
    %v1709 = vmul.f32 %v1707, 1.442695
    %v1710 = vpow.pop %v1709
    %v1711 = vsub.f32 %v1710, 1.0
    %v1712 = vsel %vm1708, %v1707, %v1711
    %v1713 = vpack.c.bf16 %v1712, %v1712
    %v1715 = vsel %vm182, %v1713, 0
    %1717 = vmatprep.subr.bf16.mxu0 0
    %1718 = vmatpush1.bf16.msra.mxu0 %v178
    %1719 = vmatprep.subr.bf16.mxu0 0
    %1720 = vmatpush1.bf16.msra.mxu0 %v179
    %1721 = vmatprep.subr.bf16.mxu0 0
    %1722 = vmatpush1.bf16.msra.mxu0 0
    %1723 = vmatprep.subr.bf16.mxu0 0
    %1724 = vmatpush1.bf16.msra.mxu0 0
    %1725 = vmatprep.subr.bf16.mxu0 0
    %1726 = vmatpush1.bf16.msra.mxu0 0
    %1727 = vmatprep.subr.bf16.mxu0 0
    %1728 = vmatpush1.bf16.msra.mxu0 0
    %1729 = vmatprep.subr.bf16.mxu0 0
    %1730 = vmatpush1.bf16.msra.mxu0 0
    %1731 = vmatprep.subr.bf16.mxu0 0
    %1732 = vmatpush1.bf16.msra.mxu0 0
    %1733 = vmatprep.subr.bf16.mxu0 0
    %1734 = vmatpush1.bf16.msra.mxu0 0
    %1735 = vmatprep.subr.bf16.mxu0 0
    %1736 = vmatpush1.bf16.msra.mxu0 0
    %1737 = vmatprep.subr.bf16.mxu0 0
    %1738 = vmatpush1.bf16.msra.mxu0 0
    %1739 = vmatprep.subr.bf16.mxu0 0
    %1740 = vmatpush1.bf16.msra.mxu0 0
    %1741 = vmatprep.subr.bf16.mxu0 0
    %1742 = vmatpush1.bf16.msra.mxu0 0
    %1743 = vmatprep.subr.bf16.mxu0 0
    %1744 = vmatpush1.bf16.msra.mxu0 0
    %1745 = vmatprep.subr.bf16.mxu0 0
    %1746 = vmatpush1.bf16.msra.mxu0 0
    %1747 = vmatprep.subr.bf16.mxu0 0
    %1748 = vmatpush1.bf16.msra.mxu0 0
    %1749 = vmatprep.mubr.bf16.mxu0 0
    %1750 = vmatmul.mubr.bf16.gmra.mrb[0].mxu0 %v1715
    %v1751 = vpop.f32.mrb[0].mxu0
    %v1752 = vadd.f32 %v96, %v1751
    %v1753 = vpop.f32.mrb[0].mxu0
    %v1754 = vpop.f32.mrb[0].mxu0
    %v1755 = vpop.f32.mrb[0].mxu0
    %1756 = vdwg.mxu0
    %vm1757 = vcmp.gt.f32.partialorder %v1752, 0.0
    %v1758 = vmul.f32 %v1752, 1.442695
    %v1759 = vpow.pop %v1758
    %v1760 = vsub.f32 %v1759, 1.0
    %v1761 = vsel %vm1757, %v1752, %v1760
    %v1762 = vpack.c.bf16 %v1761, %v1761
    %v1764 = vsel %vm182, %v1762, 0
    %1766 = vmatprep.subr.bf16.mxu0 0
    %1767 = vmatpush1.bf16.msra.mxu0 %v240
    %1768 = vmatprep.subr.bf16.mxu0 0
    %1769 = vmatpush1.bf16.msra.mxu0 %v241
    %1770 = vmatprep.subr.bf16.mxu0 0
    %1771 = vmatpush1.bf16.msra.mxu0 0
    %1772 = vmatprep.subr.bf16.mxu0 0
    %1773 = vmatpush1.bf16.msra.mxu0 0
    %1774 = vmatprep.subr.bf16.mxu0 0
    %1775 = vmatpush1.bf16.msra.mxu0 0
    %1776 = vmatprep.subr.bf16.mxu0 0
    %1777 = vmatpush1.bf16.msra.mxu0 0
    %1778 = vmatprep.subr.bf16.mxu0 0
    %1779 = vmatpush1.bf16.msra.mxu0 0
    %1780 = vmatprep.subr.bf16.mxu0 0
    %1781 = vmatpush1.bf16.msra.mxu0 0
    %1782 = vmatprep.subr.bf16.mxu0 0
    %1783 = vmatpush1.bf16.msra.mxu0 0
    %1784 = vmatprep.subr.bf16.mxu0 0
    %1785 = vmatpush1.bf16.msra.mxu0 0
    %1786 = vmatprep.subr.bf16.mxu0 0
    %1787 = vmatpush1.bf16.msra.mxu0 0
    %1788 = vmatprep.subr.bf16.mxu0 0
    %1789 = vmatpush1.bf16.msra.mxu0 0
    %1790 = vmatprep.subr.bf16.mxu0 0
    %1791 = vmatpush1.bf16.msra.mxu0 0
    %1792 = vmatprep.subr.bf16.mxu0 0
    %1793 = vmatpush1.bf16.msra.mxu0 0
    %1794 = vmatprep.subr.bf16.mxu0 0
    %1795 = vmatpush1.bf16.msra.mxu0 0
    %1796 = vmatprep.subr.bf16.mxu0 0
    %1797 = vmatpush1.bf16.msra.mxu0 0
    %1798 = vmatprep.mubr.bf16.mxu0 0
    %1799 = vmatmul.mubr.bf16.gmra.mrb[0].mxu0 %v1764
    %v1800 = vpop.f32.mrb[0].mxu0
    %v1801 = vadd.f32 %v103, %v1800
    %v1802 = vpop.f32.mrb[0].mxu0
    %v1803 = vpop.f32.mrb[0].mxu0
    %v1804 = vpop.f32.mrb[0].mxu0
    %1805 = vdwg.mxu0
    %v1806 = vstv %s1658
    %v1807 = vmul.f32 %v1806, %v1801
    %v1808 = vadd.f32 %v1656, %v1807
    %p1809 = scmp.gt.s32.totalorder %s66, 11
    %s1810 = scalar_select %p1809, %s65, 0.0
    %s1811 = smul.f32 %s65, 11.0
    %s1812 = sadd.f32 %s64, %s1811
    %v1813 = vpack.c.bf16 %v1808, %v1808
    %v1814 = vstv %s1812
    %v1815 = vmul.f32 %v1814, %v82
    %v1817 = vsel %vm119, %v1813, 0
    %1819 = vmatprep.subr.bf16.mxu0 0
    %1820 = vmatpush1.bf16.msra.mxu0 %v117
    %1821 = vmatprep.subr.bf16.mxu0 0
    %1822 = vmatpush1.bf16.msra.mxu0 0
    %1823 = vmatprep.subr.bf16.mxu0 0
    %1824 = vmatpush1.bf16.msra.mxu0 0
    %1825 = vmatprep.subr.bf16.mxu0 0
    %1826 = vmatpush1.bf16.msra.mxu0 0
    %1827 = vmatprep.subr.bf16.mxu0 0
    %1828 = vmatpush1.bf16.msra.mxu0 0
    %1829 = vmatprep.subr.bf16.mxu0 0
    %1830 = vmatpush1.bf16.msra.mxu0 0
    %1831 = vmatprep.subr.bf16.mxu0 0
    %1832 = vmatpush1.bf16.msra.mxu0 0
    %1833 = vmatprep.subr.bf16.mxu0 0
    %1834 = vmatpush1.bf16.msra.mxu0 0
    %1835 = vmatprep.subr.bf16.mxu0 0
    %1836 = vmatpush1.bf16.msra.mxu0 0
    %1837 = vmatprep.subr.bf16.mxu0 0
    %1838 = vmatpush1.bf16.msra.mxu0 0
    %1839 = vmatprep.subr.bf16.mxu0 0
    %1840 = vmatpush1.bf16.msra.mxu0 0
    %1841 = vmatprep.subr.bf16.mxu0 0
    %1842 = vmatpush1.bf16.msra.mxu0 0
    %1843 = vmatprep.subr.bf16.mxu0 0
    %1844 = vmatpush1.bf16.msra.mxu0 0
    %1845 = vmatprep.subr.bf16.mxu0 0
    %1846 = vmatpush1.bf16.msra.mxu0 0
    %1847 = vmatprep.subr.bf16.mxu0 0
    %1848 = vmatpush1.bf16.msra.mxu0 0
    %1849 = vmatprep.subr.bf16.mxu0 0
    %1850 = vmatpush1.bf16.msra.mxu0 0
    %1851 = vmatprep.mubr.bf16.mxu0 0
    %1852 = vmatmul.mubr.bf16.gmra.mrb[0].mxu0 %v1817
    %v1853 = vpop.f32.mrb[0].mxu0
    %v1854 = vadd.f32 %v1815, %v1853
    %v1855 = vpop.f32.mrb[0].mxu0
    %v1856 = vpop.f32.mrb[0].mxu0
    %v1857 = vpop.f32.mrb[0].mxu0
    %1858 = vdwg.mxu0
    %v1859 = vadd.f32 %v1854, %v89
    %vm1860 = vcmp.gt.f32.partialorder %v1859, 0.0
    %v1861 = vmul.f32 %v1859, 1.442695
    %v1862 = vpow.pop %v1861
    %v1863 = vsub.f32 %v1862, 1.0
    %v1864 = vsel %vm1860, %v1859, %v1863
    %v1865 = vpack.c.bf16 %v1864, %v1864
    %v1867 = vsel %vm182, %v1865, 0
    %1869 = vmatprep.subr.bf16.mxu0 0
    %1870 = vmatpush1.bf16.msra.mxu0 %v178
    %1871 = vmatprep.subr.bf16.mxu0 0
    %1872 = vmatpush1.bf16.msra.mxu0 %v179
    %1873 = vmatprep.subr.bf16.mxu0 0
    %1874 = vmatpush1.bf16.msra.mxu0 0
    %1875 = vmatprep.subr.bf16.mxu0 0
    %1876 = vmatpush1.bf16.msra.mxu0 0
    %1877 = vmatprep.subr.bf16.mxu0 0
    %1878 = vmatpush1.bf16.msra.mxu0 0
    %1879 = vmatprep.subr.bf16.mxu0 0
    %1880 = vmatpush1.bf16.msra.mxu0 0
    %1881 = vmatprep.subr.bf16.mxu0 0
    %1882 = vmatpush1.bf16.msra.mxu0 0
    %1883 = vmatprep.subr.bf16.mxu0 0
    %1884 = vmatpush1.bf16.msra.mxu0 0
    %1885 = vmatprep.subr.bf16.mxu0 0
    %1886 = vmatpush1.bf16.msra.mxu0 0
    %1887 = vmatprep.subr.bf16.mxu0 0
    %1888 = vmatpush1.bf16.msra.mxu0 0
    %1889 = vmatprep.subr.bf16.mxu0 0
    %1890 = vmatpush1.bf16.msra.mxu0 0
    %1891 = vmatprep.subr.bf16.mxu0 0
    %1892 = vmatpush1.bf16.msra.mxu0 0
    %1893 = vmatprep.subr.bf16.mxu0 0
    %1894 = vmatpush1.bf16.msra.mxu0 0
    %1895 = vmatprep.subr.bf16.mxu0 0
    %1896 = vmatpush1.bf16.msra.mxu0 0
    %1897 = vmatprep.subr.bf16.mxu0 0
    %1898 = vmatpush1.bf16.msra.mxu0 0
    %1899 = vmatprep.subr.bf16.mxu0 0
    %1900 = vmatpush1.bf16.msra.mxu0 0
    %1901 = vmatprep.mubr.bf16.mxu0 0
    %1902 = vmatmul.mubr.bf16.gmra.mrb[0].mxu0 %v1867
    %v1903 = vpop.f32.mrb[0].mxu0
    %v1904 = vadd.f32 %v96, %v1903
    %v1905 = vpop.f32.mrb[0].mxu0
    %v1906 = vpop.f32.mrb[0].mxu0
    %v1907 = vpop.f32.mrb[0].mxu0
    %1908 = vdwg.mxu0
    %vm1909 = vcmp.gt.f32.partialorder %v1904, 0.0
    %v1910 = vmul.f32 %v1904, 1.442695
    %v1911 = vpow.pop %v1910
    %v1912 = vsub.f32 %v1911, 1.0
    %v1913 = vsel %vm1909, %v1904, %v1912
    %v1914 = vpack.c.bf16 %v1913, %v1913
    %v1916 = vsel %vm182, %v1914, 0
    %1918 = vmatprep.subr.bf16.mxu0 0
    %1919 = vmatpush1.bf16.msra.mxu0 %v240
    %1920 = vmatprep.subr.bf16.mxu0 0
    %1921 = vmatpush1.bf16.msra.mxu0 %v241
    %1922 = vmatprep.subr.bf16.mxu0 0
    %1923 = vmatpush1.bf16.msra.mxu0 0
    %1924 = vmatprep.subr.bf16.mxu0 0
    %1925 = vmatpush1.bf16.msra.mxu0 0
    %1926 = vmatprep.subr.bf16.mxu0 0
    %1927 = vmatpush1.bf16.msra.mxu0 0
    %1928 = vmatprep.subr.bf16.mxu0 0
    %1929 = vmatpush1.bf16.msra.mxu0 0
    %1930 = vmatprep.subr.bf16.mxu0 0
    %1931 = vmatpush1.bf16.msra.mxu0 0
    %1932 = vmatprep.subr.bf16.mxu0 0
    %1933 = vmatpush1.bf16.msra.mxu0 0
    %1934 = vmatprep.subr.bf16.mxu0 0
    %1935 = vmatpush1.bf16.msra.mxu0 0
    %1936 = vmatprep.subr.bf16.mxu0 0
    %1937 = vmatpush1.bf16.msra.mxu0 0
    %1938 = vmatprep.subr.bf16.mxu0 0
    %1939 = vmatpush1.bf16.msra.mxu0 0
    %1940 = vmatprep.subr.bf16.mxu0 0
    %1941 = vmatpush1.bf16.msra.mxu0 0
    %1942 = vmatprep.subr.bf16.mxu0 0
    %1943 = vmatpush1.bf16.msra.mxu0 0
    %1944 = vmatprep.subr.bf16.mxu0 0
    %1945 = vmatpush1.bf16.msra.mxu0 0
    %1946 = vmatprep.subr.bf16.mxu0 0
    %1947 = vmatpush1.bf16.msra.mxu0 0
    %1948 = vmatprep.subr.bf16.mxu0 0
    %1949 = vmatpush1.bf16.msra.mxu0 0
    %1950 = vmatprep.mubr.bf16.mxu0 0
    %1951 = vmatmul.mubr.bf16.gmra.mrb[0].mxu0 %v1916
    %v1952 = vpop.f32.mrb[0].mxu0
    %v1953 = vadd.f32 %v103, %v1952
    %v1954 = vpop.f32.mrb[0].mxu0
    %v1955 = vpop.f32.mrb[0].mxu0
    %v1956 = vpop.f32.mrb[0].mxu0
    %1957 = vdwg.mxu0
    %v1958 = vstv %s1810
    %v1959 = vmul.f32 %v1958, %v1953
    %v1960 = vadd.f32 %v1808, %v1959
    %p1961 = scmp.gt.s32.totalorder %s66, 12
    %s1962 = scalar_select %p1961, %s65, 0.0
    %s1963 = smul.f32 %s65, 12.0
    %s1964 = sadd.f32 %s64, %s1963
    %v1965 = vpack.c.bf16 %v1960, %v1960
    %v1966 = vstv %s1964
    %v1967 = vmul.f32 %v1966, %v82
    %v1969 = vsel %vm119, %v1965, 0
    %1971 = vmatprep.subr.bf16.mxu0 0
    %1972 = vmatpush1.bf16.msra.mxu0 %v117
    %1973 = vmatprep.subr.bf16.mxu0 0
    %1974 = vmatpush1.bf16.msra.mxu0 0
    %1975 = vmatprep.subr.bf16.mxu0 0
    %1976 = vmatpush1.bf16.msra.mxu0 0
    %1977 = vmatprep.subr.bf16.mxu0 0
    %1978 = vmatpush1.bf16.msra.mxu0 0
    %1979 = vmatprep.subr.bf16.mxu0 0
    %1980 = vmatpush1.bf16.msra.mxu0 0
    %1981 = vmatprep.subr.bf16.mxu0 0
    %1982 = vmatpush1.bf16.msra.mxu0 0
    %1983 = vmatprep.subr.bf16.mxu0 0
    %1984 = vmatpush1.bf16.msra.mxu0 0
    %1985 = vmatprep.subr.bf16.mxu0 0
    %1986 = vmatpush1.bf16.msra.mxu0 0
    %1987 = vmatprep.subr.bf16.mxu0 0
    %1988 = vmatpush1.bf16.msra.mxu0 0
    %1989 = vmatprep.subr.bf16.mxu0 0
    %1990 = vmatpush1.bf16.msra.mxu0 0
    %1991 = vmatprep.subr.bf16.mxu0 0
    %1992 = vmatpush1.bf16.msra.mxu0 0
    %1993 = vmatprep.subr.bf16.mxu0 0
    %1994 = vmatpush1.bf16.msra.mxu0 0
    %1995 = vmatprep.subr.bf16.mxu0 0
    %1996 = vmatpush1.bf16.msra.mxu0 0
    %1997 = vmatprep.subr.bf16.mxu0 0
    %1998 = vmatpush1.bf16.msra.mxu0 0
    %1999 = vmatprep.subr.bf16.mxu0 0
    %2000 = vmatpush1.bf16.msra.mxu0 0
    %2001 = vmatprep.subr.bf16.mxu0 0
    %2002 = vmatpush1.bf16.msra.mxu0 0
    %2003 = vmatprep.mubr.bf16.mxu0 0
    %2004 = vmatmul.mubr.bf16.gmra.mrb[0].mxu0 %v1969
    %v2005 = vpop.f32.mrb[0].mxu0
    %v2006 = vadd.f32 %v1967, %v2005
    %v2007 = vpop.f32.mrb[0].mxu0
    %v2008 = vpop.f32.mrb[0].mxu0
    %v2009 = vpop.f32.mrb[0].mxu0
    %2010 = vdwg.mxu0
    %v2011 = vadd.f32 %v2006, %v89
    %vm2012 = vcmp.gt.f32.partialorder %v2011, 0.0
    %v2013 = vmul.f32 %v2011, 1.442695
    %v2014 = vpow.pop %v2013
    %v2015 = vsub.f32 %v2014, 1.0
    %v2016 = vsel %vm2012, %v2011, %v2015
    %v2017 = vpack.c.bf16 %v2016, %v2016
    %v2019 = vsel %vm182, %v2017, 0
    %2021 = vmatprep.subr.bf16.mxu0 0
    %2022 = vmatpush1.bf16.msra.mxu0 %v178
    %2023 = vmatprep.subr.bf16.mxu0 0
    %2024 = vmatpush1.bf16.msra.mxu0 %v179
    %2025 = vmatprep.subr.bf16.mxu0 0
    %2026 = vmatpush1.bf16.msra.mxu0 0
    %2027 = vmatprep.subr.bf16.mxu0 0
    %2028 = vmatpush1.bf16.msra.mxu0 0
    %2029 = vmatprep.subr.bf16.mxu0 0
    %2030 = vmatpush1.bf16.msra.mxu0 0
    %2031 = vmatprep.subr.bf16.mxu0 0
    %2032 = vmatpush1.bf16.msra.mxu0 0
    %2033 = vmatprep.subr.bf16.mxu0 0
    %2034 = vmatpush1.bf16.msra.mxu0 0
    %2035 = vmatprep.subr.bf16.mxu0 0
    %2036 = vmatpush1.bf16.msra.mxu0 0
    %2037 = vmatprep.subr.bf16.mxu0 0
    %2038 = vmatpush1.bf16.msra.mxu0 0
    %2039 = vmatprep.subr.bf16.mxu0 0
    %2040 = vmatpush1.bf16.msra.mxu0 0
    %2041 = vmatprep.subr.bf16.mxu0 0
    %2042 = vmatpush1.bf16.msra.mxu0 0
    %2043 = vmatprep.subr.bf16.mxu0 0
    %2044 = vmatpush1.bf16.msra.mxu0 0
    %2045 = vmatprep.subr.bf16.mxu0 0
    %2046 = vmatpush1.bf16.msra.mxu0 0
    %2047 = vmatprep.subr.bf16.mxu0 0
    %2048 = vmatpush1.bf16.msra.mxu0 0
    %2049 = vmatprep.subr.bf16.mxu0 0
    %2050 = vmatpush1.bf16.msra.mxu0 0
    %2051 = vmatprep.subr.bf16.mxu0 0
    %2052 = vmatpush1.bf16.msra.mxu0 0
    %2053 = vmatprep.mubr.bf16.mxu0 0
    %2054 = vmatmul.mubr.bf16.gmra.mrb[0].mxu0 %v2019
    %v2055 = vpop.f32.mrb[0].mxu0
    %v2056 = vadd.f32 %v96, %v2055
    %v2057 = vpop.f32.mrb[0].mxu0
    %v2058 = vpop.f32.mrb[0].mxu0
    %v2059 = vpop.f32.mrb[0].mxu0
    %2060 = vdwg.mxu0
    %vm2061 = vcmp.gt.f32.partialorder %v2056, 0.0
    %v2062 = vmul.f32 %v2056, 1.442695
    %v2063 = vpow.pop %v2062
    %v2064 = vsub.f32 %v2063, 1.0
    %v2065 = vsel %vm2061, %v2056, %v2064
    %v2066 = vpack.c.bf16 %v2065, %v2065
    %v2068 = vsel %vm182, %v2066, 0
    %2070 = vmatprep.subr.bf16.mxu0 0
    %2071 = vmatpush1.bf16.msra.mxu0 %v240
    %2072 = vmatprep.subr.bf16.mxu0 0
    %2073 = vmatpush1.bf16.msra.mxu0 %v241
    %2074 = vmatprep.subr.bf16.mxu0 0
    %2075 = vmatpush1.bf16.msra.mxu0 0
    %2076 = vmatprep.subr.bf16.mxu0 0
    %2077 = vmatpush1.bf16.msra.mxu0 0
    %2078 = vmatprep.subr.bf16.mxu0 0
    %2079 = vmatpush1.bf16.msra.mxu0 0
    %2080 = vmatprep.subr.bf16.mxu0 0
    %2081 = vmatpush1.bf16.msra.mxu0 0
    %2082 = vmatprep.subr.bf16.mxu0 0
    %2083 = vmatpush1.bf16.msra.mxu0 0
    %2084 = vmatprep.subr.bf16.mxu0 0
    %2085 = vmatpush1.bf16.msra.mxu0 0
    %2086 = vmatprep.subr.bf16.mxu0 0
    %2087 = vmatpush1.bf16.msra.mxu0 0
    %2088 = vmatprep.subr.bf16.mxu0 0
    %2089 = vmatpush1.bf16.msra.mxu0 0
    %2090 = vmatprep.subr.bf16.mxu0 0
    %2091 = vmatpush1.bf16.msra.mxu0 0
    %2092 = vmatprep.subr.bf16.mxu0 0
    %2093 = vmatpush1.bf16.msra.mxu0 0
    %2094 = vmatprep.subr.bf16.mxu0 0
    %2095 = vmatpush1.bf16.msra.mxu0 0
    %2096 = vmatprep.subr.bf16.mxu0 0
    %2097 = vmatpush1.bf16.msra.mxu0 0
    %2098 = vmatprep.subr.bf16.mxu0 0
    %2099 = vmatpush1.bf16.msra.mxu0 0
    %2100 = vmatprep.subr.bf16.mxu0 0
    %2101 = vmatpush1.bf16.msra.mxu0 0
    %2102 = vmatprep.mubr.bf16.mxu0 0
    %2103 = vmatmul.mubr.bf16.gmra.mrb[0].mxu0 %v2068
    %v2104 = vpop.f32.mrb[0].mxu0
    %v2105 = vadd.f32 %v103, %v2104
    %v2106 = vpop.f32.mrb[0].mxu0
    %v2107 = vpop.f32.mrb[0].mxu0
    %v2108 = vpop.f32.mrb[0].mxu0
    %2109 = vdwg.mxu0
    %v2110 = vstv %s1962
    %v2111 = vmul.f32 %v2110, %v2105
    %v2112 = vadd.f32 %v1960, %v2111
    %p2113 = scmp.gt.s32.totalorder %s66, 13
    %s2114 = scalar_select %p2113, %s65, 0.0
    %s2115 = smul.f32 %s65, 13.0
    %s2116 = sadd.f32 %s64, %s2115
    %v2117 = vpack.c.bf16 %v2112, %v2112
    %v2118 = vstv %s2116
    %v2119 = vmul.f32 %v2118, %v82
    %v2121 = vsel %vm119, %v2117, 0
    %2123 = vmatprep.subr.bf16.mxu0 0
    %2124 = vmatpush1.bf16.msra.mxu0 %v117
    %2125 = vmatprep.subr.bf16.mxu0 0
    %2126 = vmatpush1.bf16.msra.mxu0 0
    %2127 = vmatprep.subr.bf16.mxu0 0
    %2128 = vmatpush1.bf16.msra.mxu0 0
    %2129 = vmatprep.subr.bf16.mxu0 0
    %2130 = vmatpush1.bf16.msra.mxu0 0
    %2131 = vmatprep.subr.bf16.mxu0 0
    %2132 = vmatpush1.bf16.msra.mxu0 0
    %2133 = vmatprep.subr.bf16.mxu0 0
    %2134 = vmatpush1.bf16.msra.mxu0 0
    %2135 = vmatprep.subr.bf16.mxu0 0
    %2136 = vmatpush1.bf16.msra.mxu0 0
    %2137 = vmatprep.subr.bf16.mxu0 0
    %2138 = vmatpush1.bf16.msra.mxu0 0
    %2139 = vmatprep.subr.bf16.mxu0 0
    %2140 = vmatpush1.bf16.msra.mxu0 0
    %2141 = vmatprep.subr.bf16.mxu0 0
    %2142 = vmatpush1.bf16.msra.mxu0 0
    %2143 = vmatprep.subr.bf16.mxu0 0
    %2144 = vmatpush1.bf16.msra.mxu0 0
    %2145 = vmatprep.subr.bf16.mxu0 0
    %2146 = vmatpush1.bf16.msra.mxu0 0
    %2147 = vmatprep.subr.bf16.mxu0 0
    %2148 = vmatpush1.bf16.msra.mxu0 0
    %2149 = vmatprep.subr.bf16.mxu0 0
    %2150 = vmatpush1.bf16.msra.mxu0 0
    %2151 = vmatprep.subr.bf16.mxu0 0
    %2152 = vmatpush1.bf16.msra.mxu0 0
    %2153 = vmatprep.subr.bf16.mxu0 0
    %2154 = vmatpush1.bf16.msra.mxu0 0
    %2155 = vmatprep.mubr.bf16.mxu0 0
    %2156 = vmatmul.mubr.bf16.gmra.mrb[0].mxu0 %v2121
    %v2157 = vpop.f32.mrb[0].mxu0
    %v2158 = vadd.f32 %v2119, %v2157
    %v2159 = vpop.f32.mrb[0].mxu0
    %v2160 = vpop.f32.mrb[0].mxu0
    %v2161 = vpop.f32.mrb[0].mxu0
    %2162 = vdwg.mxu0
    %v2163 = vadd.f32 %v2158, %v89
    %vm2164 = vcmp.gt.f32.partialorder %v2163, 0.0
    %v2165 = vmul.f32 %v2163, 1.442695
    %v2166 = vpow.pop %v2165
    %v2167 = vsub.f32 %v2166, 1.0
    %v2168 = vsel %vm2164, %v2163, %v2167
    %v2169 = vpack.c.bf16 %v2168, %v2168
    %v2171 = vsel %vm182, %v2169, 0
    %2173 = vmatprep.subr.bf16.mxu0 0
    %2174 = vmatpush1.bf16.msra.mxu0 %v178
    %2175 = vmatprep.subr.bf16.mxu0 0
    %2176 = vmatpush1.bf16.msra.mxu0 %v179
    %2177 = vmatprep.subr.bf16.mxu0 0
    %2178 = vmatpush1.bf16.msra.mxu0 0
    %2179 = vmatprep.subr.bf16.mxu0 0
    %2180 = vmatpush1.bf16.msra.mxu0 0
    %2181 = vmatprep.subr.bf16.mxu0 0
    %2182 = vmatpush1.bf16.msra.mxu0 0
    %2183 = vmatprep.subr.bf16.mxu0 0
    %2184 = vmatpush1.bf16.msra.mxu0 0
    %2185 = vmatprep.subr.bf16.mxu0 0
    %2186 = vmatpush1.bf16.msra.mxu0 0
    %2187 = vmatprep.subr.bf16.mxu0 0
    %2188 = vmatpush1.bf16.msra.mxu0 0
    %2189 = vmatprep.subr.bf16.mxu0 0
    %2190 = vmatpush1.bf16.msra.mxu0 0
    %2191 = vmatprep.subr.bf16.mxu0 0
    %2192 = vmatpush1.bf16.msra.mxu0 0
    %2193 = vmatprep.subr.bf16.mxu0 0
    %2194 = vmatpush1.bf16.msra.mxu0 0
    %2195 = vmatprep.subr.bf16.mxu0 0
    %2196 = vmatpush1.bf16.msra.mxu0 0
    %2197 = vmatprep.subr.bf16.mxu0 0
    %2198 = vmatpush1.bf16.msra.mxu0 0
    %2199 = vmatprep.subr.bf16.mxu0 0
    %2200 = vmatpush1.bf16.msra.mxu0 0
    %2201 = vmatprep.subr.bf16.mxu0 0
    %2202 = vmatpush1.bf16.msra.mxu0 0
    %2203 = vmatprep.subr.bf16.mxu0 0
    %2204 = vmatpush1.bf16.msra.mxu0 0
    %2205 = vmatprep.mubr.bf16.mxu0 0
    %2206 = vmatmul.mubr.bf16.gmra.mrb[0].mxu0 %v2171
    %v2207 = vpop.f32.mrb[0].mxu0
    %v2208 = vadd.f32 %v96, %v2207
    %v2209 = vpop.f32.mrb[0].mxu0
    %v2210 = vpop.f32.mrb[0].mxu0
    %v2211 = vpop.f32.mrb[0].mxu0
    %2212 = vdwg.mxu0
    %vm2213 = vcmp.gt.f32.partialorder %v2208, 0.0
    %v2214 = vmul.f32 %v2208, 1.442695
    %v2215 = vpow.pop %v2214
    %v2216 = vsub.f32 %v2215, 1.0
    %v2217 = vsel %vm2213, %v2208, %v2216
    %v2218 = vpack.c.bf16 %v2217, %v2217
    %v2220 = vsel %vm182, %v2218, 0
    %2222 = vmatprep.subr.bf16.mxu0 0
    %2223 = vmatpush1.bf16.msra.mxu0 %v240
    %2224 = vmatprep.subr.bf16.mxu0 0
    %2225 = vmatpush1.bf16.msra.mxu0 %v241
    %2226 = vmatprep.subr.bf16.mxu0 0
    %2227 = vmatpush1.bf16.msra.mxu0 0
    %2228 = vmatprep.subr.bf16.mxu0 0
    %2229 = vmatpush1.bf16.msra.mxu0 0
    %2230 = vmatprep.subr.bf16.mxu0 0
    %2231 = vmatpush1.bf16.msra.mxu0 0
    %2232 = vmatprep.subr.bf16.mxu0 0
    %2233 = vmatpush1.bf16.msra.mxu0 0
    %2234 = vmatprep.subr.bf16.mxu0 0
    %2235 = vmatpush1.bf16.msra.mxu0 0
    %2236 = vmatprep.subr.bf16.mxu0 0
    %2237 = vmatpush1.bf16.msra.mxu0 0
    %2238 = vmatprep.subr.bf16.mxu0 0
    %2239 = vmatpush1.bf16.msra.mxu0 0
    %2240 = vmatprep.subr.bf16.mxu0 0
    %2241 = vmatpush1.bf16.msra.mxu0 0
    %2242 = vmatprep.subr.bf16.mxu0 0
    %2243 = vmatpush1.bf16.msra.mxu0 0
    %2244 = vmatprep.subr.bf16.mxu0 0
    %2245 = vmatpush1.bf16.msra.mxu0 0
    %2246 = vmatprep.subr.bf16.mxu0 0
    %2247 = vmatpush1.bf16.msra.mxu0 0
    %2248 = vmatprep.subr.bf16.mxu0 0
    %2249 = vmatpush1.bf16.msra.mxu0 0
    %2250 = vmatprep.subr.bf16.mxu0 0
    %2251 = vmatpush1.bf16.msra.mxu0 0
    %2252 = vmatprep.subr.bf16.mxu0 0
    %2253 = vmatpush1.bf16.msra.mxu0 0
    %2254 = vmatprep.mubr.bf16.mxu0 0
    %2255 = vmatmul.mubr.bf16.gmra.mrb[0].mxu0 %v2220
    %v2256 = vpop.f32.mrb[0].mxu0
    %v2257 = vadd.f32 %v103, %v2256
    %v2258 = vpop.f32.mrb[0].mxu0
    %v2259 = vpop.f32.mrb[0].mxu0
    %v2260 = vpop.f32.mrb[0].mxu0
    %2261 = vdwg.mxu0
    %v2262 = vstv %s2114
    %v2263 = vmul.f32 %v2262, %v2257
    %v2264 = vadd.f32 %v2112, %v2263
    %p2265 = scmp.gt.s32.totalorder %s66, 14
    %s2266 = scalar_select %p2265, %s65, 0.0
    %s2267 = smul.f32 %s65, 14.0
    %s2268 = sadd.f32 %s64, %s2267
    %v2269 = vpack.c.bf16 %v2264, %v2264
    %v2270 = vstv %s2268
    %v2271 = vmul.f32 %v2270, %v82
    %v2273 = vsel %vm119, %v2269, 0
    %2275 = vmatprep.subr.bf16.mxu0 0
    %2276 = vmatpush1.bf16.msra.mxu0 %v117
    %2277 = vmatprep.subr.bf16.mxu0 0
    %2278 = vmatpush1.bf16.msra.mxu0 0
    %2279 = vmatprep.subr.bf16.mxu0 0
    %2280 = vmatpush1.bf16.msra.mxu0 0
    %2281 = vmatprep.subr.bf16.mxu0 0
    %2282 = vmatpush1.bf16.msra.mxu0 0
    %2283 = vmatprep.subr.bf16.mxu0 0
    %2284 = vmatpush1.bf16.msra.mxu0 0
    %2285 = vmatprep.subr.bf16.mxu0 0
    %2286 = vmatpush1.bf16.msra.mxu0 0
    %2287 = vmatprep.subr.bf16.mxu0 0
    %2288 = vmatpush1.bf16.msra.mxu0 0
    %2289 = vmatprep.subr.bf16.mxu0 0
    %2290 = vmatpush1.bf16.msra.mxu0 0
    %2291 = vmatprep.subr.bf16.mxu0 0
    %2292 = vmatpush1.bf16.msra.mxu0 0
    %2293 = vmatprep.subr.bf16.mxu0 0
    %2294 = vmatpush1.bf16.msra.mxu0 0
    %2295 = vmatprep.subr.bf16.mxu0 0
    %2296 = vmatpush1.bf16.msra.mxu0 0
    %2297 = vmatprep.subr.bf16.mxu0 0
    %2298 = vmatpush1.bf16.msra.mxu0 0
    %2299 = vmatprep.subr.bf16.mxu0 0
    %2300 = vmatpush1.bf16.msra.mxu0 0
    %2301 = vmatprep.subr.bf16.mxu0 0
    %2302 = vmatpush1.bf16.msra.mxu0 0
    %2303 = vmatprep.subr.bf16.mxu0 0
    %2304 = vmatpush1.bf16.msra.mxu0 0
    %2305 = vmatprep.subr.bf16.mxu0 0
    %2306 = vmatpush1.bf16.msra.mxu0 0
    %2307 = vmatprep.mubr.bf16.mxu0 0
    %2308 = vmatmul.mubr.bf16.gmra.mrb[0].mxu0 %v2273
    %v2309 = vpop.f32.mrb[0].mxu0
    %v2310 = vadd.f32 %v2271, %v2309
    %v2311 = vpop.f32.mrb[0].mxu0
    %v2312 = vpop.f32.mrb[0].mxu0
    %v2313 = vpop.f32.mrb[0].mxu0
    %2314 = vdwg.mxu0
    %v2315 = vadd.f32 %v2310, %v89
    %vm2316 = vcmp.gt.f32.partialorder %v2315, 0.0
    %v2317 = vmul.f32 %v2315, 1.442695
    %v2318 = vpow.pop %v2317
    %v2319 = vsub.f32 %v2318, 1.0
    %v2320 = vsel %vm2316, %v2315, %v2319
    %v2321 = vpack.c.bf16 %v2320, %v2320
    %v2323 = vsel %vm182, %v2321, 0
    %2325 = vmatprep.subr.bf16.mxu0 0
    %2326 = vmatpush1.bf16.msra.mxu0 %v178
    %2327 = vmatprep.subr.bf16.mxu0 0
    %2328 = vmatpush1.bf16.msra.mxu0 %v179
    %2329 = vmatprep.subr.bf16.mxu0 0
    %2330 = vmatpush1.bf16.msra.mxu0 0
    %2331 = vmatprep.subr.bf16.mxu0 0
    %2332 = vmatpush1.bf16.msra.mxu0 0
    %2333 = vmatprep.subr.bf16.mxu0 0
    %2334 = vmatpush1.bf16.msra.mxu0 0
    %2335 = vmatprep.subr.bf16.mxu0 0
    %2336 = vmatpush1.bf16.msra.mxu0 0
    %2337 = vmatprep.subr.bf16.mxu0 0
    %2338 = vmatpush1.bf16.msra.mxu0 0
    %2339 = vmatprep.subr.bf16.mxu0 0
    %2340 = vmatpush1.bf16.msra.mxu0 0
    %2341 = vmatprep.subr.bf16.mxu0 0
    %2342 = vmatpush1.bf16.msra.mxu0 0
    %2343 = vmatprep.subr.bf16.mxu0 0
    %2344 = vmatpush1.bf16.msra.mxu0 0
    %2345 = vmatprep.subr.bf16.mxu0 0
    %2346 = vmatpush1.bf16.msra.mxu0 0
    %2347 = vmatprep.subr.bf16.mxu0 0
    %2348 = vmatpush1.bf16.msra.mxu0 0
    %2349 = vmatprep.subr.bf16.mxu0 0
    %2350 = vmatpush1.bf16.msra.mxu0 0
    %2351 = vmatprep.subr.bf16.mxu0 0
    %2352 = vmatpush1.bf16.msra.mxu0 0
    %2353 = vmatprep.subr.bf16.mxu0 0
    %2354 = vmatpush1.bf16.msra.mxu0 0
    %2355 = vmatprep.subr.bf16.mxu0 0
    %2356 = vmatpush1.bf16.msra.mxu0 0
    %2357 = vmatprep.mubr.bf16.mxu0 0
    %2358 = vmatmul.mubr.bf16.gmra.mrb[0].mxu0 %v2323
    %v2359 = vpop.f32.mrb[0].mxu0
    %v2360 = vadd.f32 %v96, %v2359
    %v2361 = vpop.f32.mrb[0].mxu0
    %v2362 = vpop.f32.mrb[0].mxu0
    %v2363 = vpop.f32.mrb[0].mxu0
    %2364 = vdwg.mxu0
    %vm2365 = vcmp.gt.f32.partialorder %v2360, 0.0
    %v2366 = vmul.f32 %v2360, 1.442695
    %v2367 = vpow.pop %v2366
    %v2368 = vsub.f32 %v2367, 1.0
    %v2369 = vsel %vm2365, %v2360, %v2368
    %v2370 = vpack.c.bf16 %v2369, %v2369
    %v2372 = vsel %vm182, %v2370, 0
    %2374 = vmatprep.subr.bf16.mxu0 0
    %2375 = vmatpush1.bf16.msra.mxu0 %v240
    %2376 = vmatprep.subr.bf16.mxu0 0
    %2377 = vmatpush1.bf16.msra.mxu0 %v241
    %2378 = vmatprep.subr.bf16.mxu0 0
    %2379 = vmatpush1.bf16.msra.mxu0 0
    %2380 = vmatprep.subr.bf16.mxu0 0
    %2381 = vmatpush1.bf16.msra.mxu0 0
    %2382 = vmatprep.subr.bf16.mxu0 0
    %2383 = vmatpush1.bf16.msra.mxu0 0
    %2384 = vmatprep.subr.bf16.mxu0 0
    %2385 = vmatpush1.bf16.msra.mxu0 0
    %2386 = vmatprep.subr.bf16.mxu0 0
    %2387 = vmatpush1.bf16.msra.mxu0 0
    %2388 = vmatprep.subr.bf16.mxu0 0
    %2389 = vmatpush1.bf16.msra.mxu0 0
    %2390 = vmatprep.subr.bf16.mxu0 0
    %2391 = vmatpush1.bf16.msra.mxu0 0
    %2392 = vmatprep.subr.bf16.mxu0 0
    %2393 = vmatpush1.bf16.msra.mxu0 0
    %2394 = vmatprep.subr.bf16.mxu0 0
    %2395 = vmatpush1.bf16.msra.mxu0 0
    %2396 = vmatprep.subr.bf16.mxu0 0
    %2397 = vmatpush1.bf16.msra.mxu0 0
    %2398 = vmatprep.subr.bf16.mxu0 0
    %2399 = vmatpush1.bf16.msra.mxu0 0
    %2400 = vmatprep.subr.bf16.mxu0 0
    %2401 = vmatpush1.bf16.msra.mxu0 0
    %2402 = vmatprep.subr.bf16.mxu0 0
    %2403 = vmatpush1.bf16.msra.mxu0 0
    %2404 = vmatprep.subr.bf16.mxu0 0
    %2405 = vmatpush1.bf16.msra.mxu0 0
    %2406 = vmatprep.mubr.bf16.mxu0 0
    %2407 = vmatmul.mubr.bf16.gmra.mrb[0].mxu0 %v2372
    %v2408 = vpop.f32.mrb[0].mxu0
    %v2409 = vadd.f32 %v103, %v2408
    %v2410 = vpop.f32.mrb[0].mxu0
    %v2411 = vpop.f32.mrb[0].mxu0
    %v2412 = vpop.f32.mrb[0].mxu0
    %2413 = vdwg.mxu0
    %v2414 = vstv %s2266
    %v2415 = vmul.f32 %v2414, %v2409
    %v2416 = vadd.f32 %v2264, %v2415
    %p2417 = scmp.gt.s32.totalorder %s66, 15
    %s2418 = scalar_select %p2417, %s65, 0.0
    %s2419 = smul.f32 %s65, 15.0
    %s2420 = sadd.f32 %s64, %s2419
    %v2421 = vpack.c.bf16 %v2416, %v2416
    %v2422 = vstv %s2420
    %v2423 = vmul.f32 %v2422, %v82
    %v2425 = vsel %vm119, %v2421, 0
    %2427 = vmatprep.subr.bf16.mxu0 0
    %2428 = vmatpush1.bf16.msra.mxu0 %v117
    %2429 = vmatprep.subr.bf16.mxu0 0
    %2430 = vmatpush1.bf16.msra.mxu0 0
    %2431 = vmatprep.subr.bf16.mxu0 0
    %2432 = vmatpush1.bf16.msra.mxu0 0
    %2433 = vmatprep.subr.bf16.mxu0 0
    %2434 = vmatpush1.bf16.msra.mxu0 0
    %2435 = vmatprep.subr.bf16.mxu0 0
    %2436 = vmatpush1.bf16.msra.mxu0 0
    %2437 = vmatprep.subr.bf16.mxu0 0
    %2438 = vmatpush1.bf16.msra.mxu0 0
    %2439 = vmatprep.subr.bf16.mxu0 0
    %2440 = vmatpush1.bf16.msra.mxu0 0
    %2441 = vmatprep.subr.bf16.mxu0 0
    %2442 = vmatpush1.bf16.msra.mxu0 0
    %2443 = vmatprep.subr.bf16.mxu0 0
    %2444 = vmatpush1.bf16.msra.mxu0 0
    %2445 = vmatprep.subr.bf16.mxu0 0
    %2446 = vmatpush1.bf16.msra.mxu0 0
    %2447 = vmatprep.subr.bf16.mxu0 0
    %2448 = vmatpush1.bf16.msra.mxu0 0
    %2449 = vmatprep.subr.bf16.mxu0 0
    %2450 = vmatpush1.bf16.msra.mxu0 0
    %2451 = vmatprep.subr.bf16.mxu0 0
    %2452 = vmatpush1.bf16.msra.mxu0 0
    %2453 = vmatprep.subr.bf16.mxu0 0
    %2454 = vmatpush1.bf16.msra.mxu0 0
    %2455 = vmatprep.subr.bf16.mxu0 0
    %2456 = vmatpush1.bf16.msra.mxu0 0
    %2457 = vmatprep.subr.bf16.mxu0 0
    %2458 = vmatpush1.bf16.msra.mxu0 0
    %2459 = vmatprep.mubr.bf16.mxu0 0
    %2460 = vmatmul.mubr.bf16.gmra.mrb[0].mxu0 %v2425
    %v2461 = vpop.f32.mrb[0].mxu0
    %v2462 = vadd.f32 %v2423, %v2461
    %v2463 = vpop.f32.mrb[0].mxu0
    %v2464 = vpop.f32.mrb[0].mxu0
    %v2465 = vpop.f32.mrb[0].mxu0
    %2466 = vdwg.mxu0
    %v2467 = vadd.f32 %v2462, %v89
    %vm2468 = vcmp.gt.f32.partialorder %v2467, 0.0
    %v2469 = vmul.f32 %v2467, 1.442695
    %v2470 = vpow.pop %v2469
    %v2471 = vsub.f32 %v2470, 1.0
    %v2472 = vsel %vm2468, %v2467, %v2471
    %v2473 = vpack.c.bf16 %v2472, %v2472
    %v2475 = vsel %vm182, %v2473, 0
    %2477 = vmatprep.subr.bf16.mxu0 0
    %2478 = vmatpush1.bf16.msra.mxu0 %v178
    %2479 = vmatprep.subr.bf16.mxu0 0
    %2480 = vmatpush1.bf16.msra.mxu0 %v179
    %2481 = vmatprep.subr.bf16.mxu0 0
    %2482 = vmatpush1.bf16.msra.mxu0 0
    %2483 = vmatprep.subr.bf16.mxu0 0
    %2484 = vmatpush1.bf16.msra.mxu0 0
    %2485 = vmatprep.subr.bf16.mxu0 0
    %2486 = vmatpush1.bf16.msra.mxu0 0
    %2487 = vmatprep.subr.bf16.mxu0 0
    %2488 = vmatpush1.bf16.msra.mxu0 0
    %2489 = vmatprep.subr.bf16.mxu0 0
    %2490 = vmatpush1.bf16.msra.mxu0 0
    %2491 = vmatprep.subr.bf16.mxu0 0
    %2492 = vmatpush1.bf16.msra.mxu0 0
    %2493 = vmatprep.subr.bf16.mxu0 0
    %2494 = vmatpush1.bf16.msra.mxu0 0
    %2495 = vmatprep.subr.bf16.mxu0 0
    %2496 = vmatpush1.bf16.msra.mxu0 0
    %2497 = vmatprep.subr.bf16.mxu0 0
    %2498 = vmatpush1.bf16.msra.mxu0 0
    %2499 = vmatprep.subr.bf16.mxu0 0
    %2500 = vmatpush1.bf16.msra.mxu0 0
    %2501 = vmatprep.subr.bf16.mxu0 0
    %2502 = vmatpush1.bf16.msra.mxu0 0
    %2503 = vmatprep.subr.bf16.mxu0 0
    %2504 = vmatpush1.bf16.msra.mxu0 0
    %2505 = vmatprep.subr.bf16.mxu0 0
    %2506 = vmatpush1.bf16.msra.mxu0 0
    %2507 = vmatprep.subr.bf16.mxu0 0
    %2508 = vmatpush1.bf16.msra.mxu0 0
    %2509 = vmatprep.mubr.bf16.mxu0 0
    %2510 = vmatmul.mubr.bf16.gmra.mrb[0].mxu0 %v2475
    %v2511 = vpop.f32.mrb[0].mxu0
    %v2512 = vadd.f32 %v96, %v2511
    %v2513 = vpop.f32.mrb[0].mxu0
    %v2514 = vpop.f32.mrb[0].mxu0
    %v2515 = vpop.f32.mrb[0].mxu0
    %2516 = vdwg.mxu0
    %vm2517 = vcmp.gt.f32.partialorder %v2512, 0.0
    %v2518 = vmul.f32 %v2512, 1.442695
    %v2519 = vpow.pop %v2518
    %v2520 = vsub.f32 %v2519, 1.0
    %v2521 = vsel %vm2517, %v2512, %v2520
    %v2522 = vpack.c.bf16 %v2521, %v2521
    %v2524 = vsel %vm182, %v2522, 0
    %2526 = vmatprep.subr.bf16.mxu0 0
    %2527 = vmatpush1.bf16.msra.mxu0 %v240
    %2528 = vmatprep.subr.bf16.mxu0 0
    %2529 = vmatpush1.bf16.msra.mxu0 %v241
    %2530 = vmatprep.subr.bf16.mxu0 0
    %2531 = vmatpush1.bf16.msra.mxu0 0
    %2532 = vmatprep.subr.bf16.mxu0 0
    %2533 = vmatpush1.bf16.msra.mxu0 0
    %2534 = vmatprep.subr.bf16.mxu0 0
    %2535 = vmatpush1.bf16.msra.mxu0 0
    %2536 = vmatprep.subr.bf16.mxu0 0
    %2537 = vmatpush1.bf16.msra.mxu0 0
    %2538 = vmatprep.subr.bf16.mxu0 0
    %2539 = vmatpush1.bf16.msra.mxu0 0
    %2540 = vmatprep.subr.bf16.mxu0 0
    %2541 = vmatpush1.bf16.msra.mxu0 0
    %2542 = vmatprep.subr.bf16.mxu0 0
    %2543 = vmatpush1.bf16.msra.mxu0 0
    %2544 = vmatprep.subr.bf16.mxu0 0
    %2545 = vmatpush1.bf16.msra.mxu0 0
    %2546 = vmatprep.subr.bf16.mxu0 0
    %2547 = vmatpush1.bf16.msra.mxu0 0
    %2548 = vmatprep.subr.bf16.mxu0 0
    %2549 = vmatpush1.bf16.msra.mxu0 0
    %2550 = vmatprep.subr.bf16.mxu0 0
    %2551 = vmatpush1.bf16.msra.mxu0 0
    %2552 = vmatprep.subr.bf16.mxu0 0
    %2553 = vmatpush1.bf16.msra.mxu0 0
    %2554 = vmatprep.subr.bf16.mxu0 0
    %2555 = vmatpush1.bf16.msra.mxu0 0
    %2556 = vmatprep.subr.bf16.mxu0 0
    %2557 = vmatpush1.bf16.msra.mxu0 0
    %2558 = vmatprep.mubr.bf16.mxu0 0
    %2559 = vmatmul.mubr.bf16.gmra.mrb[0].mxu0 %v2524
    %v2560 = vpop.f32.mrb[0].mxu0
    %v2561 = vadd.f32 %v103, %v2560
    %v2562 = vpop.f32.mrb[0].mxu0
    %v2563 = vpop.f32.mrb[0].mxu0
    %v2564 = vpop.f32.mrb[0].mxu0
    %2565 = vdwg.mxu0
    %v2566 = vstv %s2418
    %v2567 = vmul.f32 %v2566, %v2561
    %v2568 = vadd.f32 %v2416, %v2567
    %p2569 = scmp.gt.s32.totalorder %s66, 16
    %s2570 = scalar_select %p2569, %s65, 0.0
    %s2571 = smul.f32 %s65, 16.0
    %s2572 = sadd.f32 %s64, %s2571
    %v2573 = vpack.c.bf16 %v2568, %v2568
    %v2574 = vstv %s2572
    %v2575 = vmul.f32 %v2574, %v82
    %v2577 = vsel %vm119, %v2573, 0
    %2579 = vmatprep.subr.bf16.mxu0 0
    %2580 = vmatpush1.bf16.msra.mxu0 %v117
    %2581 = vmatprep.subr.bf16.mxu0 0
    %2582 = vmatpush1.bf16.msra.mxu0 0
    %2583 = vmatprep.subr.bf16.mxu0 0
    %2584 = vmatpush1.bf16.msra.mxu0 0
    %2585 = vmatprep.subr.bf16.mxu0 0
    %2586 = vmatpush1.bf16.msra.mxu0 0
    %2587 = vmatprep.subr.bf16.mxu0 0
    %2588 = vmatpush1.bf16.msra.mxu0 0
    %2589 = vmatprep.subr.bf16.mxu0 0
    %2590 = vmatpush1.bf16.msra.mxu0 0
    %2591 = vmatprep.subr.bf16.mxu0 0
    %2592 = vmatpush1.bf16.msra.mxu0 0
    %2593 = vmatprep.subr.bf16.mxu0 0
    %2594 = vmatpush1.bf16.msra.mxu0 0
    %2595 = vmatprep.subr.bf16.mxu0 0
    %2596 = vmatpush1.bf16.msra.mxu0 0
    %2597 = vmatprep.subr.bf16.mxu0 0
    %2598 = vmatpush1.bf16.msra.mxu0 0
    %2599 = vmatprep.subr.bf16.mxu0 0
    %2600 = vmatpush1.bf16.msra.mxu0 0
    %2601 = vmatprep.subr.bf16.mxu0 0
    %2602 = vmatpush1.bf16.msra.mxu0 0
    %2603 = vmatprep.subr.bf16.mxu0 0
    %2604 = vmatpush1.bf16.msra.mxu0 0
    %2605 = vmatprep.subr.bf16.mxu0 0
    %2606 = vmatpush1.bf16.msra.mxu0 0
    %2607 = vmatprep.subr.bf16.mxu0 0
    %2608 = vmatpush1.bf16.msra.mxu0 0
    %2609 = vmatprep.subr.bf16.mxu0 0
    %2610 = vmatpush1.bf16.msra.mxu0 0
    %2611 = vmatprep.mubr.bf16.mxu0 0
    %2612 = vmatmul.mubr.bf16.gmra.mrb[0].mxu0 %v2577
    %v2613 = vpop.f32.mrb[0].mxu0
    %v2614 = vadd.f32 %v2575, %v2613
    %v2615 = vpop.f32.mrb[0].mxu0
    %v2616 = vpop.f32.mrb[0].mxu0
    %v2617 = vpop.f32.mrb[0].mxu0
    %2618 = vdwg.mxu0
    %v2619 = vadd.f32 %v2614, %v89
    %vm2620 = vcmp.gt.f32.partialorder %v2619, 0.0
    %v2621 = vmul.f32 %v2619, 1.442695
    %v2622 = vpow.pop %v2621
    %v2623 = vsub.f32 %v2622, 1.0
    %v2624 = vsel %vm2620, %v2619, %v2623
    %v2625 = vpack.c.bf16 %v2624, %v2624
    %v2627 = vsel %vm182, %v2625, 0
    %2629 = vmatprep.subr.bf16.mxu0 0
    %2630 = vmatpush1.bf16.msra.mxu0 %v178
    %2631 = vmatprep.subr.bf16.mxu0 0
    %2632 = vmatpush1.bf16.msra.mxu0 %v179
    %2633 = vmatprep.subr.bf16.mxu0 0
    %2634 = vmatpush1.bf16.msra.mxu0 0
    %2635 = vmatprep.subr.bf16.mxu0 0
    %2636 = vmatpush1.bf16.msra.mxu0 0
    %2637 = vmatprep.subr.bf16.mxu0 0
    %2638 = vmatpush1.bf16.msra.mxu0 0
    %2639 = vmatprep.subr.bf16.mxu0 0
    %2640 = vmatpush1.bf16.msra.mxu0 0
    %2641 = vmatprep.subr.bf16.mxu0 0
    %2642 = vmatpush1.bf16.msra.mxu0 0
    %2643 = vmatprep.subr.bf16.mxu0 0
    %2644 = vmatpush1.bf16.msra.mxu0 0
    %2645 = vmatprep.subr.bf16.mxu0 0
    %2646 = vmatpush1.bf16.msra.mxu0 0
    %2647 = vmatprep.subr.bf16.mxu0 0
    %2648 = vmatpush1.bf16.msra.mxu0 0
    %2649 = vmatprep.subr.bf16.mxu0 0
    %2650 = vmatpush1.bf16.msra.mxu0 0
    %2651 = vmatprep.subr.bf16.mxu0 0
    %2652 = vmatpush1.bf16.msra.mxu0 0
    %2653 = vmatprep.subr.bf16.mxu0 0
    %2654 = vmatpush1.bf16.msra.mxu0 0
    %2655 = vmatprep.subr.bf16.mxu0 0
    %2656 = vmatpush1.bf16.msra.mxu0 0
    %2657 = vmatprep.subr.bf16.mxu0 0
    %2658 = vmatpush1.bf16.msra.mxu0 0
    %2659 = vmatprep.subr.bf16.mxu0 0
    %2660 = vmatpush1.bf16.msra.mxu0 0
    %2661 = vmatprep.mubr.bf16.mxu0 0
    %2662 = vmatmul.mubr.bf16.gmra.mrb[0].mxu0 %v2627
    %v2663 = vpop.f32.mrb[0].mxu0
    %v2664 = vadd.f32 %v96, %v2663
    %v2665 = vpop.f32.mrb[0].mxu0
    %v2666 = vpop.f32.mrb[0].mxu0
    %v2667 = vpop.f32.mrb[0].mxu0
    %2668 = vdwg.mxu0
    %vm2669 = vcmp.gt.f32.partialorder %v2664, 0.0
    %v2670 = vmul.f32 %v2664, 1.442695
    %v2671 = vpow.pop %v2670
    %v2672 = vsub.f32 %v2671, 1.0
    %v2673 = vsel %vm2669, %v2664, %v2672
    %v2674 = vpack.c.bf16 %v2673, %v2673
    %v2676 = vsel %vm182, %v2674, 0
    %2678 = vmatprep.subr.bf16.mxu0 0
    %2679 = vmatpush1.bf16.msra.mxu0 %v240
    %2680 = vmatprep.subr.bf16.mxu0 0
    %2681 = vmatpush1.bf16.msra.mxu0 %v241
    %2682 = vmatprep.subr.bf16.mxu0 0
    %2683 = vmatpush1.bf16.msra.mxu0 0
    %2684 = vmatprep.subr.bf16.mxu0 0
    %2685 = vmatpush1.bf16.msra.mxu0 0
    %2686 = vmatprep.subr.bf16.mxu0 0
    %2687 = vmatpush1.bf16.msra.mxu0 0
    %2688 = vmatprep.subr.bf16.mxu0 0
    %2689 = vmatpush1.bf16.msra.mxu0 0
    %2690 = vmatprep.subr.bf16.mxu0 0
    %2691 = vmatpush1.bf16.msra.mxu0 0
    %2692 = vmatprep.subr.bf16.mxu0 0
    %2693 = vmatpush1.bf16.msra.mxu0 0
    %2694 = vmatprep.subr.bf16.mxu0 0
    %2695 = vmatpush1.bf16.msra.mxu0 0
    %2696 = vmatprep.subr.bf16.mxu0 0
    %2697 = vmatpush1.bf16.msra.mxu0 0
    %2698 = vmatprep.subr.bf16.mxu0 0
    %2699 = vmatpush1.bf16.msra.mxu0 0
    %2700 = vmatprep.subr.bf16.mxu0 0
    %2701 = vmatpush1.bf16.msra.mxu0 0
    %2702 = vmatprep.subr.bf16.mxu0 0
    %2703 = vmatpush1.bf16.msra.mxu0 0
    %2704 = vmatprep.subr.bf16.mxu0 0
    %2705 = vmatpush1.bf16.msra.mxu0 0
    %2706 = vmatprep.subr.bf16.mxu0 0
    %2707 = vmatpush1.bf16.msra.mxu0 0
    %2708 = vmatprep.subr.bf16.mxu0 0
    %2709 = vmatpush1.bf16.msra.mxu0 0
    %2710 = vmatprep.mubr.bf16.mxu0 0
    %2711 = vmatmul.mubr.bf16.gmra.mrb[0].mxu0 %v2676
    %v2712 = vpop.f32.mrb[0].mxu0
    %v2713 = vadd.f32 %v103, %v2712
    %v2714 = vpop.f32.mrb[0].mxu0
    %v2715 = vpop.f32.mrb[0].mxu0
    %v2716 = vpop.f32.mrb[0].mxu0
    %2717 = vdwg.mxu0
    %v2718 = vstv %s2570
    %v2719 = vmul.f32 %v2718, %v2713
    %v2720 = vadd.f32 %v2568, %v2719
    %p2721 = scmp.gt.s32.totalorder %s66, 17
    %s2722 = scalar_select %p2721, %s65, 0.0
    %s2723 = smul.f32 %s65, 17.0
    %s2724 = sadd.f32 %s64, %s2723
    %v2725 = vpack.c.bf16 %v2720, %v2720
    %v2726 = vstv %s2724
    %v2727 = vmul.f32 %v2726, %v82
    %v2729 = vsel %vm119, %v2725, 0
    %2731 = vmatprep.subr.bf16.mxu0 0
    %2732 = vmatpush1.bf16.msra.mxu0 %v117
    %2733 = vmatprep.subr.bf16.mxu0 0
    %2734 = vmatpush1.bf16.msra.mxu0 0
    %2735 = vmatprep.subr.bf16.mxu0 0
    %2736 = vmatpush1.bf16.msra.mxu0 0
    %2737 = vmatprep.subr.bf16.mxu0 0
    %2738 = vmatpush1.bf16.msra.mxu0 0
    %2739 = vmatprep.subr.bf16.mxu0 0
    %2740 = vmatpush1.bf16.msra.mxu0 0
    %2741 = vmatprep.subr.bf16.mxu0 0
    %2742 = vmatpush1.bf16.msra.mxu0 0
    %2743 = vmatprep.subr.bf16.mxu0 0
    %2744 = vmatpush1.bf16.msra.mxu0 0
    %2745 = vmatprep.subr.bf16.mxu0 0
    %2746 = vmatpush1.bf16.msra.mxu0 0
    %2747 = vmatprep.subr.bf16.mxu0 0
    %2748 = vmatpush1.bf16.msra.mxu0 0
    %2749 = vmatprep.subr.bf16.mxu0 0
    %2750 = vmatpush1.bf16.msra.mxu0 0
    %2751 = vmatprep.subr.bf16.mxu0 0
    %2752 = vmatpush1.bf16.msra.mxu0 0
    %2753 = vmatprep.subr.bf16.mxu0 0
    %2754 = vmatpush1.bf16.msra.mxu0 0
    %2755 = vmatprep.subr.bf16.mxu0 0
    %2756 = vmatpush1.bf16.msra.mxu0 0
    %2757 = vmatprep.subr.bf16.mxu0 0
    %2758 = vmatpush1.bf16.msra.mxu0 0
    %2759 = vmatprep.subr.bf16.mxu0 0
    %2760 = vmatpush1.bf16.msra.mxu0 0
    %2761 = vmatprep.subr.bf16.mxu0 0
    %2762 = vmatpush1.bf16.msra.mxu0 0
    %2763 = vmatprep.mubr.bf16.mxu0 0
    %2764 = vmatmul.mubr.bf16.gmra.mrb[0].mxu0 %v2729
    %v2765 = vpop.f32.mrb[0].mxu0
    %v2766 = vadd.f32 %v2727, %v2765
    %v2767 = vpop.f32.mrb[0].mxu0
    %v2768 = vpop.f32.mrb[0].mxu0
    %v2769 = vpop.f32.mrb[0].mxu0
    %2770 = vdwg.mxu0
    %v2771 = vadd.f32 %v2766, %v89
    %vm2772 = vcmp.gt.f32.partialorder %v2771, 0.0
    %v2773 = vmul.f32 %v2771, 1.442695
    %v2774 = vpow.pop %v2773
    %v2775 = vsub.f32 %v2774, 1.0
    %v2776 = vsel %vm2772, %v2771, %v2775
    %v2777 = vpack.c.bf16 %v2776, %v2776
    %v2779 = vsel %vm182, %v2777, 0
    %2781 = vmatprep.subr.bf16.mxu0 0
    %2782 = vmatpush1.bf16.msra.mxu0 %v178
    %2783 = vmatprep.subr.bf16.mxu0 0
    %2784 = vmatpush1.bf16.msra.mxu0 %v179
    %2785 = vmatprep.subr.bf16.mxu0 0
    %2786 = vmatpush1.bf16.msra.mxu0 0
    %2787 = vmatprep.subr.bf16.mxu0 0
    %2788 = vmatpush1.bf16.msra.mxu0 0
    %2789 = vmatprep.subr.bf16.mxu0 0
    %2790 = vmatpush1.bf16.msra.mxu0 0
    %2791 = vmatprep.subr.bf16.mxu0 0
    %2792 = vmatpush1.bf16.msra.mxu0 0
    %2793 = vmatprep.subr.bf16.mxu0 0
    %2794 = vmatpush1.bf16.msra.mxu0 0
    %2795 = vmatprep.subr.bf16.mxu0 0
    %2796 = vmatpush1.bf16.msra.mxu0 0
    %2797 = vmatprep.subr.bf16.mxu0 0
    %2798 = vmatpush1.bf16.msra.mxu0 0
    %2799 = vmatprep.subr.bf16.mxu0 0
    %2800 = vmatpush1.bf16.msra.mxu0 0
    %2801 = vmatprep.subr.bf16.mxu0 0
    %2802 = vmatpush1.bf16.msra.mxu0 0
    %2803 = vmatprep.subr.bf16.mxu0 0
    %2804 = vmatpush1.bf16.msra.mxu0 0
    %2805 = vmatprep.subr.bf16.mxu0 0
    %2806 = vmatpush1.bf16.msra.mxu0 0
    %2807 = vmatprep.subr.bf16.mxu0 0
    %2808 = vmatpush1.bf16.msra.mxu0 0
    %2809 = vmatprep.subr.bf16.mxu0 0
    %2810 = vmatpush1.bf16.msra.mxu0 0
    %2811 = vmatprep.subr.bf16.mxu0 0
    %2812 = vmatpush1.bf16.msra.mxu0 0
    %2813 = vmatprep.mubr.bf16.mxu0 0
    %2814 = vmatmul.mubr.bf16.gmra.mrb[0].mxu0 %v2779
    %v2815 = vpop.f32.mrb[0].mxu0
    %v2816 = vadd.f32 %v96, %v2815
    %v2817 = vpop.f32.mrb[0].mxu0
    %v2818 = vpop.f32.mrb[0].mxu0
    %v2819 = vpop.f32.mrb[0].mxu0
    %2820 = vdwg.mxu0
    %vm2821 = vcmp.gt.f32.partialorder %v2816, 0.0
    %v2822 = vmul.f32 %v2816, 1.442695
    %v2823 = vpow.pop %v2822
    %v2824 = vsub.f32 %v2823, 1.0
    %v2825 = vsel %vm2821, %v2816, %v2824
    %v2826 = vpack.c.bf16 %v2825, %v2825
    %v2828 = vsel %vm182, %v2826, 0
    %2830 = vmatprep.subr.bf16.mxu0 0
    %2831 = vmatpush1.bf16.msra.mxu0 %v240
    %2832 = vmatprep.subr.bf16.mxu0 0
    %2833 = vmatpush1.bf16.msra.mxu0 %v241
    %2834 = vmatprep.subr.bf16.mxu0 0
    %2835 = vmatpush1.bf16.msra.mxu0 0
    %2836 = vmatprep.subr.bf16.mxu0 0
    %2837 = vmatpush1.bf16.msra.mxu0 0
    %2838 = vmatprep.subr.bf16.mxu0 0
    %2839 = vmatpush1.bf16.msra.mxu0 0
    %2840 = vmatprep.subr.bf16.mxu0 0
    %2841 = vmatpush1.bf16.msra.mxu0 0
    %2842 = vmatprep.subr.bf16.mxu0 0
    %2843 = vmatpush1.bf16.msra.mxu0 0
    %2844 = vmatprep.subr.bf16.mxu0 0
    %2845 = vmatpush1.bf16.msra.mxu0 0
    %2846 = vmatprep.subr.bf16.mxu0 0
    %2847 = vmatpush1.bf16.msra.mxu0 0
    %2848 = vmatprep.subr.bf16.mxu0 0
    %2849 = vmatpush1.bf16.msra.mxu0 0
    %2850 = vmatprep.subr.bf16.mxu0 0
    %2851 = vmatpush1.bf16.msra.mxu0 0
    %2852 = vmatprep.subr.bf16.mxu0 0
    %2853 = vmatpush1.bf16.msra.mxu0 0
    %2854 = vmatprep.subr.bf16.mxu0 0
    %2855 = vmatpush1.bf16.msra.mxu0 0
    %2856 = vmatprep.subr.bf16.mxu0 0
    %2857 = vmatpush1.bf16.msra.mxu0 0
    %2858 = vmatprep.subr.bf16.mxu0 0
    %2859 = vmatpush1.bf16.msra.mxu0 0
    %2860 = vmatprep.subr.bf16.mxu0 0
    %2861 = vmatpush1.bf16.msra.mxu0 0
    %2862 = vmatprep.mubr.bf16.mxu0 0
    %2863 = vmatmul.mubr.bf16.gmra.mrb[0].mxu0 %v2828
    %v2864 = vpop.f32.mrb[0].mxu0
    %v2865 = vadd.f32 %v103, %v2864
    %v2866 = vpop.f32.mrb[0].mxu0
    %v2867 = vpop.f32.mrb[0].mxu0
    %v2868 = vpop.f32.mrb[0].mxu0
    %2869 = vdwg.mxu0
    %v2870 = vstv %s2722
    %v2871 = vmul.f32 %v2870, %v2865
    %v2872 = vadd.f32 %v2720, %v2871
    %p2873 = scmp.gt.s32.totalorder %s66, 18
    %s2874 = scalar_select %p2873, %s65, 0.0
    %s2875 = smul.f32 %s65, 18.0
    %s2876 = sadd.f32 %s64, %s2875
    %v2877 = vpack.c.bf16 %v2872, %v2872
    %v2878 = vstv %s2876
    %v2879 = vmul.f32 %v2878, %v82
    %v2881 = vsel %vm119, %v2877, 0
    %2883 = vmatprep.subr.bf16.mxu0 0
    %2884 = vmatpush1.bf16.msra.mxu0 %v117
    %2885 = vmatprep.subr.bf16.mxu0 0
    %2886 = vmatpush1.bf16.msra.mxu0 0
    %2887 = vmatprep.subr.bf16.mxu0 0
    %2888 = vmatpush1.bf16.msra.mxu0 0
    %2889 = vmatprep.subr.bf16.mxu0 0
    %2890 = vmatpush1.bf16.msra.mxu0 0
    %2891 = vmatprep.subr.bf16.mxu0 0
    %2892 = vmatpush1.bf16.msra.mxu0 0
    %2893 = vmatprep.subr.bf16.mxu0 0
    %2894 = vmatpush1.bf16.msra.mxu0 0
    %2895 = vmatprep.subr.bf16.mxu0 0
    %2896 = vmatpush1.bf16.msra.mxu0 0
    %2897 = vmatprep.subr.bf16.mxu0 0
    %2898 = vmatpush1.bf16.msra.mxu0 0
    %2899 = vmatprep.subr.bf16.mxu0 0
    %2900 = vmatpush1.bf16.msra.mxu0 0
    %2901 = vmatprep.subr.bf16.mxu0 0
    %2902 = vmatpush1.bf16.msra.mxu0 0
    %2903 = vmatprep.subr.bf16.mxu0 0
    %2904 = vmatpush1.bf16.msra.mxu0 0
    %2905 = vmatprep.subr.bf16.mxu0 0
    %2906 = vmatpush1.bf16.msra.mxu0 0
    %2907 = vmatprep.subr.bf16.mxu0 0
    %2908 = vmatpush1.bf16.msra.mxu0 0
    %2909 = vmatprep.subr.bf16.mxu0 0
    %2910 = vmatpush1.bf16.msra.mxu0 0
    %2911 = vmatprep.subr.bf16.mxu0 0
    %2912 = vmatpush1.bf16.msra.mxu0 0
    %2913 = vmatprep.subr.bf16.mxu0 0
    %2914 = vmatpush1.bf16.msra.mxu0 0
    %2915 = vmatprep.mubr.bf16.mxu0 0
    %2916 = vmatmul.mubr.bf16.gmra.mrb[0].mxu0 %v2881
    %v2917 = vpop.f32.mrb[0].mxu0
    %v2918 = vadd.f32 %v2879, %v2917
    %v2919 = vpop.f32.mrb[0].mxu0
    %v2920 = vpop.f32.mrb[0].mxu0
    %v2921 = vpop.f32.mrb[0].mxu0
    %2922 = vdwg.mxu0
    %v2923 = vadd.f32 %v2918, %v89
    %vm2924 = vcmp.gt.f32.partialorder %v2923, 0.0
    %v2925 = vmul.f32 %v2923, 1.442695
    %v2926 = vpow.pop %v2925
    %v2927 = vsub.f32 %v2926, 1.0
    %v2928 = vsel %vm2924, %v2923, %v2927
    %v2929 = vpack.c.bf16 %v2928, %v2928
    %v2931 = vsel %vm182, %v2929, 0
    %2933 = vmatprep.subr.bf16.mxu0 0
    %2934 = vmatpush1.bf16.msra.mxu0 %v178
    %2935 = vmatprep.subr.bf16.mxu0 0
    %2936 = vmatpush1.bf16.msra.mxu0 %v179
    %2937 = vmatprep.subr.bf16.mxu0 0
    %2938 = vmatpush1.bf16.msra.mxu0 0
    %2939 = vmatprep.subr.bf16.mxu0 0
    %2940 = vmatpush1.bf16.msra.mxu0 0
    %2941 = vmatprep.subr.bf16.mxu0 0
    %2942 = vmatpush1.bf16.msra.mxu0 0
    %2943 = vmatprep.subr.bf16.mxu0 0
    %2944 = vmatpush1.bf16.msra.mxu0 0
    %2945 = vmatprep.subr.bf16.mxu0 0
    %2946 = vmatpush1.bf16.msra.mxu0 0
    %2947 = vmatprep.subr.bf16.mxu0 0
    %2948 = vmatpush1.bf16.msra.mxu0 0
    %2949 = vmatprep.subr.bf16.mxu0 0
    %2950 = vmatpush1.bf16.msra.mxu0 0
    %2951 = vmatprep.subr.bf16.mxu0 0
    %2952 = vmatpush1.bf16.msra.mxu0 0
    %2953 = vmatprep.subr.bf16.mxu0 0
    %2954 = vmatpush1.bf16.msra.mxu0 0
    %2955 = vmatprep.subr.bf16.mxu0 0
    %2956 = vmatpush1.bf16.msra.mxu0 0
    %2957 = vmatprep.subr.bf16.mxu0 0
    %2958 = vmatpush1.bf16.msra.mxu0 0
    %2959 = vmatprep.subr.bf16.mxu0 0
    %2960 = vmatpush1.bf16.msra.mxu0 0
    %2961 = vmatprep.subr.bf16.mxu0 0
    %2962 = vmatpush1.bf16.msra.mxu0 0
    %2963 = vmatprep.subr.bf16.mxu0 0
    %2964 = vmatpush1.bf16.msra.mxu0 0
    %2965 = vmatprep.mubr.bf16.mxu0 0
    %2966 = vmatmul.mubr.bf16.gmra.mrb[0].mxu0 %v2931
    %v2967 = vpop.f32.mrb[0].mxu0
    %v2968 = vadd.f32 %v96, %v2967
    %v2969 = vpop.f32.mrb[0].mxu0
    %v2970 = vpop.f32.mrb[0].mxu0
    %v2971 = vpop.f32.mrb[0].mxu0
    %2972 = vdwg.mxu0
    %vm2973 = vcmp.gt.f32.partialorder %v2968, 0.0
    %v2974 = vmul.f32 %v2968, 1.442695
    %v2975 = vpow.pop %v2974
    %v2976 = vsub.f32 %v2975, 1.0
    %v2977 = vsel %vm2973, %v2968, %v2976
    %v2978 = vpack.c.bf16 %v2977, %v2977
    %v2980 = vsel %vm182, %v2978, 0
    %2982 = vmatprep.subr.bf16.mxu0 0
    %2983 = vmatpush1.bf16.msra.mxu0 %v240
    %2984 = vmatprep.subr.bf16.mxu0 0
    %2985 = vmatpush1.bf16.msra.mxu0 %v241
    %2986 = vmatprep.subr.bf16.mxu0 0
    %2987 = vmatpush1.bf16.msra.mxu0 0
    %2988 = vmatprep.subr.bf16.mxu0 0
    %2989 = vmatpush1.bf16.msra.mxu0 0
    %2990 = vmatprep.subr.bf16.mxu0 0
    %2991 = vmatpush1.bf16.msra.mxu0 0
    %2992 = vmatprep.subr.bf16.mxu0 0
    %2993 = vmatpush1.bf16.msra.mxu0 0
    %2994 = vmatprep.subr.bf16.mxu0 0
    %2995 = vmatpush1.bf16.msra.mxu0 0
    %2996 = vmatprep.subr.bf16.mxu0 0
    %2997 = vmatpush1.bf16.msra.mxu0 0
    %2998 = vmatprep.subr.bf16.mxu0 0
    %2999 = vmatpush1.bf16.msra.mxu0 0
    %3000 = vmatprep.subr.bf16.mxu0 0
    %3001 = vmatpush1.bf16.msra.mxu0 0
    %3002 = vmatprep.subr.bf16.mxu0 0
    %3003 = vmatpush1.bf16.msra.mxu0 0
    %3004 = vmatprep.subr.bf16.mxu0 0
    %3005 = vmatpush1.bf16.msra.mxu0 0
    %3006 = vmatprep.subr.bf16.mxu0 0
    %3007 = vmatpush1.bf16.msra.mxu0 0
    %3008 = vmatprep.subr.bf16.mxu0 0
    %3009 = vmatpush1.bf16.msra.mxu0 0
    %3010 = vmatprep.subr.bf16.mxu0 0
    %3011 = vmatpush1.bf16.msra.mxu0 0
    %3012 = vmatprep.subr.bf16.mxu0 0
    %3013 = vmatpush1.bf16.msra.mxu0 0
    %3014 = vmatprep.mubr.bf16.mxu0 0
    %3015 = vmatmul.mubr.bf16.gmra.mrb[0].mxu0 %v2980
    %v3016 = vpop.f32.mrb[0].mxu0
    %v3017 = vadd.f32 %v103, %v3016
    %v3018 = vpop.f32.mrb[0].mxu0
    %v3019 = vpop.f32.mrb[0].mxu0
    %v3020 = vpop.f32.mrb[0].mxu0
    %3021 = vdwg.mxu0
    %v3022 = vstv %s2874
    %v3023 = vmul.f32 %v3022, %v3017
    %v3024 = vadd.f32 %v2872, %v3023
    %p3025 = scmp.gt.s32.totalorder %s66, 19
    %s3026 = scalar_select %p3025, %s65, 0.0
    %s3027 = smul.f32 %s65, 19.0
    %s3028 = sadd.f32 %s64, %s3027
    %v3029 = vpack.c.bf16 %v3024, %v3024
    %v3030 = vstv %s3028
    %v3031 = vmul.f32 %v3030, %v82
    %v3033 = vsel %vm119, %v3029, 0
    %3035 = vmatprep.subr.bf16.mxu0 0
    %3036 = vmatpush1.bf16.msra.mxu0 %v117
    %3037 = vmatprep.subr.bf16.mxu0 0
    %3038 = vmatpush1.bf16.msra.mxu0 0
    %3039 = vmatprep.subr.bf16.mxu0 0
    %3040 = vmatpush1.bf16.msra.mxu0 0
    %3041 = vmatprep.subr.bf16.mxu0 0
    %3042 = vmatpush1.bf16.msra.mxu0 0
    %3043 = vmatprep.subr.bf16.mxu0 0
    %3044 = vmatpush1.bf16.msra.mxu0 0
    %3045 = vmatprep.subr.bf16.mxu0 0
    %3046 = vmatpush1.bf16.msra.mxu0 0
    %3047 = vmatprep.subr.bf16.mxu0 0
    %3048 = vmatpush1.bf16.msra.mxu0 0
    %3049 = vmatprep.subr.bf16.mxu0 0
    %3050 = vmatpush1.bf16.msra.mxu0 0
    %3051 = vmatprep.subr.bf16.mxu0 0
    %3052 = vmatpush1.bf16.msra.mxu0 0
    %3053 = vmatprep.subr.bf16.mxu0 0
    %3054 = vmatpush1.bf16.msra.mxu0 0
    %3055 = vmatprep.subr.bf16.mxu0 0
    %3056 = vmatpush1.bf16.msra.mxu0 0
    %3057 = vmatprep.subr.bf16.mxu0 0
    %3058 = vmatpush1.bf16.msra.mxu0 0
    %3059 = vmatprep.subr.bf16.mxu0 0
    %3060 = vmatpush1.bf16.msra.mxu0 0
    %3061 = vmatprep.subr.bf16.mxu0 0
    %3062 = vmatpush1.bf16.msra.mxu0 0
    %3063 = vmatprep.subr.bf16.mxu0 0
    %3064 = vmatpush1.bf16.msra.mxu0 0
    %3065 = vmatprep.subr.bf16.mxu0 0
    %3066 = vmatpush1.bf16.msra.mxu0 0
    %3067 = vmatprep.mubr.bf16.mxu0 0
    %3068 = vmatmul.mubr.bf16.gmra.mrb[0].mxu0 %v3033
    %v3069 = vpop.f32.mrb[0].mxu0
    %v3070 = vadd.f32 %v3031, %v3069
    %v3071 = vpop.f32.mrb[0].mxu0
    %v3072 = vpop.f32.mrb[0].mxu0
    %v3073 = vpop.f32.mrb[0].mxu0
    %3074 = vdwg.mxu0
    %v3075 = vadd.f32 %v3070, %v89
    %vm3076 = vcmp.gt.f32.partialorder %v3075, 0.0
    %v3077 = vmul.f32 %v3075, 1.442695
    %v3078 = vpow.pop %v3077
    %v3079 = vsub.f32 %v3078, 1.0
    %v3080 = vsel %vm3076, %v3075, %v3079
    %v3081 = vpack.c.bf16 %v3080, %v3080
    %v3083 = vsel %vm182, %v3081, 0
    %3085 = vmatprep.subr.bf16.mxu0 0
    %3086 = vmatpush1.bf16.msra.mxu0 %v178
    %3087 = vmatprep.subr.bf16.mxu0 0
    %3088 = vmatpush1.bf16.msra.mxu0 %v179
    %3089 = vmatprep.subr.bf16.mxu0 0
    %3090 = vmatpush1.bf16.msra.mxu0 0
    %3091 = vmatprep.subr.bf16.mxu0 0
    %3092 = vmatpush1.bf16.msra.mxu0 0
    %3093 = vmatprep.subr.bf16.mxu0 0
    %3094 = vmatpush1.bf16.msra.mxu0 0
    %3095 = vmatprep.subr.bf16.mxu0 0
    %3096 = vmatpush1.bf16.msra.mxu0 0
    %3097 = vmatprep.subr.bf16.mxu0 0
    %3098 = vmatpush1.bf16.msra.mxu0 0
    %3099 = vmatprep.subr.bf16.mxu0 0
    %3100 = vmatpush1.bf16.msra.mxu0 0
    %3101 = vmatprep.subr.bf16.mxu0 0
    %3102 = vmatpush1.bf16.msra.mxu0 0
    %3103 = vmatprep.subr.bf16.mxu0 0
    %3104 = vmatpush1.bf16.msra.mxu0 0
    %3105 = vmatprep.subr.bf16.mxu0 0
    %3106 = vmatpush1.bf16.msra.mxu0 0
    %3107 = vmatprep.subr.bf16.mxu0 0
    %3108 = vmatpush1.bf16.msra.mxu0 0
    %3109 = vmatprep.subr.bf16.mxu0 0
    %3110 = vmatpush1.bf16.msra.mxu0 0
    %3111 = vmatprep.subr.bf16.mxu0 0
    %3112 = vmatpush1.bf16.msra.mxu0 0
    %3113 = vmatprep.subr.bf16.mxu0 0
    %3114 = vmatpush1.bf16.msra.mxu0 0
    %3115 = vmatprep.subr.bf16.mxu0 0
    %3116 = vmatpush1.bf16.msra.mxu0 0
    %3117 = vmatprep.mubr.bf16.mxu0 0
    %3118 = vmatmul.mubr.bf16.gmra.mrb[0].mxu0 %v3083
    %v3119 = vpop.f32.mrb[0].mxu0
    %v3120 = vadd.f32 %v96, %v3119
    %v3121 = vpop.f32.mrb[0].mxu0
    %v3122 = vpop.f32.mrb[0].mxu0
    %v3123 = vpop.f32.mrb[0].mxu0
    %3124 = vdwg.mxu0
    %vm3125 = vcmp.gt.f32.partialorder %v3120, 0.0
    %v3126 = vmul.f32 %v3120, 1.442695
    %v3127 = vpow.pop %v3126
    %v3128 = vsub.f32 %v3127, 1.0
    %v3129 = vsel %vm3125, %v3120, %v3128
    %v3130 = vpack.c.bf16 %v3129, %v3129
    %v3132 = vsel %vm182, %v3130, 0
    %3134 = vmatprep.subr.bf16.mxu0 0
    %3135 = vmatpush1.bf16.msra.mxu0 %v240
    %3136 = vmatprep.subr.bf16.mxu0 0
    %3137 = vmatpush1.bf16.msra.mxu0 %v241
    %3138 = vmatprep.subr.bf16.mxu0 0
    %3139 = vmatpush1.bf16.msra.mxu0 0
    %3140 = vmatprep.subr.bf16.mxu0 0
    %3141 = vmatpush1.bf16.msra.mxu0 0
    %3142 = vmatprep.subr.bf16.mxu0 0
    %3143 = vmatpush1.bf16.msra.mxu0 0
    %3144 = vmatprep.subr.bf16.mxu0 0
    %3145 = vmatpush1.bf16.msra.mxu0 0
    %3146 = vmatprep.subr.bf16.mxu0 0
    %3147 = vmatpush1.bf16.msra.mxu0 0
    %3148 = vmatprep.subr.bf16.mxu0 0
    %3149 = vmatpush1.bf16.msra.mxu0 0
    %3150 = vmatprep.subr.bf16.mxu0 0
    %3151 = vmatpush1.bf16.msra.mxu0 0
    %3152 = vmatprep.subr.bf16.mxu0 0
    %3153 = vmatpush1.bf16.msra.mxu0 0
    %3154 = vmatprep.subr.bf16.mxu0 0
    %3155 = vmatpush1.bf16.msra.mxu0 0
    %3156 = vmatprep.subr.bf16.mxu0 0
    %3157 = vmatpush1.bf16.msra.mxu0 0
    %3158 = vmatprep.subr.bf16.mxu0 0
    %3159 = vmatpush1.bf16.msra.mxu0 0
    %3160 = vmatprep.subr.bf16.mxu0 0
    %3161 = vmatpush1.bf16.msra.mxu0 0
    %3162 = vmatprep.subr.bf16.mxu0 0
    %3163 = vmatpush1.bf16.msra.mxu0 0
    %3164 = vmatprep.subr.bf16.mxu0 0
    %3165 = vmatpush1.bf16.msra.mxu0 0
    %3166 = vmatprep.mubr.bf16.mxu0 0
    %3167 = vmatmul.mubr.bf16.gmra.mrb[0].mxu0 %v3132
    %v3168 = vpop.f32.mrb[0].mxu0
    %v3169 = vadd.f32 %v103, %v3168
    %v3170 = vpop.f32.mrb[0].mxu0
    %v3171 = vpop.f32.mrb[0].mxu0
    %v3172 = vpop.f32.mrb[0].mxu0
    %3173 = vdwg.mxu0
    %v3174 = vstv %s3026
    %v3175 = vmul.f32 %v3174, %v3169
    %v3176 = vadd.f32 %v3024, %v3175
    %3177 = vst.msk [vmem:[#allocation2] sm:$0xff] %vm119, %v3176
    %3178 = vst.msk [vmem:[#allocation9] sm:$0xff] %vm119, %v3176
    // Predicated region
    $region54: #{tpu_custom_call.1} parent=1 // pred_check
      _
    $region55: #{tpu_custom_call.1} parent=1 // pred_check_branch
      %3180 = sbr.rel (0) target = $region57
    $region56: #{tpu_custom_call.1} parent=1 // pred_region
      %s3182 = ssub.s32 128, 128
      %3183 = vsyncadd [#allocation8], %s3182
      %s3185 = sshll.u32 [#allocation9], 4
      %s3186 = int_to_ptr.vmem [resolvable:$true] %s3185
      %3188 = dma.vmem_to_hbm [thread:$0]  %s3186, 128, %s11, [#allocation8]
    $region57: #{tpu_custom_call.1} parent=1 // pred_fallthru
      _
    // Predicated region
    $region58: #{tpu_custom_call.1} parent=1 // pred_check
      _
    $region59: #{tpu_custom_call.1} parent=1 // pred_check_branch
      %3190 = sbr.rel (0) target = $region61
    $region60: #{tpu_custom_call.1} parent=1 // pred_region
      %3191 = dma.done [#allocation8], 128
    $region61: #{tpu_custom_call.1} parent=1 // pred_fallthru
      _
    %3192 = vsyncpa [#allocation7], 1
    %3193 = vsyncpa [#allocation8], 1

</llo_original>
